<compile_context>
chip_gen: v6e
topology: v6e:2x2x1
jax: 0.10.0
libtpu: 0.0.40
codegen_flags: <defaults>
</compile_context>

<pallas_src>
import functools
import numpy as np
import jax
import jax.numpy as jnp
from jax import lax
from jax.experimental import pallas as pl
from jax.experimental.pallas import tpu as pltpu


# ----------------------------- hardware-aware sizing -----------------------------

def _vmem_capacity_bytes():
    try:
        info = pltpu.get_tpu_info()
        for name in ("vmem_capacity_bytes", "vmem_size_bytes", "vmem_bytes"):
            v = getattr(info, name, None)
            if v:
                return int(v)
    except Exception:
        pass
    return 64 * 1024 * 1024          # conservative fallback (v7x per-TC VMEM)


def _per_tile_temp_bytes(C, Hp8, Wp, N, outc):
    # f32 bytes of live per-tile temporaries per unit of TILE_HW:
    #   ~3x the (C*Hp8, N*T) gather result (result + reshape copy + product),
    #   ~3x the (Hp8/Wp, N*T) one-hots (iota, compare, select temporaries),
    #   sampled tensor + output accumulator + packed coord rows.
    return 4 * N * (3 * C * Hp8 + 3 * (Hp8 + Wp) + 2 * (C + outc) + 8)


def _pick_tile_hw(hw, C, Hp8, Wp, N, outc, vmem_cap):
    per_t = _per_tile_temp_bytes(C, Hp8, Wp, N, outc)
    budget = min(vmem_cap // 4, 24 << 20)          # temporaries budget (gen-aware)
    t = (budget // per_t) // 128 * 128
    t = int(min(max(t, 128), 2048))                # 128 is the lane-width hard floor
    hw_pad128 = -(-hw // 128) * 128
    return max(128, min(t, hw_pad128))


def _main_vmem_limit(C, Hp8, Wp, N, outc, R, T, vmem_cap):
    nt = N * T
    io = 4 * (2 * C * Hp8 * Wp      # resident padded image (double-buffered)
              + 2 * R * nt          # packed coord block
              + 2 * outc * T        # output block
              + 2 * N * outc * C)   # conv weights
    temps = _per_tile_temp_bytes(C, Hp8, Wp, N, outc) * T
    need = int((io + temps) * 1.5) + (4 << 20)
    return int(min(max(need, 32 << 20), int(vmem_cap * 0.85)))


# ----------------------------- p_conv / m_conv pre-pass -----------------------------

def _prepass_matmul_kernel(p_ref, w_ref, b_ref, o_ref):
    # p_ref: (K, tm)  patches tile (B*h*w on lanes -> lane-dense output stores)
    # w_ref: (Nout, K), b_ref: (Nout, 1), o_ref: (Nout, tm)
    o_ref[...] = (jnp.dot(w_ref[...], p_ref[...], preferred_element_type=jnp.float32)
                  + b_ref[...]).astype(o_ref.dtype)


def pallas_conv3x3_prepass(patches, w_all, b_all):
    """patches: (K, M), w_all: (Nout, K), b_all: (Nout,) -> (Nout, M). M (=B*h*w) on lanes."""
    K, M = patches.shape
    Nout = w_all.shape[0]
    m_pad128 = -(-M // 128) * 128
    tm = max(128, min(2048, ((8 << 20) // (max(K, Nout) * 4)) // 128 * 128))
    tm = min(tm, m_pad128)
    m_pad = -(-M // tm) * tm
    if m_pad != M:
        patches = jnp.pad(patches, ((0, 0), (0, m_pad - M)))
    out = pl.pallas_call(
        _prepass_matmul_kernel,
        out_shape=jax.ShapeDtypeStruct((Nout, m_pad), jnp.float32),
        grid=(m_pad // tm,),
        in_specs=[pl.BlockSpec((K, tm), lambda i: (0, i)),
                  pl.BlockSpec((Nout, K), lambda i: (0, 0)),
                  pl.BlockSpec((Nout, 1), lambda i: (0, 0))],
        out_specs=pl.BlockSpec((Nout, tm), lambda i: (0, i)),
        compiler_params=pltpu.CompilerParams(dimension_semantics=("parallel",)),
    )(patches.astype(jnp.float32), w_all.astype(jnp.float32),
      b_all.reshape(Nout, 1).astype(jnp.float32))
    return out[:, :M]


# ----------------------------- main deformable sampling kernel -----------------------------

def _deform_sample_conv_kernel(x_ref, pk_ref, w_ref, o_ref, *,
                               Hp, Wp, Hp8, N, T, C, modulation):
    """One (batch, hw-tile) grid step: separable bilinear sample + ks-strided conv.

    x_ref : (1, C*Hp8, Wp)   padded image, rows grouped per channel (Hp padded to 8k)
    pk_ref: (1, 1, R, N*T)   packed coords: row 0 = y, row 1 = x, row 2 = modulation (opt)
    w_ref : (N, outc, C)     final conv weight per kernel position
    o_ref : (1, outc, T)     lane-dense output tile
    """
    x2d = x_ref[0]                       # (C*Hp8, Wp)
    py = pk_ref[0, 0, 0:1, :]            # (1, N*T)
    px = pk_ref[0, 0, 1:2, :]            # (1, N*T)

    # bilinear corners (float math identical to the PyTorch reference)
    fy = jnp.floor(py)
    fx = jnp.floor(px)
    y0f = jnp.clip(fy, 0.0, Hp - 1.0)
    y1f = jnp.clip(fy + 1.0, 0.0, Hp - 1.0)
    x0f = jnp.clip(fx, 0.0, Wp - 1.0)
    x1f = jnp.clip(fx + 1.0, 0.0, Wp - 1.0)
    pyc = jnp.clip(py, 0.0, Hp - 1.0)
    pxc = jnp.clip(px, 0.0, Wp - 1.0)

    # separable corner weights: g_{ab} = wy_a * wx_b  (modulation folded into the row factor)
    wy0 = 1.0 + (y0f - pyc)
    wy1 = 1.0 - (y1f - pyc)
    wx0 = 1.0 + (x0f - pxc)
    wx1 = 1.0 - (x1f - pxc)
    if modulation:
        mod = pk_ref[0, 0, 2:3, :]
        wy0 = wy0 * mod
        wy1 = wy1 * mod

    # exact int32 indices
    y0 = y0f.astype(jnp.int32)
    y1 = y1f.astype(jnp.int32)
    x0 = x0f.astype(jnp.int32)
    x1 = x1f.astype(jnp.int32)

    NT = N * T
    # weighted column one-hot (Wp, N*T) and row weight map (Hp8, N*T); coincident clipped
    # corners add their weights (same behaviour as the reference's sum of 4 gathers)
    col_iota = lax.broadcasted_iota(jnp.int32, (Wp, NT), 0)
    x_oh = (jnp.where(col_iota == x0, wx0, 0.0)
            + jnp.where(col_iota == x1, wx1, 0.0))                 # (Wp, NT)
    row_iota = lax.broadcasted_iota(jnp.int32, (Hp8, NT), 0)
    y_w = (jnp.where(row_iota == y0, wy0, 0.0)
           + jnp.where(row_iota == y1, wy1, 0.0))                  # (Hp8, NT)

    # column gather: ONE MXU matmul with M = C*Hp8 (instead of M = C over K = Hp*Wp)
    g1 = jnp.dot(x2d, x_oh, preferred_element_type=jnp.float32)    # (C*Hp8, NT)
    g1 = g1.reshape(C, Hp8, NT)                                    # 8-aligned split
    samp = jnp.sum(g1 * y_w[None, :, :], axis=1)                   # (C, NT), row gather

    # ks*ks-strided conv: unrolled small matmuls, f32 accumulation (few % of MXU work)
    out_t = jnp.dot(w_ref[0], samp[:, 0:T], preferred_element_type=jnp.float32)
    for n in range(1, N):
        out_t = out_t + jnp.dot(w_ref[n], samp[:, n * T:(n + 1) * T],
                                preferred_element_type=jnp.float32)
    o_ref[0] = out_t.astype(o_ref.dtype)                           # (outc, T), lane-dense


# ----------------------------- forward wrapper -----------------------------

def deform_conv2d_forward(x, params, *, kernel_size=3, padding=1, stride=1,
                          modulation=False, tile_hw_override=None):
    x = x.astype(jnp.float32)
    B, C, H, W = x.shape
    ks = kernel_size
    N = ks * ks
    outc = params["conv_w"].shape[0]

    # ---- p_conv (+ m_conv, fused): 3x3, pad=1, stride -> im2col + ONE lane-dense matmul ----
    xp1 = jnp.pad(x, ((0, 0), (0, 0), (1, 1), (1, 1)))
    h = (H + 2 - 3) // stride + 1
    w = (W + 2 - 3) // stride + 1
    hw = h * w
    slices = [xp1[:, :, dy:dy + stride * (h - 1) + 1:stride, dx:dx + stride * (w - 1) + 1:stride]
              for dy in range(3) for dx in range(3)]                # each (B, C, h, w)
    patches = jnp.stack(slices, axis=2)                             # (B, C, 9, h, w)
    patches = patches.transpose(1, 2, 0, 3, 4).reshape(C * 9, B * hw)

    if modulation:
        w_all = jnp.concatenate([params["p_w"].reshape(2 * N, C * 9),
                                 params["m_w"].reshape(N, C * 9)], axis=0)    # (3N, C*9)
        b_all = jnp.concatenate([params["p_b"], params["m_b"]], axis=0)
    else:
        w_all = params["p_w"].reshape(2 * N, C * 9)                           # (2N, C*9)
        b_all = params["p_b"]
    pm = pallas_conv3x3_prepass(patches, w_all, b_all)                        # (2N|3N, B*h*w)
    off_r = pm[:N].reshape(N, B, h, w)
    off_c = pm[N:2 * N].reshape(N, B, h, w)

    # ---- sampling positions p = p0 + pn + offset (coords in the padded image) ----
    k = (ks - 1) // 2
    pn_r = jnp.repeat(jnp.arange(-k, k + 1), ks).astype(jnp.float32)          # n//ks - k
    pn_c = jnp.tile(jnp.arange(-k, k + 1), ks).astype(jnp.float32)            # n%ks  - k
    p0_r = (jnp.arange(h) * stride + 1).astype(jnp.float32)
    p0_c = (jnp.arange(w) * stride + 1).astype(jnp.float32)
    p_r = off_r + p0_r[None, None, :, None] + pn_r[:, None, None, None]       # (N, B, h, w)
    p_c = off_c + p0_c[None, None, None, :] + pn_c[:, None, None, None]

    # ---- padded image; height padded to a multiple of 8 for aligned in-kernel reshapes ----
    xpad = jnp.pad(x, ((0, 0), (0, 0), (padding, padding), (padding, padding)))
    Hp, Wp = xpad.shape[2], xpad.shape[3]
    Hp8 = -(-Hp // 8) * 8
    if Hp8 != Hp:
        xpad = jnp.pad(xpad, ((0, 0), (0, 0), (0, Hp8 - Hp), (0, 0)))
    x_sp = xpad.reshape(B, C * Hp8, Wp)                                       # (B, C*Hp8, Wp)
    w_t = params["conv_w"].reshape(outc, C, N).transpose(2, 0, 1)             # (N, outc, C)

    vmem_cap = _vmem_capacity_bytes()
    if tile_hw_override is not None:
        T = max(128, (int(tile_hw_override) // 128) * 128)
    else:
        T = _pick_tile_hw(hw, C, Hp8, Wp, N, outc, vmem_cap)
    hw_pad = -(-hw // T) * T
    num_tiles = hw_pad // T
    NT = N * T

    def to_tiles(a):   # (N, B, h, w) -> (B, num_tiles, N*T), columns ordered (n, t)
        a = a.transpose(1, 0, 2, 3).reshape(B, N, hw)
        if hw_pad != hw:
            a = jnp.pad(a, ((0, 0), (0, 0), (0, hw_pad - hw)))
        return a.reshape(B, N, num_tiles, T).transpose(0, 2, 1, 3).reshape(B, num_tiles, NT)

    parts = [to_tiles(p_r), to_tiles(p_c)]
    if modulation:
        m = jax.nn.sigmoid(pm[2 * N:]).reshape(N, B, h, w)
        parts.append(to_tiles(m))
    coords = jnp.stack(parts, axis=2)                                         # (B, tiles, R, NT)
    R = coords.shape[2]

    out = pl.pallas_call(
        functools.partial(_deform_sample_conv_kernel, Hp=Hp, Wp=Wp, Hp8=Hp8,
                          N=N, T=T, C=C, modulation=modulation),
        out_shape=jax.ShapeDtypeStruct((B, outc, hw_pad), jnp.float32),
        grid=(B, num_tiles),
        in_specs=[pl.BlockSpec((1, C * Hp8, Wp), lambda b, t: (b, 0, 0)),     # resident per batch
                  pl.BlockSpec((1, 1, R, NT), lambda b, t: (b, t, 0, 0)),     # packed coords
                  pl.BlockSpec((N, outc, C), lambda b, t: (0, 0, 0))],        # resident weights
        out_specs=pl.BlockSpec((1, outc, T), lambda b, t: (b, 0, t)),
        compiler_params=pltpu.CompilerParams(
            dimension_semantics=("parallel", "parallel"),
            vmem_limit_bytes=_main_vmem_limit(C, Hp8, Wp, N, outc, R, T, vmem_cap)),
    )(x_sp, coords, w_t)

    return out[:, :, :hw].reshape(B, outc, h, w)                              # NCHW


# ----------------------------- params (deterministic) -----------------------------

def init_params(key, inc, outc, ks=3, modulation=False):
    N = ks * ks
    k1, k2, k3 = jax.random.split(key, 3)
    bound = 1.0 / np.sqrt(inc * ks * ks)
    params = {
        # p_conv: weight set to 0 exactly as in the module, bias uses default uniform init
        "p_w": jnp.zeros((2 * N, inc, 3, 3), jnp.float32),
        "p_b": jax.random.uniform(k1, (2 * N,), jnp.float32, -bound, bound),
        # final conv: kernel=ks, stride=ks, bias=None
        "conv_w": 0.1 * jax.random.normal(k2, (outc, inc, ks, ks), jnp.float32),
    }
    if modulation:
        params["m_w"] = jnp.zeros((N, inc, 3, 3), jnp.float32)
        params["m_b"] = jax.random.uniform(k3, (N,), jnp.float32, -bound, bound)
    return params


# ----------------------------- pure-JAX reference (for checking) -----------------------------

def ref_forward(x, params, *, kernel_size=3, padding=1, stride=1, modulation=False):
    x = x.astype(jnp.float32)
    B, C, H, W = x.shape
    ks = kernel_size
    N = ks * ks
    outc = params["conv_w"].shape[0]
    dn = ("NCHW", "OIHW", "NCHW")
    offset = lax.conv_general_dilated(x, params["p_w"], (stride, stride), [(1, 1), (1, 1)],
                                      dimension_numbers=dn) + params["p_b"][None, :, None, None]
    if modulation:
        m = jax.nn.sigmoid(
            lax.conv_general_dilated(x, params["m_w"], (stride, stride), [(1, 1), (1, 1)],
                                     dimension_numbers=dn) + params["m_b"][None, :, None, None])
    _, _, h, w = offset.shape
    off = offset.transpose(0, 2, 3, 1)
    xp = jnp.pad(x, ((0, 0), (0, 0), (padding, padding), (padding, padding)))
    Hp, Wp = xp.shape[2], xp.shape[3]
    k = (ks - 1) // 2
    pn_r = jnp.repeat(jnp.arange(-k, k + 1), ks).astype(jnp.float32)
    pn_c = jnp.tile(jnp.arange(-k, k + 1), ks).astype(jnp.float32)
    p_r = off[..., :N] + (jnp.arange(h) * stride + 1).astype(jnp.float32)[None, :, None, None] + pn_r
    p_c = off[..., N:] + (jnp.arange(w) * stride + 1).astype(jnp.float32)[None, None, :, None] + pn_c
    fy, fx = jnp.floor(p_r), jnp.floor(p_c)
    y0, x0 = jnp.clip(fy, 0, Hp - 1), jnp.clip(fx, 0, Wp - 1)
    y1, x1 = jnp.clip(fy + 1, 0, Hp - 1), jnp.clip(fx + 1, 0, Wp - 1)
    pr, pc = jnp.clip(p_r, 0, Hp - 1), jnp.clip(p_c, 0, Wp - 1)
    g_lt = (1 + (y0 - pr)) * (1 + (x0 - pc))
    g_rb = (1 - (y1 - pr)) * (1 - (x1 - pc))
    g_lb = (1 + (y0 - pr)) * (1 - (x1 - pc))
    g_rt = (1 - (y1 - pr)) * (1 + (x0 - pc))
    xflat = xp.reshape(B, C, Hp * Wp)

    def gather(yi, xi):
        idx = (yi * Wp + xi).astype(jnp.int32).reshape(B, 1, -1)
        idx = jnp.broadcast_to(idx, (B, C, idx.shape[-1]))
        return jnp.take_along_axis(xflat, idx, axis=-1).reshape(B, C, h, w, N)

    x_off = (g_lt[:, None] * gather(y0, x0) + g_rb[:, None] * gather(y1, x1)
             + g_lb[:, None] * gather(y0, x1) + g_rt[:, None] * gather(y1, x0))
    if modulation:
        x_off = x_off * m.transpose(0, 2, 3, 1)[:, None]
    return jnp.einsum("bchwn,ocn->bohw", x_off, params["conv_w"].reshape(outc, C, N))


# ----------------------------- main -----------------------------

if __name__ == "__main__":
    # TODO(synk): the _set_lr backward hook (0.1x gradient scaling) is training-only and has no
    # forward-pass equivalent, so it is intentionally not represented here.
    key = jax.random.PRNGKey(0)
    kx, kp = jax.random.split(key)
    B, C, outc = 2, 4, 8
    # (H, W, forced tile): 24x24 exercises the padded-hw path; forced 128-tile exercises multi-tile
    cases = [((16, 16), None), ((24, 24), None), ((16, 16), 128)]
    for (H, W), tile_override in cases:
        x = jax.random.normal(kx, (B, C, H, W), jnp.float32)
        for modulation in (False, True):
            params = init_params(kp, C, outc, ks=3, modulation=modulation)
            fwd = jax.jit(functools.partial(deform_conv2d_forward, kernel_size=3, padding=1,
                                            stride=1, modulation=modulation,
                                            tile_hw_override=tile_override))
            out = jax.block_until_ready(fwd(x, params))
            ref = jax.block_until_ready(ref_forward(x, params, kernel_size=3, padding=1,
                                                    stride=1, modulation=modulation))
            assert out.shape == (B, outc, H, W)
            np.testing.assert_allclose(np.asarray(out), np.asarray(ref), rtol=1e-4, atol=1e-4)

    print("KERNEL_OK")
</pallas_src>

<mosaic_0001>
module attributes {stable_mosaic.version = 11 : i64} {
  func.func @_prepass_matmul_kernel(%arg0: i32, %arg1: memref<36x512xf32, #tpu.memory_space<vmem>>, %arg2: memref<18x36xf32, #tpu.memory_space<vmem>>, %arg3: memref<18x1xf32, #tpu.memory_space<vmem>>, %arg4: memref<18x512xf32, #tpu.memory_space<vmem>>) attributes {dimension_semantics = [#tpu.dimension_semantics<parallel>], iteration_bounds = array<i64: 1>, scalar_prefetch = 0 : i64, scratch_operands = 0 : i64, tpu.core_type = #tpu.core_type<tc>, window_params = [{transform_indices = @transform_0, window_bounds = array<i64: 36, 512>}, {pipeline_mode = #tpu.pipeline_mode<synchronous>, transform_indices = @transform_1, window_bounds = array<i64: 18, 36>}, {pipeline_mode = #tpu.pipeline_mode<synchronous>, transform_indices = @transform_2, window_bounds = array<i64: 18, 1>}, {transform_indices = @transform_3, window_bounds = array<i64: 18, 512>}]} {
    %c0 = arith.constant 0 : index
    %c0_0 = arith.constant 0 : index
    %0 = vector.load %arg2[%c0, %c0_0] : memref<18x36xf32, #tpu.memory_space<vmem>>, vector<18x36xf32>
    %c0_1 = arith.constant 0 : index
    %c0_2 = arith.constant 0 : index
    %1 = vector.load %arg1[%c0_1, %c0_2] : memref<36x512xf32, #tpu.memory_space<vmem>>, vector<36x512xf32>
    %cst = arith.constant dense<0.000000e+00> : vector<18x512xf32>
    %2 = tpu.matmul %0, %1, %cst {dimension_numbers = #tpu.dot_dimension_numbers<[1], [0], [0], [1], [0, 0, 1, 1], [], []>} : vector<18x36xf32>, vector<36x512xf32>, vector<18x512xf32> -> vector<18x512xf32>
    %c0_3 = arith.constant 0 : index
    %c0_4 = arith.constant 0 : index
    %3 = vector.load %arg3[%c0_3, %c0_4] : memref<18x1xf32, #tpu.memory_space<vmem>>, vector<18x1xf32>
    %4 = vector.broadcast %3 : vector<18x1xf32> to vector<18x512xf32>
    %5 = arith.addf %2, %4 : vector<18x512xf32>
    %c0_5 = arith.constant 0 : index
    %c0_6 = arith.constant 0 : index
    %6 = vector.load %arg4[%c0_5, %c0_6] : memref<18x512xf32, #tpu.memory_space<vmem>>, vector<18x512xf32>
    tpu.vector_store %arg4[%c0_5, %c0_6], %5 {strides = array<i32>} : memref<18x512xf32, #tpu.memory_space<vmem>>, vector<18x512xf32>,
    return
  }
  func.func @transform_0(%arg0: i32) -> (i32, i32) {
    %c0_i32 = arith.constant 0 : i32
    %c0_i32_0 = arith.constant 0 : i32
    return %c0_i32, %arg0 : i32, i32
  }
  func.func @transform_1(%arg0: i32) -> (i32, i32) {
    %c0_i32 = arith.constant 0 : i32
    %c0_i32_0 = arith.constant 0 : i32
    %c0_i32_1 = arith.constant 0 : i32
    return %c0_i32, %c0_i32_0 : i32, i32
  }
  func.func @transform_2(%arg0: i32) -> (i32, i32) {
    %c0_i32 = arith.constant 0 : i32
    %c0_i32_0 = arith.constant 0 : i32
    %c0_i32_1 = arith.constant 0 : i32
    return %c0_i32, %c0_i32_0 : i32, i32
  }
  func.func @transform_3(%arg0: i32) -> (i32, i32) {
    %c0_i32 = arith.constant 0 : i32
    %c0_i32_0 = arith.constant 0 : i32
    return %c0_i32, %arg0 : i32, i32
  }
}

module attributes {stable_mosaic.version = 11 : i64} {
  func.func @_deform_sample_conv_kernel(%arg0: i32, %arg1: i32, %arg2: memref<1x96x18xf32, #tpu.memory_space<vmem>>, %arg3: memref<1x1x2x2304xf32, #tpu.memory_space<vmem>>, %arg4: memref<9x8x4xf32, #tpu.memory_space<vmem>>, %arg5: memref<1x8x256xf32, #tpu.memory_space<vmem>>) attributes {dimension_semantics = [#tpu.dimension_semantics<parallel>, #tpu.dimension_semantics<parallel>], iteration_bounds = array<i64: 2, 1>, scalar_prefetch = 0 : i64, scratch_operands = 0 : i64, tpu.core_type = #tpu.core_type<tc>, window_params = [{transform_indices = @transform_0, window_bounds = array<i64: 1, 96, 18>}, {transform_indices = @transform_1, window_bounds = array<i64: 1, 1, 2, 2304>}, {pipeline_mode = #tpu.pipeline_mode<synchronous>, transform_indices = @transform_2, window_bounds = array<i64: 9, 8, 4>}, {transform_indices = @transform_3, window_bounds = array<i64: 1, 8, 256>}]} {
    %c0 = arith.constant 0 : index
    %c0_0 = arith.constant 0 : index
    %c0_1 = arith.constant 0 : index
    %0 = vector.load %arg2[%c0, %c0_0, %c0_1] : memref<1x96x18xf32, #tpu.memory_space<vmem>>, vector<1x96x18xf32>
    %1 = vector.shape_cast %0 : vector<1x96x18xf32> to vector<96x18xf32>
    %c0_2 = arith.constant 0 : index
    %c0_3 = arith.constant 0 : index
    %c0_4 = arith.constant 0 : index
    %c0_5 = arith.constant 0 : index
    %2 = vector.load %arg3[%c0_2, %c0_3, %c0_4, %c0_5] : memref<1x1x2x2304xf32, #tpu.memory_space<vmem>>, vector<1x1x1x2304xf32>
    %3 = vector.shape_cast %2 : vector<1x1x1x2304xf32> to vector<1x2304xf32>
    %c0_6 = arith.constant 0 : index
    %c0_7 = arith.constant 0 : index
    %c1 = arith.constant 1 : index
    %c0_8 = arith.constant 0 : index
    %4 = vector.load %arg3[%c0_6, %c0_7, %c1, %c0_8] : memref<1x1x2x2304xf32, #tpu.memory_space<vmem>>, vector<1x1x1x2304xf32>
    %5 = vector.shape_cast %4 : vector<1x1x1x2304xf32> to vector<1x2304xf32>
    %6 = math.floor %3 : vector<1x2304xf32>
    %7 = math.floor %5 : vector<1x2304xf32>
    %cst = arith.constant 0.000000e+00 : f32
    %cst_9 = arith.constant 1.700000e+01 : f32
    %8 = vector.broadcast %cst : f32 to vector<1x2304xf32>
    %9 = arith.maximumf %8, %6 : vector<1x2304xf32>
    %10 = vector.broadcast %cst_9 : f32 to vector<1x2304xf32>
    %11 = arith.minimumf %10, %9 : vector<1x2304xf32>
    %cst_10 = arith.constant 1.000000e+00 : f32
    %12 = vector.broadcast %cst_10 : f32 to vector<1x2304xf32>
    %13 = arith.addf %6, %12 : vector<1x2304xf32>
    %cst_11 = arith.constant 0.000000e+00 : f32
    %cst_12 = arith.constant 1.700000e+01 : f32
    %14 = vector.broadcast %cst_11 : f32 to vector<1x2304xf32>
    %15 = arith.maximumf %14, %13 : vector<1x2304xf32>
    %16 = vector.broadcast %cst_12 : f32 to vector<1x2304xf32>
    %17 = arith.minimumf %16, %15 : vector<1x2304xf32>
    %cst_13 = arith.constant 0.000000e+00 : f32
    %cst_14 = arith.constant 1.700000e+01 : f32
    %18 = vector.broadcast %cst_13 : f32 to vector<1x2304xf32>
    %19 = arith.maximumf %18, %7 : vector<1x2304xf32>
    %20 = vector.broadcast %cst_14 : f32 to vector<1x2304xf32>
    %21 = arith.minimumf %20, %19 : vector<1x2304xf32>
    %cst_15 = arith.constant 1.000000e+00 : f32
    %22 = vector.broadcast %cst_15 : f32 to vector<1x2304xf32>
    %23 = arith.addf %7, %22 : vector<1x2304xf32>
    %cst_16 = arith.constant 0.000000e+00 : f32
    %cst_17 = arith.constant 1.700000e+01 : f32
    %24 = vector.broadcast %cst_16 : f32 to vector<1x2304xf32>
    %25 = arith.maximumf %24, %23 : vector<1x2304xf32>
    %26 = vector.broadcast %cst_17 : f32 to vector<1x2304xf32>
    %27 = arith.minimumf %26, %25 : vector<1x2304xf32>
    %cst_18 = arith.constant 0.000000e+00 : f32
    %cst_19 = arith.constant 1.700000e+01 : f32
    %28 = vector.broadcast %cst_18 : f32 to vector<1x2304xf32>
    %29 = arith.maximumf %28, %3 : vector<1x2304xf32>
    %30 = vector.broadcast %cst_19 : f32 to vector<1x2304xf32>
    %31 = arith.minimumf %30, %29 : vector<1x2304xf32>
    %cst_20 = arith.constant 0.000000e+00 : f32
    %cst_21 = arith.constant 1.700000e+01 : f32
    %32 = vector.broadcast %cst_20 : f32 to vector<1x2304xf32>
    %33 = arith.maximumf %32, %5 : vector<1x2304xf32>
    %34 = vector.broadcast %cst_21 : f32 to vector<1x2304xf32>
    %35 = arith.minimumf %34, %33 : vector<1x2304xf32>
    %36 = arith.subf %11, %31 : vector<1x2304xf32>
    %cst_22 = arith.constant 1.000000e+00 : f32
    %37 = vector.broadcast %cst_22 : f32 to vector<1x2304xf32>
    %38 = arith.addf %37, %36 : vector<1x2304xf32>
    %39 = arith.subf %17, %31 : vector<1x2304xf32>
    %cst_23 = arith.constant 1.000000e+00 : f32
    %40 = vector.broadcast %cst_23 : f32 to vector<1x2304xf32>
    %41 = arith.subf %40, %39 : vector<1x2304xf32>
    %42 = arith.subf %21, %35 : vector<1x2304xf32>
    %cst_24 = arith.constant 1.000000e+00 : f32
    %43 = vector.broadcast %cst_24 : f32 to vector<1x2304xf32>
    %44 = arith.addf %43, %42 : vector<1x2304xf32>
    %45 = arith.subf %27, %35 : vector<1x2304xf32>
    %cst_25 = arith.constant 1.000000e+00 : f32
    %46 = vector.broadcast %cst_25 : f32 to vector<1x2304xf32>
    %47 = arith.subf %46, %45 : vector<1x2304xf32>
    %48 = arith.fptosi %11 : vector<1x2304xf32> to vector<1x2304xi32>
    %49 = arith.fptosi %17 : vector<1x2304xf32> to vector<1x2304xi32>
    %50 = arith.fptosi %21 : vector<1x2304xf32> to vector<1x2304xi32>
    %51 = arith.fptosi %27 : vector<1x2304xf32> to vector<1x2304xi32>
    %52 = tpu.iota {dimensions = array<i32: 0>} : vector<18x2304xi32>
    %53 = vector.broadcast %50 : vector<1x2304xi32> to vector<18x2304xi32>
    %54 = arith.cmpi eq, %52, %53 : vector<18x2304xi32>
    %cst_26 = arith.constant 0.000000e+00 : f32
    %55 = vector.shape_cast %44 : vector<1x2304xf32> to vector<1x2304xf32>
    %56 = vector.broadcast %55 : vector<1x2304xf32> to vector<18x2304xf32>
    %57 = vector.broadcast %cst_26 : f32 to vector<18x2304xf32>
    %58 = arith.select %54, %56, %57 : vector<18x2304xi1>, vector<18x2304xf32>
    %59 = vector.broadcast %51 : vector<1x2304xi32> to vector<18x2304xi32>
    %60 = arith.cmpi eq, %52, %59 : vector<18x2304xi32>
    %cst_27 = arith.constant 0.000000e+00 : f32
    %61 = vector.shape_cast %47 : vector<1x2304xf32> to vector<1x2304xf32>
    %62 = vector.broadcast %61 : vector<1x2304xf32> to vector<18x2304xf32>
    %63 = vector.broadcast %cst_27 : f32 to vector<18x2304xf32>
    %64 = arith.select %60, %62, %63 : vector<18x2304xi1>, vector<18x2304xf32>
    %65 = arith.addf %58, %64 : vector<18x2304xf32>
    %66 = tpu.iota {dimensions = array<i32: 0>} : vector<24x2304xi32>
    %67 = vector.broadcast %48 : vector<1x2304xi32> to vector<24x2304xi32>
    %68 = arith.cmpi eq, %66, %67 : vector<24x2304xi32>
    %cst_28 = arith.constant 0.000000e+00 : f32
    %69 = vector.shape_cast %38 : vector<1x2304xf32> to vector<1x2304xf32>
    %70 = vector.broadcast %69 : vector<1x2304xf32> to vector<24x2304xf32>
    %71 = vector.broadcast %cst_28 : f32 to vector<24x2304xf32>
    %72 = arith.select %68, %70, %71 : vector<24x2304xi1>, vector<24x2304xf32>
    %73 = vector.broadcast %49 : vector<1x2304xi32> to vector<24x2304xi32>
    %74 = arith.cmpi eq, %66, %73 : vector<24x2304xi32>
    %cst_29 = arith.constant 0.000000e+00 : f32
    %75 = vector.shape_cast %41 : vector<1x2304xf32> to vector<1x2304xf32>
    %76 = vector.broadcast %75 : vector<1x2304xf32> to vector<24x2304xf32>
    %77 = vector.broadcast %cst_29 : f32 to vector<24x2304xf32>
    %78 = arith.select %74, %76, %77 : vector<24x2304xi1>, vector<24x2304xf32>
    %79 = arith.addf %72, %78 : vector<24x2304xf32>
    %cst_30 = arith.constant dense<0.000000e+00> : vector<96x2304xf32>
    %80 = tpu.matmul %1, %65, %cst_30 {dimension_numbers = #tpu.dot_dimension_numbers<[1], [0], [0], [1], [0, 0, 1, 1], [], []>} : vector<96x18xf32>, vector<18x2304xf32>, vector<96x2304xf32> -> vector<96x2304xf32>
    %81 = vector.shape_cast %80 : vector<96x2304xf32> to vector<4x24x2304xf32>
    %82 = vector.shape_cast %79 : vector<24x2304xf32> to vector<1x24x2304xf32>
    %83 = vector.broadcast %82 : vector<1x24x2304xf32> to vector<4x24x2304xf32>
    %84 = arith.mulf %81, %83 : vector<4x24x2304xf32>
    %cst_31 = arith.constant dense<0.000000e+00> : vector<4x2304xf32>
    %85 = vector.multi_reduction <add>, %84, %cst_31 [1] : vector<4x24x2304xf32> to vector<4x2304xf32>
    %c0_32 = arith.constant 0 : index
    %c0_33 = arith.constant 0 : index
    %c0_34 = arith.constant 0 : index
    %86 = vector.load %arg4[%c0_32, %c0_33, %c0_34] : memref<9x8x4xf32, #tpu.memory_space<vmem>>, vector<1x8x4xf32>
    %87 = vector.shape_cast %86 : vector<1x8x4xf32> to vector<8x4xf32>
    %88 = vector.extract_strided_slice %85 {offsets = [0, 0], sizes = [4, 256], strides = [1, 1]} : vector<4x2304xf32> to vector<4x256xf32>
    %cst_35 = arith.constant dense<0.000000e+00> : vector<8x256xf32>
    %89 = tpu.matmul %87, %88, %cst_35 {dimension_numbers = #tpu.dot_dimension_numbers<[1], [0], [0], [1], [0, 0, 1, 1], [], []>} : vector<8x4xf32>, vector<4x256xf32>, vector<8x256xf32> -> vector<8x256xf32>
    %c1_36 = arith.constant 1 : index
    %c0_37 = arith.constant 0 : index
    %c0_38 = arith.constant 0 : index
    %90 = vector.load %arg4[%c1_36, %c0_37, %c0_38] : memref<9x8x4xf32, #tpu.memory_space<vmem>>, vector<1x8x4xf32>
    %91 = vector.shape_cast %90 : vector<1x8x4xf32> to vector<8x4xf32>
    %92 = vector.extract_strided_slice %85 {offsets = [0, 256], sizes = [4, 256], strides = [1, 1]} : vector<4x2304xf32> to vector<4x256xf32>
    %cst_39 = arith.constant dense<0.000000e+00> : vector<8x256xf32>
    %93 = tpu.matmul %91, %92, %cst_39 {dimension_numbers = #tpu.dot_dimension_numbers<[1], [0], [0], [1], [0, 0, 1, 1], [], []>} : vector<8x4xf32>, vector<4x256xf32>, vector<8x256xf32> -> vector<8x256xf32>
    %94 = arith.addf %89, %93 : vector<8x256xf32>
    %c2 = arith.constant 2 : index
    %c0_40 = arith.constant 0 : index
    %c0_41 = arith.constant 0 : index
    %95 = vector.load %arg4[%c2, %c0_40, %c0_41] : memref<9x8x4xf32, #tpu.memory_space<vmem>>, vector<1x8x4xf32>
    %96 = vector.shape_cast %95 : vector<1x8x4xf32> to vector<8x4xf32>
    %97 = vector.extract_strided_slice %85 {offsets = [0, 512], sizes = [4, 256], strides = [1, 1]} : vector<4x2304xf32> to vector<4x256xf32>
    %cst_42 = arith.constant dense<0.000000e+00> : vector<8x256xf32>
    %98 = tpu.matmul %96, %97, %cst_42 {dimension_numbers = #tpu.dot_dimension_numbers<[1], [0], [0], [1], [0, 0, 1, 1], [], []>} : vector<8x4xf32>, vector<4x256xf32>, vector<8x256xf32> -> vector<8x256xf32>
    %99 = arith.addf %94, %98 : vector<8x256xf32>
    %c3 = arith.constant 3 : index
    %c0_43 = arith.constant 0 : index
    %c0_44 = arith.constant 0 : index
    %100 = vector.load %arg4[%c3, %c0_43, %c0_44] : memref<9x8x4xf32, #tpu.memory_space<vmem>>, vector<1x8x4xf32>
    %101 = vector.shape_cast %100 : vector<1x8x4xf32> to vector<8x4xf32>
    %102 = vector.extract_strided_slice %85 {offsets = [0, 768], sizes = [4, 256], strides = [1, 1]} : vector<4x2304xf32> to vector<4x256xf32>
    %cst_45 = arith.constant dense<0.000000e+00> : vector<8x256xf32>
    %103 = tpu.matmul %101, %102, %cst_45 {dimension_numbers = #tpu.dot_dimension_numbers<[1], [0], [0], [1], [0, 0, 1, 1], [], []>} : vector<8x4xf32>, vector<4x256xf32>, vector<8x256xf32> -> vector<8x256xf32>
    %104 = arith.addf %99, %103 : vector<8x256xf32>
    %c4 = arith.constant 4 : index
    %c0_46 = arith.constant 0 : index
    %c0_47 = arith.constant 0 : index
    %105 = vector.load %arg4[%c4, %c0_46, %c0_47] : memref<9x8x4xf32, #tpu.memory_space<vmem>>, vector<1x8x4xf32>
    %106 = vector.shape_cast %105 : vector<1x8x4xf32> to vector<8x4xf32>
    %107 = vector.extract_strided_slice %85 {offsets = [0, 1024], sizes = [4, 256], strides = [1, 1]} : vector<4x2304xf32> to vector<4x256xf32>
    %cst_48 = arith.constant dense<0.000000e+00> : vector<8x256xf32>
    %108 = tpu.matmul %106, %107, %cst_48 {dimension_numbers = #tpu.dot_dimension_numbers<[1], [0], [0], [1], [0, 0, 1, 1], [], []>} : vector<8x4xf32>, vector<4x256xf32>, vector<8x256xf32> -> vector<8x256xf32>
    %109 = arith.addf %104, %108 : vector<8x256xf32>
    %c5 = arith.constant 5 : index
    %c0_49 = arith.constant 0 : index
    %c0_50 = arith.constant 0 : index
    %110 = vector.load %arg4[%c5, %c0_49, %c0_50] : memref<9x8x4xf32, #tpu.memory_space<vmem>>, vector<1x8x4xf32>
    %111 = vector.shape_cast %110 : vector<1x8x4xf32> to vector<8x4xf32>
    %112 = vector.extract_strided_slice %85 {offsets = [0, 1280], sizes = [4, 256], strides = [1, 1]} : vector<4x2304xf32> to vector<4x256xf32>
    %cst_51 = arith.constant dense<0.000000e+00> : vector<8x256xf32>
    %113 = tpu.matmul %111, %112, %cst_51 {dimension_numbers = #tpu.dot_dimension_numbers<[1], [0], [0], [1], [0, 0, 1, 1], [], []>} : vector<8x4xf32>, vector<4x256xf32>, vector<8x256xf32> -> vector<8x256xf32>
    %114 = arith.addf %109, %113 : vector<8x256xf32>
    %c6 = arith.constant 6 : index
    %c0_52 = arith.constant 0 : index
    %c0_53 = arith.constant 0 : index
    %115 = vector.load %arg4[%c6, %c0_52, %c0_53] : memref<9x8x4xf32, #tpu.memory_space<vmem>>, vector<1x8x4xf32>
    %116 = vector.shape_cast %115 : vector<1x8x4xf32> to vector<8x4xf32>
    %117 = vector.extract_strided_slice %85 {offsets = [0, 1536], sizes = [4, 256], strides = [1, 1]} : vector<4x2304xf32> to vector<4x256xf32>
    %cst_54 = arith.constant dense<0.000000e+00> : vector<8x256xf32>
    %118 = tpu.matmul %116, %117, %cst_54 {dimension_numbers = #tpu.dot_dimension_numbers<[1], [0], [0], [1], [0, 0, 1, 1], [], []>} : vector<8x4xf32>, vector<4x256xf32>, vector<8x256xf32> -> vector<8x256xf32>
    %119 = arith.addf %114, %118 : vector<8x256xf32>
    %c7 = arith.constant 7 : index
    %c0_55 = arith.constant 0 : index
    %c0_56 = arith.constant 0 : index
    %120 = vector.load %arg4[%c7, %c0_55, %c0_56] : memref<9x8x4xf32, #tpu.memory_space<vmem>>, vector<1x8x4xf32>
    %121 = vector.shape_cast %120 : vector<1x8x4xf32> to vector<8x4xf32>
    %122 = vector.extract_strided_slice %85 {offsets = [0, 1792], sizes = [4, 256], strides = [1, 1]} : vector<4x2304xf32> to vector<4x256xf32>
    %cst_57 = arith.constant dense<0.000000e+00> : vector<8x256xf32>
    %123 = tpu.matmul %121, %122, %cst_57 {dimension_numbers = #tpu.dot_dimension_numbers<[1], [0], [0], [1], [0, 0, 1, 1], [], []>} : vector<8x4xf32>, vector<4x256xf32>, vector<8x256xf32> -> vector<8x256xf32>
    %124 = arith.addf %119, %123 : vector<8x256xf32>
    %c8 = arith.constant 8 : index
    %c0_58 = arith.constant 0 : index
    %c0_59 = arith.constant 0 : index
    %125 = vector.load %arg4[%c8, %c0_58, %c0_59] : memref<9x8x4xf32, #tpu.memory_space<vmem>>, vector<1x8x4xf32>
    %126 = vector.shape_cast %125 : vector<1x8x4xf32> to vector<8x4xf32>
    %127 = vector.extract_strided_slice %85 {offsets = [0, 2048], sizes = [4, 256], strides = [1, 1]} : vector<4x2304xf32> to vector<4x256xf32>
    %cst_60 = arith.constant dense<0.000000e+00> : vector<8x256xf32>
    %128 = tpu.matmul %126, %127, %cst_60 {dimension_numbers = #tpu.dot_dimension_numbers<[1], [0], [0], [1], [0, 0, 1, 1], [], []>} : vector<8x4xf32>, vector<4x256xf32>, vector<8x256xf32> -> vector<8x256xf32>
    %129 = arith.addf %124, %128 : vector<8x256xf32>
    %c0_61 = arith.constant 0 : index
    %c0_62 = arith.constant 0 : index
    %c0_63 = arith.constant 0 : index
    %130 = vector.load %arg5[%c0_61, %c0_62, %c0_63] : memref<1x8x256xf32, #tpu.memory_space<vmem>>, vector<1x8x256xf32>
    %131 = vector.shape_cast %130 : vector<1x8x256xf32> to vector<8x256xf32>
    %132 = vector.shape_cast %129 : vector<8x256xf32> to vector<1x8x256xf32>
    tpu.vector_store %arg5[%c0_61, %c0_62, %c0_63], %132 {strides = array<i32>} : memref<1x8x256xf32, #tpu.memory_space<vmem>>, vector<1x8x256xf32>,
    return
  }
  func.func @transform_0(%arg0: i32, %arg1: i32) -> (i32, i32, i32) {
    %c0_i32 = arith.constant 0 : i32
    %c0_i32_0 = arith.constant 0 : i32
    %c0_i32_1 = arith.constant 0 : i32
    return %arg0, %c0_i32, %c0_i32_0 : i32, i32, i32
  }
  func.func @transform_1(%arg0: i32, %arg1: i32) -> (i32, i32, i32, i32) {
    %c0_i32 = arith.constant 0 : i32
    %c0_i32_0 = arith.constant 0 : i32
    %c0_i32_1 = arith.constant 0 : i32
    return %arg0, %arg1, %c0_i32, %c0_i32_0 : i32, i32, i32, i32
  }
  func.func @transform_2(%arg0: i32, %arg1: i32) -> (i32, i32, i32) {
    %c0_i32 = arith.constant 0 : i32
    %c0_i32_0 = arith.constant 0 : i32
    %c0_i32_1 = arith.constant 0 : i32
    %c0_i32_2 = arith.constant 0 : i32
    return %c0_i32, %c0_i32_0, %c0_i32_1 : i32, i32, i32
  }
  func.func @transform_3(%arg0: i32, %arg1: i32) -> (i32, i32, i32) {
    %c0_i32 = arith.constant 0 : i32
    %c0_i32_0 = arith.constant 0 : i32
    return %arg0, %c0_i32, %arg1 : i32, i32, i32
  }
}

</mosaic_0001>

<llo_original>
// kernel: deform_conv2d_forward.2
$region0: #{deform_conv2d_forward.2}
  #allocation0 [shape = 'u32[]', space=smem, size = 0x4, offset = 0x4, fixed_abs, tag = 'smem constant byte address 0x4 - core index']
  #allocation1 [shape = 'u32[144,128]{1,0:T(1,128)}', space=vmem, size = 0x12000, scoped, tag = 'internal scratch']
  %s0 = inlined_call_operand.vmem [shape: f32[36,512], index: 0, kind: input, shape index: {}]
  %s1 = inlined_call_operand.vmem [shape: f32[18,36], index: 1, kind: input, shape index: {}]
  %s2 = inlined_call_operand.vmem [shape: f32[18,1], index: 2, kind: input, shape index: {}]
  %s3 = inlined_call_operand.vmem [shape: f32[18,512], index: 3, kind: output, shape index: {}]
  %s4 = sld [smem:[#allocation0]]
  $region22: #{deform_conv2d_forward.2} parent=0
    _
  %s6 = ssub.s32 1, %s4
  %s7 = scalar_select 0, %s6, %s4
  // Predicated region
  $region2: #{deform_conv2d_forward.2} parent=0 // pred_check
    _
  $region3: #{deform_conv2d_forward.2} parent=0 // pred_check_branch
    %9 = sbr.rel (0) target = $region5
  $region4: #{deform_conv2d_forward.2} parent=0 // pred_region
    _
  $region5: #{deform_conv2d_forward.2} parent=0 // pred_fallthru
    _
  // Predicated region
  $region6: #{deform_conv2d_forward.2} parent=0 // pred_check
    _
  $region7: #{deform_conv2d_forward.2} parent=0 // pred_check_branch
    %11 = sbr.rel (0) target = $region9
  $region8: #{deform_conv2d_forward.2} parent=0 // pred_region
    _
  $region9: #{deform_conv2d_forward.2} parent=0 // pred_fallthru
    _
  // Predicated region
  $region10: #{deform_conv2d_forward.2} parent=0 // pred_check
    _
  $region11: #{deform_conv2d_forward.2} parent=0 // pred_check_branch
    %13 = sbr.rel (0) target = $region13
  $region12: #{deform_conv2d_forward.2} parent=0 // pred_region
    _
  $region13: #{deform_conv2d_forward.2} parent=0 // pred_fallthru
    _
  %v14 = vld [vmem:[%s1] sm:$0xff]
  %v15 = vld [vmem:[%s1 + $0x8] sm:$0xff]
  %v16 = vld [vmem:[%s1 + $0x10] sm:$0x3]
  %v17 = vld [vmem:[%s0] sm:$0xff]
  %v18 = vld [vmem:[%s0 + $0x8] sm:$0xff]
  %v19 = vld [vmem:[%s0 + $0x10] sm:$0xff]
  %v20 = vld [vmem:[%s0 + $0x18] sm:$0xff]
  %v21 = vld [vmem:[%s0 + $0x20] sm:$0xff]
  %v22 = vld [vmem:[%s0 + $0x28] sm:$0xff]
  %v23 = vld [vmem:[%s0 + $0x30] sm:$0xff]
  %v24 = vld [vmem:[%s0 + $0x38] sm:$0xff]
  %v25 = vld [vmem:[%s0 + $0x40] sm:$0xff]
  %v26 = vld [vmem:[%s0 + $0x48] sm:$0xff]
  %v27 = vld [vmem:[%s0 + $0x50] sm:$0xff]
  %v28 = vld [vmem:[%s0 + $0x58] sm:$0xff]
  %v29 = vld [vmem:[%s0 + $0x60] sm:$0xff]
  %v30 = vld [vmem:[%s0 + $0x68] sm:$0xff]
  %v31 = vld [vmem:[%s0 + $0x70] sm:$0xff]
  %v32 = vld [vmem:[%s0 + $0x78] sm:$0xff]
  %v33 = vld [vmem:[%s0 + $0x80] sm:$0xf]
  %v34 = vld [vmem:[%s0 + $0x88] sm:$0xf]
  %v35 = vld [vmem:[%s0 + $0x90] sm:$0xf]
  %v36 = vld [vmem:[%s0 + $0x98] sm:$0xf]
  %v37 = vld [vmem:[%s2] sm:$0xff]
  %v38 = vld [vmem:[%s2 + $0x8] sm:$0xff]
  %v39 = vld [vmem:[%s2 + $0x10] sm:$0x3]
  %41 = vset.pattern.permute.xlu0 0
  %42 = vperm.xlu0 %41, %v37
  %v43 = vpop.permute.xlu0 %42
  %46 = vset.pattern.permute.xlu0 0
  %47 = vperm.xlu0 %46, %v38
  %v48 = vpop.permute.xlu0 %47
  %51 = vset.pattern.permute.xlu0 0
  %52 = vperm.xlu0 %51, %v39
  %v53 = vpop.permute.xlu0 %52
  %vm55 = vcmask 293888
  %v57 = vsel %vm55, %v14, 0
  %v60 = vsel %vm55, %v15, 0
  %v63 = vsel %vm55, %v16, 0
  %vm65 = vcmask 1043456
  %v67 = vsel %vm65, %v33, 0
  %v70 = vsel %vm65, %v34, 0
  %v73 = vsel %vm65, %v35, 0
  %v76 = vsel %vm65, %v36, 0
  %78 = vmatprep.subr.mxu0 0.0
  %79 = vmatpush1.msra.mxu0 0.0
  %80 = vmatprep.subr.mxu0 0.0
  %81 = vmatpush1.msra.mxu0 0.0
  %82 = vmatprep.subr.mxu0 0.0
  %83 = vmatpush1.msra.mxu0 0.0
  %84 = vmatprep.subr.mxu0 0.0
  %85 = vmatpush1.msra.mxu0 0.0
  %86 = vmatprep.subr.mxu0 0.0
  %87 = vmatpush1.msra.mxu0 0.0
  %88 = vmatprep.subr.mxu0 0.0
  %89 = vmatpush1.msra.mxu0 0.0
  %90 = vmatprep.subr.mxu0 0.0
  %91 = vmatpush1.msra.mxu0 0.0
  %92 = vmatprep.subr.mxu0 0.0
  %93 = vmatpush1.msra.mxu0 0.0
  %94 = vmatprep.subr.mxu0 0.0
  %95 = vmatpush1.msra.mxu0 0.0
  %96 = vmatprep.subr.mxu0 0.0
  %97 = vmatpush1.msra.mxu0 0.0
  %98 = vmatprep.subr.mxu0 0.0
  %99 = vmatpush1.msra.mxu0 0.0
  %100 = vmatprep.subr.mxu0 %v70
  %101 = vmatpush1.msra.mxu0 %v67
  %102 = vmatprep.subr.mxu0 %v30
  %103 = vmatpush1.msra.mxu0 %v29
  %104 = vmatprep.subr.mxu0 %v26
  %105 = vmatpush1.msra.mxu0 %v25
  %106 = vmatprep.subr.mxu0 %v22
  %107 = vmatpush1.msra.mxu0 %v21
  %108 = vmatprep.subr.mxu0 %v18
  %109 = vmatpush1.msra.mxu0 %v17
  %110 = vmatprep.subr.mxu0 0.0
  %111 = vmatpush2.msra.mxu0 0.0
  %112 = vmatprep.subr.mxu0 0.0
  %113 = vmatpush2.msra.mxu0 0.0
  %114 = vmatprep.subr.mxu0 0.0
  %115 = vmatpush2.msra.mxu0 0.0
  %116 = vmatprep.subr.mxu0 0.0
  %117 = vmatpush2.msra.mxu0 0.0
  %118 = vmatprep.subr.mxu0 0.0
  %119 = vmatpush2.msra.mxu0 0.0
  %120 = vmatprep.subr.mxu0 0.0
  %121 = vmatpush2.msra.mxu0 0.0
  %122 = vmatprep.subr.mxu0 0.0
  %123 = vmatpush2.msra.mxu0 0.0
  %124 = vmatprep.subr.mxu0 0.0
  %125 = vmatpush2.msra.mxu0 0.0
  %126 = vmatprep.subr.mxu0 0.0
  %127 = vmatpush2.msra.mxu0 0.0
  %128 = vmatprep.subr.mxu0 0.0
  %129 = vmatpush2.msra.mxu0 0.0
  %130 = vmatprep.subr.mxu0 0.0
  %131 = vmatpush2.msra.mxu0 0.0
  %132 = vmatprep.subr.mxu0 0.0
  %133 = vmatpush2.msra.mxu0 0.0
  %134 = vmatprep.subr.mxu0 0.0
  %135 = vmatpush2.msra.mxu0 0.0
  %136 = vmatprep.subr.mxu0 0.0
  %137 = vmatpush2.msra.mxu0 0.0
  %138 = vmatprep.subr.mxu0 0.0
  %139 = vmatpush2.msra.mxu0 0.0
  %140 = vmatprep.subr.mxu0 0.0
  %141 = vmatpush2.msra.mxu0 0.0
  %142 = vmatprep.mubr.f32.mxu0 0.0
  %143 = vmatmul.mubr.f32.gmra.mxu0 %v57
  %v144 = vpop.f32.mrf.mxu0
  %v145 = vadd.f32 %v43, %v144
  %v146 = vpop.f32.mrf.mxu0
  %v147 = vadd.f32 %v43, %v146
  %148 = vmatprep.mubr.f32.mxu0 0.0
  %149 = vmatmul.mubr.f32.gmra.mxu0 %v60
  %v150 = vpop.f32.mrf.mxu0
  %v151 = vadd.f32 %v48, %v150
  %v152 = vpop.f32.mrf.mxu0
  %v153 = vadd.f32 %v48, %v152
  %154 = vmatprep.mubr.f32.mxu0 0.0
  %155 = vmatmul.mubr.f32.gmra.mxu0 %v63
  %v156 = vpop.f32.mrf.mxu0
  %v157 = vadd.f32 %v53, %v156
  %v158 = vpop.f32.mrf.mxu0
  %v159 = vadd.f32 %v53, %v158
  %160 = vdwg.mxu0
  %161 = vmatprep.subr.mxu0 0.0
  %162 = vmatpush1.msra.mxu0 0.0
  %163 = vmatprep.subr.mxu0 0.0
  %164 = vmatpush1.msra.mxu0 0.0
  %165 = vmatprep.subr.mxu0 0.0
  %166 = vmatpush1.msra.mxu0 0.0
  %167 = vmatprep.subr.mxu0 0.0
  %168 = vmatpush1.msra.mxu0 0.0
  %169 = vmatprep.subr.mxu0 0.0
  %170 = vmatpush1.msra.mxu0 0.0
  %171 = vmatprep.subr.mxu0 0.0
  %172 = vmatpush1.msra.mxu0 0.0
  %173 = vmatprep.subr.mxu0 0.0
  %174 = vmatpush1.msra.mxu0 0.0
  %175 = vmatprep.subr.mxu0 0.0
  %176 = vmatpush1.msra.mxu0 0.0
  %177 = vmatprep.subr.mxu0 0.0
  %178 = vmatpush1.msra.mxu0 0.0
  %179 = vmatprep.subr.mxu0 0.0
  %180 = vmatpush1.msra.mxu0 0.0
  %181 = vmatprep.subr.mxu0 0.0
  %182 = vmatpush1.msra.mxu0 0.0
  %183 = vmatprep.subr.mxu0 %v76
  %184 = vmatpush1.msra.mxu0 %v73
  %185 = vmatprep.subr.mxu0 %v32
  %186 = vmatpush1.msra.mxu0 %v31
  %187 = vmatprep.subr.mxu0 %v28
  %188 = vmatpush1.msra.mxu0 %v27
  %189 = vmatprep.subr.mxu0 %v24
  %190 = vmatpush1.msra.mxu0 %v23
  %191 = vmatprep.subr.mxu0 %v20
  %192 = vmatpush1.msra.mxu0 %v19
  %193 = vmatprep.subr.mxu0 0.0
  %194 = vmatpush2.msra.mxu0 0.0
  %195 = vmatprep.subr.mxu0 0.0
  %196 = vmatpush2.msra.mxu0 0.0
  %197 = vmatprep.subr.mxu0 0.0
  %198 = vmatpush2.msra.mxu0 0.0
  %199 = vmatprep.subr.mxu0 0.0
  %200 = vmatpush2.msra.mxu0 0.0
  %201 = vmatprep.subr.mxu0 0.0
  %202 = vmatpush2.msra.mxu0 0.0
  %203 = vmatprep.subr.mxu0 0.0
  %204 = vmatpush2.msra.mxu0 0.0
  %205 = vmatprep.subr.mxu0 0.0
  %206 = vmatpush2.msra.mxu0 0.0
  %207 = vmatprep.subr.mxu0 0.0
  %208 = vmatpush2.msra.mxu0 0.0
  %209 = vmatprep.subr.mxu0 0.0
  %210 = vmatpush2.msra.mxu0 0.0
  %211 = vmatprep.subr.mxu0 0.0
  %212 = vmatpush2.msra.mxu0 0.0
  %213 = vmatprep.subr.mxu0 0.0
  %214 = vmatpush2.msra.mxu0 0.0
  %215 = vmatprep.subr.mxu0 0.0
  %216 = vmatpush2.msra.mxu0 0.0
  %217 = vmatprep.subr.mxu0 0.0
  %218 = vmatpush2.msra.mxu0 0.0
  %219 = vmatprep.subr.mxu0 0.0
  %220 = vmatpush2.msra.mxu0 0.0
  %221 = vmatprep.subr.mxu0 0.0
  %222 = vmatpush2.msra.mxu0 0.0
  %223 = vmatprep.subr.mxu0 0.0
  %224 = vmatpush2.msra.mxu0 0.0
  %225 = vmatprep.mubr.f32.mxu0 0.0
  %226 = vmatmul.mubr.f32.gmra.mxu0 %v57
  %v227 = vpop.f32.mrf.mxu0
  %v228 = vadd.f32 %v43, %v227
  %v229 = vpop.f32.mrf.mxu0
  %v230 = vadd.f32 %v43, %v229
  %231 = vmatprep.mubr.f32.mxu0 0.0
  %232 = vmatmul.mubr.f32.gmra.mxu0 %v60
  %v233 = vpop.f32.mrf.mxu0
  %v234 = vadd.f32 %v48, %v233
  %v235 = vpop.f32.mrf.mxu0
  %v236 = vadd.f32 %v48, %v235
  %237 = vmatprep.mubr.f32.mxu0 0.0
  %238 = vmatmul.mubr.f32.gmra.mxu0 %v63
  %v239 = vpop.f32.mrf.mxu0
  %v240 = vadd.f32 %v53, %v239
  %v241 = vpop.f32.mrf.mxu0
  %v242 = vadd.f32 %v53, %v241
  %243 = vdwg.mxu0
  %244 = vst [vmem:[%s3] sm:$0xff] %v145
  %245 = vst [vmem:[%s3 + $0x8] sm:$0xff] %v147
  %246 = vst [vmem:[%s3 + $0x10] sm:$0xff] %v228
  %247 = vst [vmem:[%s3 + $0x18] sm:$0xff] %v230
  %248 = vst [vmem:[%s3 + $0x20] sm:$0xff] %v151
  %249 = vst [vmem:[%s3 + $0x28] sm:$0xff] %v153
  %250 = vst [vmem:[%s3 + $0x30] sm:$0xff] %v234
  %251 = vst [vmem:[%s3 + $0x38] sm:$0xff] %v236
  %252 = vst [vmem:[%s3 + $0x40] sm:$0x3] %v157
  %253 = vst [vmem:[%s3 + $0x48] sm:$0x3] %v159
  %254 = vst [vmem:[%s3 + $0x50] sm:$0x3] %v240
  %255 = vst [vmem:[%s3 + $0x58] sm:$0x3] %v242
  // Predicated region
  $region14: #{deform_conv2d_forward.2} parent=0 // pred_check
    _
  $region15: #{deform_conv2d_forward.2} parent=0 // pred_check_branch
    %257 = sbr.rel (0) target = $region17
  $region16: #{deform_conv2d_forward.2} parent=0 // pred_region
    _
  $region17: #{deform_conv2d_forward.2} parent=0 // pred_fallthru
    _
  // Predicated region
  $region18: #{deform_conv2d_forward.2} parent=0 // pred_check
    _
  $region19: #{deform_conv2d_forward.2} parent=0 // pred_check_branch
    %259 = sbr.rel (0) target = $region21
  $region20: #{deform_conv2d_forward.2} parent=0 // pred_region
    _
  $region21: #{deform_conv2d_forward.2} parent=0 // pred_fallthru
    _

// kernel: deform_conv2d_forward.3
$region0: #{deform_conv2d_forward.3}
  #allocation0 [shape = 'u32[]', space=smem, size = 0x4, offset = 0x4, fixed_abs, tag = 'smem constant byte address 0x4 - core index']
  #allocation1 [shape = 'u32[144,128]{1,0:T(1,128)}', space=vmem, size = 0x12000, scoped, tag = 'internal scratch']
  %s0 = inlined_call_operand.vmem [shape: f32[2,96,18], index: 0, kind: input, shape index: {}]
  %s1 = inlined_call_operand.vmem [shape: f32[2,1,2,2304], index: 1, kind: input, shape index: {}]
  %s2 = inlined_call_operand.vmem [shape: f32[9,8,4], index: 2, kind: input, shape index: {}]
  %s3 = inlined_call_operand.vmem [shape: f32[2,8,256], index: 3, kind: output, shape index: {}]
  %s4 = sld [smem:[#allocation0]]
  $region45: #{deform_conv2d_forward.3} parent=0
    _
  %s6 = ssub.s32 1, %s4
  %s7 = scalar_select 0, %s6, %s4
  loop: start=0, step=1, limit=4
  $region2: #{deform_conv2d_forward.3} parent=0 // loop_pre_header
    _
  $region3: #{deform_conv2d_forward.3} parent=0 // loop_header
    %s9 = sphi 0, %s13
    %p10 = scmp.ge.s32.totalorder %s9, 4
    %s16 = sphi 0, %s28
    %s17 = sphi 0, %s24
    %s18 = sphi 0, %s16
    %s19 = sphi 0, %s17
    %s20 = sphi 0, %s18
    %s21 = sphi 0, %s19
    %s31 = sphi 0, %s33
    %s34 = sphi 0, %s31
    %s35 = sphi 0, %s34
    %s51 = sphi 0, %s35
    %s59 = sphi 0, %s61
    %s62 = sphi 0, %s59
    %s63 = sphi 0, %s62
    %s79 = sphi 0, %s63
    %s83 = sphi 0, %s83
    %s85 = sphi 0, %s83
    %s86 = sphi 0, %s85
    %s100 = sphi 0, %s86
    %s108 = sphi 0, %s110
    %s111 = sphi 0, %s108
    %s112 = sphi 0, %s111
    %s128 = sphi 0, %s112
  $region4: #{deform_conv2d_forward.3} parent=0 // loop_header_branch
    %12 = sbr.rel (%p10) target = $region8
  $region5: #{deform_conv2d_forward.3} parent=0 // loop_body
    %s14 = ssub.s32 %s9, 1
    %s15 = ssub.s32 %s9, 2
    %s22 = sadd.s32 1, %s17
    %p23 = scmp.ge.s32.totalorder %s22, 1
    %s24 = scalar_select %p23, 0, %s22
    %s25 = sadd.s32 1, %s16
    %s26 = scalar_select %p23, %s25, %s16
    %p27 = scmp.ge.s32.totalorder %s26, 2
    %s28 = scalar_select %p27, 0, %s26
    %s29 = ssub.s32 %s16, %s28
    %p30 = scmp.eq.s32.totalorder %s29, 0
    %s32 = sadd.s32 %s31, 1
    %s33 = scalar_select %p30, %s31, %s32
    %p36 = pneg %p30
    %p37 = scmp.eq.s32.totalorder %s9, 1
    %p38 = por %p36, %p37
    %p39 = scmp.ne.s32.totalorder %s31, %s34
    %p40 = scmp.eq.s32.totalorder %s9, 0
    %p41 = por %p39, %p40
    %p42 = scmp.ne.s32.totalorder %s31, %s34
    %p43 = scmp.eq.s32.totalorder %s14, 1
    %p44 = por %p42, %p43
    %p45 = scmp.ne.s32.totalorder %s34, %s35
    %p46 = scmp.eq.s32.totalorder %s14, 0
    %p47 = por %p45, %p46
    %p48 = scmp.ne.s32.totalorder %s34, %s35
    %p49 = scmp.eq.s32.totalorder %s15, 1
    %p50 = por %p48, %p49
    %p52 = scmp.ne.s32.totalorder %s35, %s51
    %p53 = scmp.eq.s32.totalorder %s15, 0
    %p54 = por %p52, %p53
    %s55 = ssub.s32 %s16, %s28
    %s56 = ssub.s32 %s17, %s24
    %s57 = sor.u32 %s55, %s56
    %p58 = scmp.eq.s32.totalorder %s57, 0
    %s60 = sadd.s32 %s59, 1
    %s61 = scalar_select %p58, %s59, %s60
    %p64 = pneg %p58
    %p65 = scmp.eq.s32.totalorder %s9, 1
    %p66 = por %p64, %p65
    %p67 = scmp.ne.s32.totalorder %s59, %s62
    %p68 = scmp.eq.s32.totalorder %s9, 0
    %p69 = por %p67, %p68
    %p70 = scmp.ne.s32.totalorder %s59, %s62
    %p71 = scmp.eq.s32.totalorder %s14, 1
    %p72 = por %p70, %p71
    %p73 = scmp.ne.s32.totalorder %s62, %s63
    %p74 = scmp.eq.s32.totalorder %s14, 0
    %p75 = por %p73, %p74
    %p76 = scmp.ne.s32.totalorder %s62, %s63
    %p77 = scmp.eq.s32.totalorder %s15, 1
    %p78 = por %p76, %p77
    %p80 = scmp.ne.s32.totalorder %s63, %s79
    %p81 = scmp.eq.s32.totalorder %s15, 0
    %p82 = por %p80, %p81
    %s84 = sadd.s32 %s83, 1
    %p87 = scmp.eq.s32.totalorder %s9, 1
    %p88 = scmp.ne.s32.totalorder %s83, %s85
    %p89 = scmp.eq.s32.totalorder %s9, 0
    %p90 = por %p88, %p89
    %p91 = scmp.ne.s32.totalorder %s83, %s85
    %p92 = scmp.eq.s32.totalorder %s14, 1
    %p93 = por %p91, %p92
    %p94 = scmp.ne.s32.totalorder %s85, %s86
    %p95 = scmp.eq.s32.totalorder %s14, 0
    %p96 = por %p94, %p95
    %p97 = scmp.ne.s32.totalorder %s85, %s86
    %p98 = scmp.eq.s32.totalorder %s15, 1
    %p99 = por %p97, %p98
    %p101 = scmp.ne.s32.totalorder %s86, %s100
    %p102 = scmp.eq.s32.totalorder %s15, 0
    %p103 = por %p101, %p102
    %s104 = ssub.s32 %s16, %s28
    %s105 = ssub.s32 %s17, %s24
    %s106 = sor.u32 %s104, %s105
    %p107 = scmp.eq.s32.totalorder %s106, 0
    %s109 = sadd.s32 %s108, 1
    %s110 = scalar_select %p107, %s108, %s109
    %p113 = pneg %p107
    %p114 = scmp.eq.s32.totalorder %s9, 1
    %p115 = por %p113, %p114
    %p116 = scmp.ne.s32.totalorder %s108, %s111
    %p117 = scmp.eq.s32.totalorder %s9, 0
    %p118 = por %p116, %p117
    %p119 = scmp.ne.s32.totalorder %s108, %s111
    %p120 = scmp.eq.s32.totalorder %s14, 1
    %p121 = por %p119, %p120
    %p122 = scmp.ne.s32.totalorder %s111, %s112
    %p123 = scmp.eq.s32.totalorder %s14, 0
    %p124 = por %p122, %p123
    %p125 = scmp.ne.s32.totalorder %s111, %s112
    %p126 = scmp.eq.s32.totalorder %s15, 1
    %p127 = por %p125, %p126
    %p129 = scmp.ne.s32.totalorder %s112, %s128
    %p130 = scmp.eq.s32.totalorder %s15, 0
    %p131 = por %p129, %p130
    %p132 = scmp.le.s32.totalorder 1, %s9
    %p133 = scmp.lt.s32.totalorder %s9, 3
    %p134 = pnand %p132, %p133
    %p135 = pneg %p134
    // Predicated region
    $region9: #{deform_conv2d_forward.3} parent=5 // pred_check
      _
    $region10: #{deform_conv2d_forward.3} parent=5 // pred_check_branch
      %137 = sbr.rel (%p134) target = $region12
    $region11: #{deform_conv2d_forward.3} parent=5 // pred_region
      %s138 = ssub.s32 %s9, 1
      // Predicated region
      $region13: #{deform_conv2d_forward.3} parent=11 // pred_check
        %p139 = pneg %p96
      $region14: #{deform_conv2d_forward.3} parent=11 // pred_check_branch
        %141 = sbr.rel (%p139) target = $region16
      $region15: #{deform_conv2d_forward.3} parent=11 // pred_region
        _
      $region16: #{deform_conv2d_forward.3} parent=11 // pred_fallthru
        _
    $region12: #{deform_conv2d_forward.3} parent=5 // pred_fallthru
      _
    %p142 = scmp.lt.s32.totalorder %s9, 2
    // Predicated region
    $region17: #{deform_conv2d_forward.3} parent=5 // pred_check
      %p143 = pneg %p142
    $region18: #{deform_conv2d_forward.3} parent=5 // pred_check_branch
      %145 = sbr.rel (%p143) target = $region20
    $region19: #{deform_conv2d_forward.3} parent=5 // pred_region
      // Predicated region
      $region21: #{deform_conv2d_forward.3} parent=19 // pred_check
        %p146 = pneg %p41
      $region22: #{deform_conv2d_forward.3} parent=19 // pred_check_branch
        %148 = sbr.rel (%p146) target = $region24
      $region23: #{deform_conv2d_forward.3} parent=19 // pred_region
        %p149 = scmp.lt.s32.totalorder %s16, 1
        %s150 = scalar_select %p149, %s16, 1
        %s151 = smul.addr %s150, 12
        %s152 = smul.addr %s151, 8
        %s153 = scalar_lea.vmem %s0, %s152
      $region24: #{deform_conv2d_forward.3} parent=19 // pred_fallthru
        _
      // Predicated region
      $region25: #{deform_conv2d_forward.3} parent=19 // pred_check
        %p154 = pneg %p69
      $region26: #{deform_conv2d_forward.3} parent=19 // pred_check_branch
        %156 = sbr.rel (%p154) target = $region28
      $region27: #{deform_conv2d_forward.3} parent=19 // pred_region
        %p157 = scmp.lt.s32.totalorder %s16, 1
        %s158 = scalar_select %p157, %s16, 1
        %p159 = scmp.lt.s32.totalorder %s17, 0
        %s160 = scalar_select %p159, %s17, 0
        %s161 = smul.addr %s160, 18
        %s162 = smul.addr %s158, 18
        %s163 = sadd.s32 %s161, %s162
        %s164 = smul.addr %s163, 2
        %s165 = scalar_lea.vmem %s1, %s164
      $region28: #{deform_conv2d_forward.3} parent=19 // pred_fallthru
        _
    $region20: #{deform_conv2d_forward.3} parent=5 // pred_fallthru
      _
    %p166 = scmp.le.s32.totalorder 1, %s9
    %p167 = scmp.lt.s32.totalorder %s9, 3
    %p168 = pnand %p166, %p167
    %p169 = pneg %p168
    // Predicated region
    $region29: #{deform_conv2d_forward.3} parent=5 // pred_check
      _
    $region30: #{deform_conv2d_forward.3} parent=5 // pred_check_branch
      %171 = sbr.rel (%p168) target = $region32
    $region31: #{deform_conv2d_forward.3} parent=5 // pred_region
      %s172 = ssub.s32 %s9, 1
      %p173 = scmp.lt.s32.totalorder %s18, 1
      %s174 = scalar_select %p173, %s18, 1
      %s175 = smul.addr %s174, 12
      %s176 = smul.addr %s175, 8
      %s177 = scalar_lea.vmem %s0, %s176
      %p178 = pneg %p47
      %p179 = pneg %p44
      %p180 = scmp.lt.s32.totalorder %s18, 1
      %s181 = scalar_select %p180, %s18, 1
      %p182 = scmp.lt.s32.totalorder %s19, 0
      %s183 = scalar_select %p182, %s19, 0
      %s184 = smul.addr %s183, 18
      %s185 = smul.addr %s181, 18
      %s186 = sadd.s32 %s184, %s185
      %s187 = smul.addr %s186, 2
      %s188 = scalar_lea.vmem %s1, %s187
      %p189 = pneg %p75
      %p190 = pneg %p72
      %p191 = pneg %p96
      %p192 = pneg %p93
      %p193 = pneg %p124
      %p194 = pneg %p121
      %s195 = smul.u32 2, %s19
      %p196 = scmp.lt.s32.totalorder %s18, 1
      %s197 = scalar_select %p196, %s18, 1
      %p198 = scmp.lt.s32.totalorder %s195, 1
      %s199 = scalar_select %p198, %s195, 1
      %s200 = smul.addr %s197, 2
      %s201 = sadd.s32 %s199, %s200
      %s202 = smul.addr %s201, 8
      %s203 = scalar_lea.vmem %s3, %s202
      %p204 = scmp.lt.s32.totalorder %s18, 1
      %s205 = scalar_select %p204, %s18, 1
      %s206 = smul.addr %s205, 12
      %s207 = smul.addr %s206, 8
      %s208 = scalar_lea.vmem %s0, %s207
      %p209 = scmp.lt.s32.totalorder %s18, 1
      %s210 = scalar_select %p209, %s18, 1
      %p211 = scmp.lt.s32.totalorder %s19, 0
      %s212 = scalar_select %p211, %s19, 0
      %s213 = smul.addr %s212, 18
      %s214 = smul.addr %s210, 18
      %s215 = sadd.s32 %s213, %s214
      %s216 = smul.addr %s215, 2
      %s217 = scalar_lea.vmem %s1, %s216
      %s218 = smul.u32 2, %s19
      %p219 = scmp.lt.s32.totalorder %s18, 1
      %s220 = scalar_select %p219, %s18, 1
      %p221 = scmp.lt.s32.totalorder %s218, 1
      %s222 = scalar_select %p221, %s218, 1
      %s223 = smul.addr %s220, 2
      %s224 = sadd.s32 %s222, %s223
      %s225 = smul.addr %s224, 8
      %s226 = scalar_lea.vmem %s3, %s225
      %s227 = smul.u32 2, %s19
      %v228 = vld [vmem:[%s208] sm:$0xff]
      %v229 = vld [vmem:[%s208 + $0x8] sm:$0xff]
      %v230 = vld [vmem:[%s208 + $0x10] sm:$0xff]
      %v231 = vld [vmem:[%s208 + $0x18] sm:$0xff]
      %v232 = vld [vmem:[%s208 + $0x20] sm:$0xff]
      %v233 = vld [vmem:[%s208 + $0x28] sm:$0xff]
      %v234 = vld [vmem:[%s208 + $0x30] sm:$0xff]
      %v235 = vld [vmem:[%s208 + $0x38] sm:$0xff]
      %v236 = vld [vmem:[%s208 + $0x40] sm:$0xff]
      %v237 = vld [vmem:[%s208 + $0x48] sm:$0xff]
      %v238 = vld [vmem:[%s208 + $0x50] sm:$0xff]
      %v239 = vld [vmem:[%s208 + $0x58] sm:$0xff]
      %v240 = vld [vmem:[%s217] ss:$2 sm:$0xff]
      %s241 = scalar_lea.vmem %s217, 16
      %v242 = vld [vmem:[%s241] ss:$2 sm:$0xff]
      %s243 = scalar_lea.vmem %s217, 32
      %v244 = vld [vmem:[%s243] ss:$2 sm:$0x3]
      %s245 = scalar_lea.vmem %s217, 1
      %v246 = vld [vmem:[%s245] ss:$2 sm:$0xff]
      %s247 = scalar_lea.vmem %s217, 17
      %v248 = vld [vmem:[%s247] ss:$2 sm:$0xff]
      %s249 = scalar_lea.vmem %s217, 33
      %v250 = vld [vmem:[%s249] ss:$2 sm:$0x3]
      %v251 = vfloor.f32 %v240
      %v252 = vfloor.f32 %v242
      %v253 = vfloor.f32 %v244
      %v254 = vfloor.f32 %v246
      %v255 = vfloor.f32 %v248
      %v256 = vfloor.f32 %v250
      %v257 = vmax.f32 %v251, 0.0
      %v258 = vmax.f32 %v252, 0.0
      %v259 = vmax.f32 %v253, 0.0
      %v260 = vmin.f32 %v257, 17.0
      %v261 = vmin.f32 %v258, 17.0
      %v262 = vmin.f32 %v259, 17.0
      %v263 = vadd.f32 %v251, 1.0
      %v264 = vadd.f32 %v252, 1.0
      %v265 = vadd.f32 %v253, 1.0
      %v266 = vmax.f32 %v263, 0.0
      %v267 = vmax.f32 %v264, 0.0
      %v268 = vmax.f32 %v265, 0.0
      %v269 = vmin.f32 %v266, 17.0
      %v270 = vmin.f32 %v267, 17.0
      %v271 = vmin.f32 %v268, 17.0
      %v272 = vmax.f32 %v254, 0.0
      %v273 = vmax.f32 %v255, 0.0
      %v274 = vmax.f32 %v256, 0.0
      %v275 = vmin.f32 %v272, 17.0
      %v276 = vmin.f32 %v273, 17.0
      %v277 = vmin.f32 %v274, 17.0
      %v278 = vadd.f32 %v254, 1.0
      %v279 = vadd.f32 %v255, 1.0
      %v280 = vadd.f32 %v256, 1.0
      %v281 = vmax.f32 %v278, 0.0
      %v282 = vmax.f32 %v279, 0.0
      %v283 = vmax.f32 %v280, 0.0
      %v284 = vmin.f32 %v281, 17.0
      %v285 = vmin.f32 %v282, 17.0
      %v286 = vmin.f32 %v283, 17.0
      %v287 = vmax.f32 %v240, 0.0
      %v288 = vmax.f32 %v242, 0.0
      %v289 = vmax.f32 %v244, 0.0
      %v290 = vmin.f32 %v287, 17.0
      %v291 = vmin.f32 %v288, 17.0
      %v292 = vmin.f32 %v289, 17.0
      %v293 = vmax.f32 %v246, 0.0
      %v294 = vmax.f32 %v248, 0.0
      %v295 = vmax.f32 %v250, 0.0
      %v296 = vmin.f32 %v293, 17.0
      %v297 = vmin.f32 %v294, 17.0
      %v298 = vmin.f32 %v295, 17.0
      %v299 = vsub.f32 %v260, %v290
      %v300 = vsub.f32 %v261, %v291
      %v301 = vsub.f32 %v262, %v292
      %v302 = vadd.f32 %v299, 1.0
      %v303 = vadd.f32 %v300, 1.0
      %v304 = vadd.f32 %v301, 1.0
      %v305 = vsub.f32 %v269, %v290
      %v306 = vsub.f32 %v270, %v291
      %v307 = vsub.f32 %v271, %v292
      %v308 = vsub.f32 1.0, %v305
      %v309 = vsub.f32 1.0, %v306
      %v310 = vsub.f32 1.0, %v307
      %v311 = vsub.f32 %v275, %v296
      %v312 = vsub.f32 %v276, %v297
      %v313 = vsub.f32 %v277, %v298
      %v314 = vadd.f32 %v311, 1.0
      %v315 = vadd.f32 %v312, 1.0
      %v316 = vadd.f32 %v313, 1.0
      %v317 = vsub.f32 %v284, %v296
      %v318 = vsub.f32 %v285, %v297
      %v319 = vsub.f32 %v286, %v298
      %v320 = vsub.f32 1.0, %v317
      %v321 = vsub.f32 1.0, %v318
      %v322 = vsub.f32 1.0, %v319
      %v323 = vcvt.f32.s32.to.zero.pseudo %v260
      %v324 = vcvt.f32.s32.to.zero.pseudo %v261
      %v325 = vcvt.f32.s32.to.zero.pseudo %v262
      %v326 = vcvt.f32.s32.to.zero.pseudo %v269
      %v327 = vcvt.f32.s32.to.zero.pseudo %v270
      %v328 = vcvt.f32.s32.to.zero.pseudo %v271
      %v329 = vcvt.f32.s32.to.zero.pseudo %v275
      %v330 = vcvt.f32.s32.to.zero.pseudo %v276
      %v331 = vcvt.f32.s32.to.zero.pseudo %v277
      %v332 = vcvt.f32.s32.to.zero.pseudo %v284
      %v333 = vcvt.f32.s32.to.zero.pseudo %v285
      %v334 = vcvt.f32.s32.to.zero.pseudo %v286
      %v335 = vlaneseq
      %v336 = vshrl.u32 %v335, 7
      %v337 = vadd.s32 %v336, 8
      %v338 = vadd.s32 %v336, 16
      %v339 = vlaneseq
      %v340 = vshrl.u32 %v339, 7
      %v341 = vsub.s32 0, %v340
      %v342 = vrot.slane %v329, %v341
      %v343 = vlaneseq
      %v344 = vshrl.u32 %v343, 7
      %v345 = vsub.s32 1, %v344
      %v346 = vrot.slane %v329, %v345
      %v347 = vlaneseq
      %v348 = vshrl.u32 %v347, 7
      %v349 = vsub.s32 2, %v348
      %v350 = vrot.slane %v329, %v349
      %v351 = vlaneseq
      %v352 = vshrl.u32 %v351, 7
      %v353 = vsub.s32 3, %v352
      %v354 = vrot.slane %v329, %v353
      %v355 = vlaneseq
      %v356 = vshrl.u32 %v355, 7
      %v357 = vsub.s32 4, %v356
      %v358 = vrot.slane %v329, %v357
      %v359 = vlaneseq
      %v360 = vshrl.u32 %v359, 7
      %v361 = vsub.s32 5, %v360
      %v362 = vrot.slane %v329, %v361
      %v363 = vlaneseq
      %v364 = vshrl.u32 %v363, 7
      %v365 = vsub.s32 6, %v364
      %v366 = vrot.slane %v329, %v365
      %v367 = vlaneseq
      %v368 = vshrl.u32 %v367, 7
      %v369 = vsub.s32 7, %v368
      %v370 = vrot.slane %v329, %v369
      %v371 = vlaneseq
      %v372 = vshrl.u32 %v371, 7
      %v373 = vsub.s32 0, %v372
      %v374 = vrot.slane %v330, %v373
      %v375 = vlaneseq
      %v376 = vshrl.u32 %v375, 7
      %v377 = vsub.s32 1, %v376
      %v378 = vrot.slane %v330, %v377
      %v379 = vlaneseq
      %v380 = vshrl.u32 %v379, 7
      %v381 = vsub.s32 2, %v380
      %v382 = vrot.slane %v330, %v381
      %v383 = vlaneseq
      %v384 = vshrl.u32 %v383, 7
      %v385 = vsub.s32 3, %v384
      %v386 = vrot.slane %v330, %v385
      %v387 = vlaneseq
      %v388 = vshrl.u32 %v387, 7
      %v389 = vsub.s32 4, %v388
      %v390 = vrot.slane %v330, %v389
      %v391 = vlaneseq
      %v392 = vshrl.u32 %v391, 7
      %v393 = vsub.s32 5, %v392
      %v394 = vrot.slane %v330, %v393
      %v395 = vlaneseq
      %v396 = vshrl.u32 %v395, 7
      %v397 = vsub.s32 6, %v396
      %v398 = vrot.slane %v330, %v397
      %v399 = vlaneseq
      %v400 = vshrl.u32 %v399, 7
      %v401 = vsub.s32 7, %v400
      %v402 = vrot.slane %v330, %v401
      %v403 = vlaneseq
      %v404 = vshrl.u32 %v403, 7
      %v405 = vsub.s32 0, %v404
      %v406 = vrot.slane %v331, %v405
      %v407 = vlaneseq
      %v408 = vshrl.u32 %v407, 7
      %v409 = vsub.s32 1, %v408
      %v410 = vrot.slane %v331, %v409
      %vm411 = vcmp.eq.s32.totalorder %v336, %v342
      %vm412 = vcmp.eq.s32.totalorder %v336, %v346
      %vm413 = vcmp.eq.s32.totalorder %v336, %v350
      %vm414 = vcmp.eq.s32.totalorder %v336, %v354
      %vm415 = vcmp.eq.s32.totalorder %v336, %v358
      %vm416 = vcmp.eq.s32.totalorder %v336, %v362
      %vm417 = vcmp.eq.s32.totalorder %v336, %v366
      %vm418 = vcmp.eq.s32.totalorder %v336, %v370
      %vm419 = vcmp.eq.s32.totalorder %v336, %v374
      %vm420 = vcmp.eq.s32.totalorder %v336, %v378
      %vm421 = vcmp.eq.s32.totalorder %v336, %v382
      %vm422 = vcmp.eq.s32.totalorder %v336, %v386
      %vm423 = vcmp.eq.s32.totalorder %v336, %v390
      %vm424 = vcmp.eq.s32.totalorder %v336, %v394
      %vm425 = vcmp.eq.s32.totalorder %v336, %v398
      %vm426 = vcmp.eq.s32.totalorder %v336, %v402
      %vm427 = vcmp.eq.s32.totalorder %v336, %v406
      %vm428 = vcmp.eq.s32.totalorder %v336, %v410
      %vm429 = vcmp.eq.s32.totalorder %v337, %v342
      %vm430 = vcmp.eq.s32.totalorder %v337, %v346
      %vm431 = vcmp.eq.s32.totalorder %v337, %v350
      %vm432 = vcmp.eq.s32.totalorder %v337, %v354
      %vm433 = vcmp.eq.s32.totalorder %v337, %v358
      %vm434 = vcmp.eq.s32.totalorder %v337, %v362
      %vm435 = vcmp.eq.s32.totalorder %v337, %v366
      %vm436 = vcmp.eq.s32.totalorder %v337, %v370
      %vm437 = vcmp.eq.s32.totalorder %v337, %v374
      %vm438 = vcmp.eq.s32.totalorder %v337, %v378
      %vm439 = vcmp.eq.s32.totalorder %v337, %v382
      %vm440 = vcmp.eq.s32.totalorder %v337, %v386
      %vm441 = vcmp.eq.s32.totalorder %v337, %v390
      %vm442 = vcmp.eq.s32.totalorder %v337, %v394
      %vm443 = vcmp.eq.s32.totalorder %v337, %v398
      %vm444 = vcmp.eq.s32.totalorder %v337, %v402
      %vm445 = vcmp.eq.s32.totalorder %v337, %v406
      %vm446 = vcmp.eq.s32.totalorder %v337, %v410
      %vm447 = vcmp.eq.s32.totalorder %v338, %v342
      %vm448 = vcmp.eq.s32.totalorder %v338, %v346
      %vm449 = vcmp.eq.s32.totalorder %v338, %v350
      %vm450 = vcmp.eq.s32.totalorder %v338, %v354
      %vm451 = vcmp.eq.s32.totalorder %v338, %v358
      %vm452 = vcmp.eq.s32.totalorder %v338, %v362
      %vm453 = vcmp.eq.s32.totalorder %v338, %v366
      %vm454 = vcmp.eq.s32.totalorder %v338, %v370
      %vm455 = vcmp.eq.s32.totalorder %v338, %v374
      %vm456 = vcmp.eq.s32.totalorder %v338, %v378
      %vm457 = vcmp.eq.s32.totalorder %v338, %v382
      %vm458 = vcmp.eq.s32.totalorder %v338, %v386
      %vm459 = vcmp.eq.s32.totalorder %v338, %v390
      %vm460 = vcmp.eq.s32.totalorder %v338, %v394
      %vm461 = vcmp.eq.s32.totalorder %v338, %v398
      %vm462 = vcmp.eq.s32.totalorder %v338, %v402
      %vm463 = vcmp.eq.s32.totalorder %v338, %v406
      %vm464 = vcmp.eq.s32.totalorder %v338, %v410
      %v468 = vlaneseq
      %v469 = vshrl.u32 %v468, 7
      %v470 = vsub.s32 0, %v469
      %v471 = vrot.slane %v314, %v470
      %v472 = vlaneseq
      %v473 = vshrl.u32 %v472, 7
      %v474 = vsub.s32 1, %v473
      %v475 = vrot.slane %v314, %v474
      %v476 = vlaneseq
      %v477 = vshrl.u32 %v476, 7
      %v478 = vsub.s32 2, %v477
      %v479 = vrot.slane %v314, %v478
      %v480 = vlaneseq
      %v481 = vshrl.u32 %v480, 7
      %v482 = vsub.s32 3, %v481
      %v483 = vrot.slane %v314, %v482
      %v484 = vlaneseq
      %v485 = vshrl.u32 %v484, 7
      %v486 = vsub.s32 4, %v485
      %v487 = vrot.slane %v314, %v486
      %v488 = vlaneseq
      %v489 = vshrl.u32 %v488, 7
      %v490 = vsub.s32 5, %v489
      %v491 = vrot.slane %v314, %v490
      %v492 = vlaneseq
      %v493 = vshrl.u32 %v492, 7
      %v494 = vsub.s32 6, %v493
      %v495 = vrot.slane %v314, %v494
      %v496 = vlaneseq
      %v497 = vshrl.u32 %v496, 7
      %v498 = vsub.s32 7, %v497
      %v499 = vrot.slane %v314, %v498
      %v500 = vlaneseq
      %v501 = vshrl.u32 %v500, 7
      %v502 = vsub.s32 0, %v501
      %v503 = vrot.slane %v315, %v502
      %v504 = vlaneseq
      %v505 = vshrl.u32 %v504, 7
      %v506 = vsub.s32 1, %v505
      %v507 = vrot.slane %v315, %v506
      %v508 = vlaneseq
      %v509 = vshrl.u32 %v508, 7
      %v510 = vsub.s32 2, %v509
      %v511 = vrot.slane %v315, %v510
      %v512 = vlaneseq
      %v513 = vshrl.u32 %v512, 7
      %v514 = vsub.s32 3, %v513
      %v515 = vrot.slane %v315, %v514
      %v516 = vlaneseq
      %v517 = vshrl.u32 %v516, 7
      %v518 = vsub.s32 4, %v517
      %v519 = vrot.slane %v315, %v518
      %v520 = vlaneseq
      %v521 = vshrl.u32 %v520, 7
      %v522 = vsub.s32 5, %v521
      %v523 = vrot.slane %v315, %v522
      %v524 = vlaneseq
      %v525 = vshrl.u32 %v524, 7
      %v526 = vsub.s32 6, %v525
      %v527 = vrot.slane %v315, %v526
      %v528 = vlaneseq
      %v529 = vshrl.u32 %v528, 7
      %v530 = vsub.s32 7, %v529
      %v531 = vrot.slane %v315, %v530
      %v532 = vlaneseq
      %v533 = vshrl.u32 %v532, 7
      %v534 = vsub.s32 0, %v533
      %v535 = vrot.slane %v316, %v534
      %v536 = vlaneseq
      %v537 = vshrl.u32 %v536, 7
      %v538 = vsub.s32 1, %v537
      %v539 = vrot.slane %v316, %v538
      %v558 = vsel %vm411, %v471, 0.0
      %v559 = vsel %vm412, %v475, 0.0
      %v560 = vsel %vm413, %v479, 0.0
      %v561 = vsel %vm414, %v483, 0.0
      %v562 = vsel %vm415, %v487, 0.0
      %v563 = vsel %vm416, %v491, 0.0
      %v564 = vsel %vm417, %v495, 0.0
      %v565 = vsel %vm418, %v499, 0.0
      %v566 = vsel %vm419, %v503, 0.0
      %v567 = vsel %vm420, %v507, 0.0
      %v568 = vsel %vm421, %v511, 0.0
      %v569 = vsel %vm422, %v515, 0.0
      %v570 = vsel %vm423, %v519, 0.0
      %v571 = vsel %vm424, %v523, 0.0
      %v572 = vsel %vm425, %v527, 0.0
      %v573 = vsel %vm426, %v531, 0.0
      %v574 = vsel %vm427, %v535, 0.0
      %v575 = vsel %vm428, %v539, 0.0
      %v576 = vsel %vm429, %v471, 0.0
      %v577 = vsel %vm430, %v475, 0.0
      %v578 = vsel %vm431, %v479, 0.0
      %v579 = vsel %vm432, %v483, 0.0
      %v580 = vsel %vm433, %v487, 0.0
      %v581 = vsel %vm434, %v491, 0.0
      %v582 = vsel %vm435, %v495, 0.0
      %v583 = vsel %vm436, %v499, 0.0
      %v584 = vsel %vm437, %v503, 0.0
      %v585 = vsel %vm438, %v507, 0.0
      %v586 = vsel %vm439, %v511, 0.0
      %v587 = vsel %vm440, %v515, 0.0
      %v588 = vsel %vm441, %v519, 0.0
      %v589 = vsel %vm442, %v523, 0.0
      %v590 = vsel %vm443, %v527, 0.0
      %v591 = vsel %vm444, %v531, 0.0
      %v592 = vsel %vm445, %v535, 0.0
      %v593 = vsel %vm446, %v539, 0.0
      %v594 = vsel %vm447, %v471, 0.0
      %v595 = vsel %vm448, %v475, 0.0
      %v596 = vsel %vm449, %v479, 0.0
      %v597 = vsel %vm450, %v483, 0.0
      %v598 = vsel %vm451, %v487, 0.0
      %v599 = vsel %vm452, %v491, 0.0
      %v600 = vsel %vm453, %v495, 0.0
      %v601 = vsel %vm454, %v499, 0.0
      %v602 = vsel %vm455, %v503, 0.0
      %v603 = vsel %vm456, %v507, 0.0
      %v604 = vsel %vm457, %v511, 0.0
      %v605 = vsel %vm458, %v515, 0.0
      %v606 = vsel %vm459, %v519, 0.0
      %v607 = vsel %vm460, %v523, 0.0
      %v608 = vsel %vm461, %v527, 0.0
      %v609 = vsel %vm462, %v531, 0.0
      %v610 = vsel %vm463, %v535, 0.0
      %v611 = vsel %vm464, %v539, 0.0
      %v612 = vlaneseq
      %v613 = vshrl.u32 %v612, 7
      %v614 = vsub.s32 0, %v613
      %v615 = vrot.slane %v332, %v614
      %v616 = vlaneseq
      %v617 = vshrl.u32 %v616, 7
      %v618 = vsub.s32 1, %v617
      %v619 = vrot.slane %v332, %v618
      %v620 = vlaneseq
      %v621 = vshrl.u32 %v620, 7
      %v622 = vsub.s32 2, %v621
      %v623 = vrot.slane %v332, %v622
      %v624 = vlaneseq
      %v625 = vshrl.u32 %v624, 7
      %v626 = vsub.s32 3, %v625
      %v627 = vrot.slane %v332, %v626
      %v628 = vlaneseq
      %v629 = vshrl.u32 %v628, 7
      %v630 = vsub.s32 4, %v629
      %v631 = vrot.slane %v332, %v630
      %v632 = vlaneseq
      %v633 = vshrl.u32 %v632, 7
      %v634 = vsub.s32 5, %v633
      %v635 = vrot.slane %v332, %v634
      %v636 = vlaneseq
      %v637 = vshrl.u32 %v636, 7
      %v638 = vsub.s32 6, %v637
      %v639 = vrot.slane %v332, %v638
      %v640 = vlaneseq
      %v641 = vshrl.u32 %v640, 7
      %v642 = vsub.s32 7, %v641
      %v643 = vrot.slane %v332, %v642
      %v644 = vlaneseq
      %v645 = vshrl.u32 %v644, 7
      %v646 = vsub.s32 0, %v645
      %v647 = vrot.slane %v333, %v646
      %v648 = vlaneseq
      %v649 = vshrl.u32 %v648, 7
      %v650 = vsub.s32 1, %v649
      %v651 = vrot.slane %v333, %v650
      %v652 = vlaneseq
      %v653 = vshrl.u32 %v652, 7
      %v654 = vsub.s32 2, %v653
      %v655 = vrot.slane %v333, %v654
      %v656 = vlaneseq
      %v657 = vshrl.u32 %v656, 7
      %v658 = vsub.s32 3, %v657
      %v659 = vrot.slane %v333, %v658
      %v660 = vlaneseq
      %v661 = vshrl.u32 %v660, 7
      %v662 = vsub.s32 4, %v661
      %v663 = vrot.slane %v333, %v662
      %v664 = vlaneseq
      %v665 = vshrl.u32 %v664, 7
      %v666 = vsub.s32 5, %v665
      %v667 = vrot.slane %v333, %v666
      %v668 = vlaneseq
      %v669 = vshrl.u32 %v668, 7
      %v670 = vsub.s32 6, %v669
      %v671 = vrot.slane %v333, %v670
      %v672 = vlaneseq
      %v673 = vshrl.u32 %v672, 7
      %v674 = vsub.s32 7, %v673
      %v675 = vrot.slane %v333, %v674
      %v676 = vlaneseq
      %v677 = vshrl.u32 %v676, 7
      %v678 = vsub.s32 0, %v677
      %v679 = vrot.slane %v334, %v678
      %v680 = vlaneseq
      %v681 = vshrl.u32 %v680, 7
      %v682 = vsub.s32 1, %v681
      %v683 = vrot.slane %v334, %v682
      %vm684 = vcmp.eq.s32.totalorder %v336, %v615
      %vm685 = vcmp.eq.s32.totalorder %v336, %v619
      %vm686 = vcmp.eq.s32.totalorder %v336, %v623
      %vm687 = vcmp.eq.s32.totalorder %v336, %v627
      %vm688 = vcmp.eq.s32.totalorder %v336, %v631
      %vm689 = vcmp.eq.s32.totalorder %v336, %v635
      %vm690 = vcmp.eq.s32.totalorder %v336, %v639
      %vm691 = vcmp.eq.s32.totalorder %v336, %v643
      %vm692 = vcmp.eq.s32.totalorder %v336, %v647
      %vm693 = vcmp.eq.s32.totalorder %v336, %v651
      %vm694 = vcmp.eq.s32.totalorder %v336, %v655
      %vm695 = vcmp.eq.s32.totalorder %v336, %v659
      %vm696 = vcmp.eq.s32.totalorder %v336, %v663
      %vm697 = vcmp.eq.s32.totalorder %v336, %v667
      %vm698 = vcmp.eq.s32.totalorder %v336, %v671
      %vm699 = vcmp.eq.s32.totalorder %v336, %v675
      %vm700 = vcmp.eq.s32.totalorder %v336, %v679
      %vm701 = vcmp.eq.s32.totalorder %v336, %v683
      %vm702 = vcmp.eq.s32.totalorder %v337, %v615
      %vm703 = vcmp.eq.s32.totalorder %v337, %v619
      %vm704 = vcmp.eq.s32.totalorder %v337, %v623
      %vm705 = vcmp.eq.s32.totalorder %v337, %v627
      %vm706 = vcmp.eq.s32.totalorder %v337, %v631
      %vm707 = vcmp.eq.s32.totalorder %v337, %v635
      %vm708 = vcmp.eq.s32.totalorder %v337, %v639
      %vm709 = vcmp.eq.s32.totalorder %v337, %v643
      %vm710 = vcmp.eq.s32.totalorder %v337, %v647
      %vm711 = vcmp.eq.s32.totalorder %v337, %v651
      %vm712 = vcmp.eq.s32.totalorder %v337, %v655
      %vm713 = vcmp.eq.s32.totalorder %v337, %v659
      %vm714 = vcmp.eq.s32.totalorder %v337, %v663
      %vm715 = vcmp.eq.s32.totalorder %v337, %v667
      %vm716 = vcmp.eq.s32.totalorder %v337, %v671
      %vm717 = vcmp.eq.s32.totalorder %v337, %v675
      %vm718 = vcmp.eq.s32.totalorder %v337, %v679
      %vm719 = vcmp.eq.s32.totalorder %v337, %v683
      %vm720 = vcmp.eq.s32.totalorder %v338, %v615
      %vm721 = vcmp.eq.s32.totalorder %v338, %v619
      %vm722 = vcmp.eq.s32.totalorder %v338, %v623
      %vm723 = vcmp.eq.s32.totalorder %v338, %v627
      %vm724 = vcmp.eq.s32.totalorder %v338, %v631
      %vm725 = vcmp.eq.s32.totalorder %v338, %v635
      %vm726 = vcmp.eq.s32.totalorder %v338, %v639
      %vm727 = vcmp.eq.s32.totalorder %v338, %v643
      %vm728 = vcmp.eq.s32.totalorder %v338, %v647
      %vm729 = vcmp.eq.s32.totalorder %v338, %v651
      %vm730 = vcmp.eq.s32.totalorder %v338, %v655
      %vm731 = vcmp.eq.s32.totalorder %v338, %v659
      %vm732 = vcmp.eq.s32.totalorder %v338, %v663
      %vm733 = vcmp.eq.s32.totalorder %v338, %v667
      %vm734 = vcmp.eq.s32.totalorder %v338, %v671
      %vm735 = vcmp.eq.s32.totalorder %v338, %v675
      %vm736 = vcmp.eq.s32.totalorder %v338, %v679
      %vm737 = vcmp.eq.s32.totalorder %v338, %v683
      %v741 = vlaneseq
      %v742 = vshrl.u32 %v741, 7
      %v743 = vsub.s32 0, %v742
      %v744 = vrot.slane %v320, %v743
      %v745 = vlaneseq
      %v746 = vshrl.u32 %v745, 7
      %v747 = vsub.s32 1, %v746
      %v748 = vrot.slane %v320, %v747
      %v749 = vlaneseq
      %v750 = vshrl.u32 %v749, 7
      %v751 = vsub.s32 2, %v750
      %v752 = vrot.slane %v320, %v751
      %v753 = vlaneseq
      %v754 = vshrl.u32 %v753, 7
      %v755 = vsub.s32 3, %v754
      %v756 = vrot.slane %v320, %v755
      %v757 = vlaneseq
      %v758 = vshrl.u32 %v757, 7
      %v759 = vsub.s32 4, %v758
      %v760 = vrot.slane %v320, %v759
      %v761 = vlaneseq
      %v762 = vshrl.u32 %v761, 7
      %v763 = vsub.s32 5, %v762
      %v764 = vrot.slane %v320, %v763
      %v765 = vlaneseq
      %v766 = vshrl.u32 %v765, 7
      %v767 = vsub.s32 6, %v766
      %v768 = vrot.slane %v320, %v767
      %v769 = vlaneseq
      %v770 = vshrl.u32 %v769, 7
      %v771 = vsub.s32 7, %v770
      %v772 = vrot.slane %v320, %v771
      %v773 = vlaneseq
      %v774 = vshrl.u32 %v773, 7
      %v775 = vsub.s32 0, %v774
      %v776 = vrot.slane %v321, %v775
      %v777 = vlaneseq
      %v778 = vshrl.u32 %v777, 7
      %v779 = vsub.s32 1, %v778
      %v780 = vrot.slane %v321, %v779
      %v781 = vlaneseq
      %v782 = vshrl.u32 %v781, 7
      %v783 = vsub.s32 2, %v782
      %v784 = vrot.slane %v321, %v783
      %v785 = vlaneseq
      %v786 = vshrl.u32 %v785, 7
      %v787 = vsub.s32 3, %v786
      %v788 = vrot.slane %v321, %v787
      %v789 = vlaneseq
      %v790 = vshrl.u32 %v789, 7
      %v791 = vsub.s32 4, %v790
      %v792 = vrot.slane %v321, %v791
      %v793 = vlaneseq
      %v794 = vshrl.u32 %v793, 7
      %v795 = vsub.s32 5, %v794
      %v796 = vrot.slane %v321, %v795
      %v797 = vlaneseq
      %v798 = vshrl.u32 %v797, 7
      %v799 = vsub.s32 6, %v798
      %v800 = vrot.slane %v321, %v799
      %v801 = vlaneseq
      %v802 = vshrl.u32 %v801, 7
      %v803 = vsub.s32 7, %v802
      %v804 = vrot.slane %v321, %v803
      %v805 = vlaneseq
      %v806 = vshrl.u32 %v805, 7
      %v807 = vsub.s32 0, %v806
      %v808 = vrot.slane %v322, %v807
      %v809 = vlaneseq
      %v810 = vshrl.u32 %v809, 7
      %v811 = vsub.s32 1, %v810
      %v812 = vrot.slane %v322, %v811
      %v831 = vsel %vm684, %v744, 0.0
      %v832 = vsel %vm685, %v748, 0.0
      %v833 = vsel %vm686, %v752, 0.0
      %v834 = vsel %vm687, %v756, 0.0
      %v835 = vsel %vm688, %v760, 0.0
      %v836 = vsel %vm689, %v764, 0.0
      %v837 = vsel %vm690, %v768, 0.0
      %v838 = vsel %vm691, %v772, 0.0
      %v839 = vsel %vm692, %v776, 0.0
      %v840 = vsel %vm693, %v780, 0.0
      %v841 = vsel %vm694, %v784, 0.0
      %v842 = vsel %vm695, %v788, 0.0
      %v843 = vsel %vm696, %v792, 0.0
      %v844 = vsel %vm697, %v796, 0.0
      %v845 = vsel %vm698, %v800, 0.0
      %v846 = vsel %vm699, %v804, 0.0
      %v847 = vsel %vm700, %v808, 0.0
      %v848 = vsel %vm701, %v812, 0.0
      %v849 = vsel %vm702, %v744, 0.0
      %v850 = vsel %vm703, %v748, 0.0
      %v851 = vsel %vm704, %v752, 0.0
      %v852 = vsel %vm705, %v756, 0.0
      %v853 = vsel %vm706, %v760, 0.0
      %v854 = vsel %vm707, %v764, 0.0
      %v855 = vsel %vm708, %v768, 0.0
      %v856 = vsel %vm709, %v772, 0.0
      %v857 = vsel %vm710, %v776, 0.0
      %v858 = vsel %vm711, %v780, 0.0
      %v859 = vsel %vm712, %v784, 0.0
      %v860 = vsel %vm713, %v788, 0.0
      %v861 = vsel %vm714, %v792, 0.0
      %v862 = vsel %vm715, %v796, 0.0
      %v863 = vsel %vm716, %v800, 0.0
      %v864 = vsel %vm717, %v804, 0.0
      %v865 = vsel %vm718, %v808, 0.0
      %v866 = vsel %vm719, %v812, 0.0
      %v867 = vsel %vm720, %v744, 0.0
      %v868 = vsel %vm721, %v748, 0.0
      %v869 = vsel %vm722, %v752, 0.0
      %v870 = vsel %vm723, %v756, 0.0
      %v871 = vsel %vm724, %v760, 0.0
      %v872 = vsel %vm725, %v764, 0.0
      %v873 = vsel %vm726, %v768, 0.0
      %v874 = vsel %vm727, %v772, 0.0
      %v875 = vsel %vm728, %v776, 0.0
      %v876 = vsel %vm729, %v780, 0.0
      %v877 = vsel %vm730, %v784, 0.0
      %v878 = vsel %vm731, %v788, 0.0
      %v879 = vsel %vm732, %v792, 0.0
      %v880 = vsel %vm733, %v796, 0.0
      %v881 = vsel %vm734, %v800, 0.0
      %v882 = vsel %vm735, %v804, 0.0
      %v883 = vsel %vm736, %v808, 0.0
      %v884 = vsel %vm737, %v812, 0.0
      %v885 = vadd.f32 %v558, %v831
      %v886 = vadd.f32 %v559, %v832
      %v887 = vadd.f32 %v560, %v833
      %v888 = vadd.f32 %v561, %v834
      %v889 = vadd.f32 %v562, %v835
      %v890 = vadd.f32 %v563, %v836
      %v891 = vadd.f32 %v564, %v837
      %v892 = vadd.f32 %v565, %v838
      %v893 = vadd.f32 %v566, %v839
      %v894 = vadd.f32 %v567, %v840
      %v895 = vadd.f32 %v568, %v841
      %v896 = vadd.f32 %v569, %v842
      %v897 = vadd.f32 %v570, %v843
      %v898 = vadd.f32 %v571, %v844
      %v899 = vadd.f32 %v572, %v845
      %v900 = vadd.f32 %v573, %v846
      %v901 = vadd.f32 %v574, %v847
      %v902 = vadd.f32 %v575, %v848
      %v903 = vadd.f32 %v576, %v849
      %v904 = vadd.f32 %v577, %v850
      %v905 = vadd.f32 %v578, %v851
      %v906 = vadd.f32 %v579, %v852
      %v907 = vadd.f32 %v580, %v853
      %v908 = vadd.f32 %v581, %v854
      %v909 = vadd.f32 %v582, %v855
      %v910 = vadd.f32 %v583, %v856
      %v911 = vadd.f32 %v584, %v857
      %v912 = vadd.f32 %v585, %v858
      %v913 = vadd.f32 %v586, %v859
      %v914 = vadd.f32 %v587, %v860
      %v915 = vadd.f32 %v588, %v861
      %v916 = vadd.f32 %v589, %v862
      %v917 = vadd.f32 %v590, %v863
      %v918 = vadd.f32 %v591, %v864
      %v919 = vadd.f32 %v592, %v865
      %v920 = vadd.f32 %v593, %v866
      %v921 = vadd.f32 %v594, %v867
      %v922 = vadd.f32 %v595, %v868
      %v923 = vadd.f32 %v596, %v869
      %v924 = vadd.f32 %v597, %v870
      %v925 = vadd.f32 %v598, %v871
      %v926 = vadd.f32 %v599, %v872
      %v927 = vadd.f32 %v600, %v873
      %v928 = vadd.f32 %v601, %v874
      %v929 = vadd.f32 %v602, %v875
      %v930 = vadd.f32 %v603, %v876
      %v931 = vadd.f32 %v604, %v877
      %v932 = vadd.f32 %v605, %v878
      %v933 = vadd.f32 %v606, %v879
      %v934 = vadd.f32 %v607, %v880
      %v935 = vadd.f32 %v608, %v881
      %v936 = vadd.f32 %v609, %v882
      %v937 = vadd.f32 %v610, %v883
      %v938 = vadd.f32 %v611, %v884
      %v939 = vlaneseq
      %v940 = vshrl.u32 %v939, 7
      %v941 = vsub.s32 0, %v940
      %v942 = vrot.slane %v323, %v941
      %v943 = vlaneseq
      %v944 = vshrl.u32 %v943, 7
      %v945 = vsub.s32 1, %v944
      %v946 = vrot.slane %v323, %v945
      %v947 = vlaneseq
      %v948 = vshrl.u32 %v947, 7
      %v949 = vsub.s32 2, %v948
      %v950 = vrot.slane %v323, %v949
      %v951 = vlaneseq
      %v952 = vshrl.u32 %v951, 7
      %v953 = vsub.s32 3, %v952
      %v954 = vrot.slane %v323, %v953
      %v955 = vlaneseq
      %v956 = vshrl.u32 %v955, 7
      %v957 = vsub.s32 4, %v956
      %v958 = vrot.slane %v323, %v957
      %v959 = vlaneseq
      %v960 = vshrl.u32 %v959, 7
      %v961 = vsub.s32 5, %v960
      %v962 = vrot.slane %v323, %v961
      %v963 = vlaneseq
      %v964 = vshrl.u32 %v963, 7
      %v965 = vsub.s32 6, %v964
      %v966 = vrot.slane %v323, %v965
      %v967 = vlaneseq
      %v968 = vshrl.u32 %v967, 7
      %v969 = vsub.s32 7, %v968
      %v970 = vrot.slane %v323, %v969
      %v971 = vlaneseq
      %v972 = vshrl.u32 %v971, 7
      %v973 = vsub.s32 0, %v972
      %v974 = vrot.slane %v324, %v973
      %v975 = vlaneseq
      %v976 = vshrl.u32 %v975, 7
      %v977 = vsub.s32 1, %v976
      %v978 = vrot.slane %v324, %v977
      %v979 = vlaneseq
      %v980 = vshrl.u32 %v979, 7
      %v981 = vsub.s32 2, %v980
      %v982 = vrot.slane %v324, %v981
      %v983 = vlaneseq
      %v984 = vshrl.u32 %v983, 7
      %v985 = vsub.s32 3, %v984
      %v986 = vrot.slane %v324, %v985
      %v987 = vlaneseq
      %v988 = vshrl.u32 %v987, 7
      %v989 = vsub.s32 4, %v988
      %v990 = vrot.slane %v324, %v989
      %v991 = vlaneseq
      %v992 = vshrl.u32 %v991, 7
      %v993 = vsub.s32 5, %v992
      %v994 = vrot.slane %v324, %v993
      %v995 = vlaneseq
      %v996 = vshrl.u32 %v995, 7
      %v997 = vsub.s32 6, %v996
      %v998 = vrot.slane %v324, %v997
      %v999 = vlaneseq
      %v1000 = vshrl.u32 %v999, 7
      %v1001 = vsub.s32 7, %v1000
      %v1002 = vrot.slane %v324, %v1001
      %v1003 = vlaneseq
      %v1004 = vshrl.u32 %v1003, 7
      %v1005 = vsub.s32 0, %v1004
      %v1006 = vrot.slane %v325, %v1005
      %v1007 = vlaneseq
      %v1008 = vshrl.u32 %v1007, 7
      %v1009 = vsub.s32 1, %v1008
      %v1010 = vrot.slane %v325, %v1009
      %vm1011 = vcmp.eq.s32.totalorder %v336, %v942
      %vm1012 = vcmp.eq.s32.totalorder %v336, %v946
      %vm1013 = vcmp.eq.s32.totalorder %v336, %v950
      %vm1014 = vcmp.eq.s32.totalorder %v336, %v954
      %vm1015 = vcmp.eq.s32.totalorder %v336, %v958
      %vm1016 = vcmp.eq.s32.totalorder %v336, %v962
      %vm1017 = vcmp.eq.s32.totalorder %v336, %v966
      %vm1018 = vcmp.eq.s32.totalorder %v336, %v970
      %vm1019 = vcmp.eq.s32.totalorder %v336, %v974
      %vm1020 = vcmp.eq.s32.totalorder %v336, %v978
      %vm1021 = vcmp.eq.s32.totalorder %v336, %v982
      %vm1022 = vcmp.eq.s32.totalorder %v336, %v986
      %vm1023 = vcmp.eq.s32.totalorder %v336, %v990
      %vm1024 = vcmp.eq.s32.totalorder %v336, %v994
      %vm1025 = vcmp.eq.s32.totalorder %v336, %v998
      %vm1026 = vcmp.eq.s32.totalorder %v336, %v1002
      %vm1027 = vcmp.eq.s32.totalorder %v336, %v1006
      %vm1028 = vcmp.eq.s32.totalorder %v336, %v1010
      %vm1029 = vcmp.eq.s32.totalorder %v337, %v942
      %vm1030 = vcmp.eq.s32.totalorder %v337, %v946
      %vm1031 = vcmp.eq.s32.totalorder %v337, %v950
      %vm1032 = vcmp.eq.s32.totalorder %v337, %v954
      %vm1033 = vcmp.eq.s32.totalorder %v337, %v958
      %vm1034 = vcmp.eq.s32.totalorder %v337, %v962
      %vm1035 = vcmp.eq.s32.totalorder %v337, %v966
      %vm1036 = vcmp.eq.s32.totalorder %v337, %v970
      %vm1037 = vcmp.eq.s32.totalorder %v337, %v974
      %vm1038 = vcmp.eq.s32.totalorder %v337, %v978
      %vm1039 = vcmp.eq.s32.totalorder %v337, %v982
      %vm1040 = vcmp.eq.s32.totalorder %v337, %v986
      %vm1041 = vcmp.eq.s32.totalorder %v337, %v990
      %vm1042 = vcmp.eq.s32.totalorder %v337, %v994
      %vm1043 = vcmp.eq.s32.totalorder %v337, %v998
      %vm1044 = vcmp.eq.s32.totalorder %v337, %v1002
      %vm1045 = vcmp.eq.s32.totalorder %v337, %v1006
      %vm1046 = vcmp.eq.s32.totalorder %v337, %v1010
      %vm1047 = vcmp.eq.s32.totalorder %v338, %v942
      %vm1048 = vcmp.eq.s32.totalorder %v338, %v946
      %vm1049 = vcmp.eq.s32.totalorder %v338, %v950
      %vm1050 = vcmp.eq.s32.totalorder %v338, %v954
      %vm1051 = vcmp.eq.s32.totalorder %v338, %v958
      %vm1052 = vcmp.eq.s32.totalorder %v338, %v962
      %vm1053 = vcmp.eq.s32.totalorder %v338, %v966
      %vm1054 = vcmp.eq.s32.totalorder %v338, %v970
      %vm1055 = vcmp.eq.s32.totalorder %v338, %v974
      %vm1056 = vcmp.eq.s32.totalorder %v338, %v978
      %vm1057 = vcmp.eq.s32.totalorder %v338, %v982
      %vm1058 = vcmp.eq.s32.totalorder %v338, %v986
      %vm1059 = vcmp.eq.s32.totalorder %v338, %v990
      %vm1060 = vcmp.eq.s32.totalorder %v338, %v994
      %vm1061 = vcmp.eq.s32.totalorder %v338, %v998
      %vm1062 = vcmp.eq.s32.totalorder %v338, %v1002
      %vm1063 = vcmp.eq.s32.totalorder %v338, %v1006
      %vm1064 = vcmp.eq.s32.totalorder %v338, %v1010
      %v1068 = vlaneseq
      %v1069 = vshrl.u32 %v1068, 7
      %v1070 = vsub.s32 0, %v1069
      %v1071 = vrot.slane %v302, %v1070
      %v1072 = vlaneseq
      %v1073 = vshrl.u32 %v1072, 7
      %v1074 = vsub.s32 1, %v1073
      %v1075 = vrot.slane %v302, %v1074
      %v1076 = vlaneseq
      %v1077 = vshrl.u32 %v1076, 7
      %v1078 = vsub.s32 2, %v1077
      %v1079 = vrot.slane %v302, %v1078
      %v1080 = vlaneseq
      %v1081 = vshrl.u32 %v1080, 7
      %v1082 = vsub.s32 3, %v1081
      %v1083 = vrot.slane %v302, %v1082
      %v1084 = vlaneseq
      %v1085 = vshrl.u32 %v1084, 7
      %v1086 = vsub.s32 4, %v1085
      %v1087 = vrot.slane %v302, %v1086
      %v1088 = vlaneseq
      %v1089 = vshrl.u32 %v1088, 7
      %v1090 = vsub.s32 5, %v1089
      %v1091 = vrot.slane %v302, %v1090
      %v1092 = vlaneseq
      %v1093 = vshrl.u32 %v1092, 7
      %v1094 = vsub.s32 6, %v1093
      %v1095 = vrot.slane %v302, %v1094
      %v1096 = vlaneseq
      %v1097 = vshrl.u32 %v1096, 7
      %v1098 = vsub.s32 7, %v1097
      %v1099 = vrot.slane %v302, %v1098
      %v1100 = vlaneseq
      %v1101 = vshrl.u32 %v1100, 7
      %v1102 = vsub.s32 0, %v1101
      %v1103 = vrot.slane %v303, %v1102
      %v1104 = vlaneseq
      %v1105 = vshrl.u32 %v1104, 7
      %v1106 = vsub.s32 1, %v1105
      %v1107 = vrot.slane %v303, %v1106
      %v1108 = vlaneseq
      %v1109 = vshrl.u32 %v1108, 7
      %v1110 = vsub.s32 2, %v1109
      %v1111 = vrot.slane %v303, %v1110
      %v1112 = vlaneseq
      %v1113 = vshrl.u32 %v1112, 7
      %v1114 = vsub.s32 3, %v1113
      %v1115 = vrot.slane %v303, %v1114
      %v1116 = vlaneseq
      %v1117 = vshrl.u32 %v1116, 7
      %v1118 = vsub.s32 4, %v1117
      %v1119 = vrot.slane %v303, %v1118
      %v1120 = vlaneseq
      %v1121 = vshrl.u32 %v1120, 7
      %v1122 = vsub.s32 5, %v1121
      %v1123 = vrot.slane %v303, %v1122
      %v1124 = vlaneseq
      %v1125 = vshrl.u32 %v1124, 7
      %v1126 = vsub.s32 6, %v1125
      %v1127 = vrot.slane %v303, %v1126
      %v1128 = vlaneseq
      %v1129 = vshrl.u32 %v1128, 7
      %v1130 = vsub.s32 7, %v1129
      %v1131 = vrot.slane %v303, %v1130
      %v1132 = vlaneseq
      %v1133 = vshrl.u32 %v1132, 7
      %v1134 = vsub.s32 0, %v1133
      %v1135 = vrot.slane %v304, %v1134
      %v1136 = vlaneseq
      %v1137 = vshrl.u32 %v1136, 7
      %v1138 = vsub.s32 1, %v1137
      %v1139 = vrot.slane %v304, %v1138
      %v1158 = vsel %vm1011, %v1071, 0.0
      %v1159 = vsel %vm1012, %v1075, 0.0
      %v1160 = vsel %vm1013, %v1079, 0.0
      %v1161 = vsel %vm1014, %v1083, 0.0
      %v1162 = vsel %vm1015, %v1087, 0.0
      %v1163 = vsel %vm1016, %v1091, 0.0
      %v1164 = vsel %vm1017, %v1095, 0.0
      %v1165 = vsel %vm1018, %v1099, 0.0
      %v1166 = vsel %vm1019, %v1103, 0.0
      %v1167 = vsel %vm1020, %v1107, 0.0
      %v1168 = vsel %vm1021, %v1111, 0.0
      %v1169 = vsel %vm1022, %v1115, 0.0
      %v1170 = vsel %vm1023, %v1119, 0.0
      %v1171 = vsel %vm1024, %v1123, 0.0
      %v1172 = vsel %vm1025, %v1127, 0.0
      %v1173 = vsel %vm1026, %v1131, 0.0
      %v1174 = vsel %vm1027, %v1135, 0.0
      %v1175 = vsel %vm1028, %v1139, 0.0
      %v1176 = vsel %vm1029, %v1071, 0.0
      %v1177 = vsel %vm1030, %v1075, 0.0
      %v1178 = vsel %vm1031, %v1079, 0.0
      %v1179 = vsel %vm1032, %v1083, 0.0
      %v1180 = vsel %vm1033, %v1087, 0.0
      %v1181 = vsel %vm1034, %v1091, 0.0
      %v1182 = vsel %vm1035, %v1095, 0.0
      %v1183 = vsel %vm1036, %v1099, 0.0
      %v1184 = vsel %vm1037, %v1103, 0.0
      %v1185 = vsel %vm1038, %v1107, 0.0
      %v1186 = vsel %vm1039, %v1111, 0.0
      %v1187 = vsel %vm1040, %v1115, 0.0
      %v1188 = vsel %vm1041, %v1119, 0.0
      %v1189 = vsel %vm1042, %v1123, 0.0
      %v1190 = vsel %vm1043, %v1127, 0.0
      %v1191 = vsel %vm1044, %v1131, 0.0
      %v1192 = vsel %vm1045, %v1135, 0.0
      %v1193 = vsel %vm1046, %v1139, 0.0
      %v1194 = vsel %vm1047, %v1071, 0.0
      %v1195 = vsel %vm1048, %v1075, 0.0
      %v1196 = vsel %vm1049, %v1079, 0.0
      %v1197 = vsel %vm1050, %v1083, 0.0
      %v1198 = vsel %vm1051, %v1087, 0.0
      %v1199 = vsel %vm1052, %v1091, 0.0
      %v1200 = vsel %vm1053, %v1095, 0.0
      %v1201 = vsel %vm1054, %v1099, 0.0
      %v1202 = vsel %vm1055, %v1103, 0.0
      %v1203 = vsel %vm1056, %v1107, 0.0
      %v1204 = vsel %vm1057, %v1111, 0.0
      %v1205 = vsel %vm1058, %v1115, 0.0
      %v1206 = vsel %vm1059, %v1119, 0.0
      %v1207 = vsel %vm1060, %v1123, 0.0
      %v1208 = vsel %vm1061, %v1127, 0.0
      %v1209 = vsel %vm1062, %v1131, 0.0
      %v1210 = vsel %vm1063, %v1135, 0.0
      %v1211 = vsel %vm1064, %v1139, 0.0
      %v1212 = vlaneseq
      %v1213 = vshrl.u32 %v1212, 7
      %v1214 = vsub.s32 0, %v1213
      %v1215 = vrot.slane %v326, %v1214
      %v1216 = vlaneseq
      %v1217 = vshrl.u32 %v1216, 7
      %v1218 = vsub.s32 1, %v1217
      %v1219 = vrot.slane %v326, %v1218
      %v1220 = vlaneseq
      %v1221 = vshrl.u32 %v1220, 7
      %v1222 = vsub.s32 2, %v1221
      %v1223 = vrot.slane %v326, %v1222
      %v1224 = vlaneseq
      %v1225 = vshrl.u32 %v1224, 7
      %v1226 = vsub.s32 3, %v1225
      %v1227 = vrot.slane %v326, %v1226
      %v1228 = vlaneseq
      %v1229 = vshrl.u32 %v1228, 7
      %v1230 = vsub.s32 4, %v1229
      %v1231 = vrot.slane %v326, %v1230
      %v1232 = vlaneseq
      %v1233 = vshrl.u32 %v1232, 7
      %v1234 = vsub.s32 5, %v1233
      %v1235 = vrot.slane %v326, %v1234
      %v1236 = vlaneseq
      %v1237 = vshrl.u32 %v1236, 7
      %v1238 = vsub.s32 6, %v1237
      %v1239 = vrot.slane %v326, %v1238
      %v1240 = vlaneseq
      %v1241 = vshrl.u32 %v1240, 7
      %v1242 = vsub.s32 7, %v1241
      %v1243 = vrot.slane %v326, %v1242
      %v1244 = vlaneseq
      %v1245 = vshrl.u32 %v1244, 7
      %v1246 = vsub.s32 0, %v1245
      %v1247 = vrot.slane %v327, %v1246
      %v1248 = vlaneseq
      %v1249 = vshrl.u32 %v1248, 7
      %v1250 = vsub.s32 1, %v1249
      %v1251 = vrot.slane %v327, %v1250
      %v1252 = vlaneseq
      %v1253 = vshrl.u32 %v1252, 7
      %v1254 = vsub.s32 2, %v1253
      %v1255 = vrot.slane %v327, %v1254
      %v1256 = vlaneseq
      %v1257 = vshrl.u32 %v1256, 7
      %v1258 = vsub.s32 3, %v1257
      %v1259 = vrot.slane %v327, %v1258
      %v1260 = vlaneseq
      %v1261 = vshrl.u32 %v1260, 7
      %v1262 = vsub.s32 4, %v1261
      %v1263 = vrot.slane %v327, %v1262
      %v1264 = vlaneseq
      %v1265 = vshrl.u32 %v1264, 7
      %v1266 = vsub.s32 5, %v1265
      %v1267 = vrot.slane %v327, %v1266
      %v1268 = vlaneseq
      %v1269 = vshrl.u32 %v1268, 7
      %v1270 = vsub.s32 6, %v1269
      %v1271 = vrot.slane %v327, %v1270
      %v1272 = vlaneseq
      %v1273 = vshrl.u32 %v1272, 7
      %v1274 = vsub.s32 7, %v1273
      %v1275 = vrot.slane %v327, %v1274
      %v1276 = vlaneseq
      %v1277 = vshrl.u32 %v1276, 7
      %v1278 = vsub.s32 0, %v1277
      %v1279 = vrot.slane %v328, %v1278
      %v1280 = vlaneseq
      %v1281 = vshrl.u32 %v1280, 7
      %v1282 = vsub.s32 1, %v1281
      %v1283 = vrot.slane %v328, %v1282
      %vm1284 = vcmp.eq.s32.totalorder %v336, %v1215
      %vm1285 = vcmp.eq.s32.totalorder %v336, %v1219
      %vm1286 = vcmp.eq.s32.totalorder %v336, %v1223
      %vm1287 = vcmp.eq.s32.totalorder %v336, %v1227
      %vm1288 = vcmp.eq.s32.totalorder %v336, %v1231
      %vm1289 = vcmp.eq.s32.totalorder %v336, %v1235
      %vm1290 = vcmp.eq.s32.totalorder %v336, %v1239
      %vm1291 = vcmp.eq.s32.totalorder %v336, %v1243
      %vm1292 = vcmp.eq.s32.totalorder %v336, %v1247
      %vm1293 = vcmp.eq.s32.totalorder %v336, %v1251
      %vm1294 = vcmp.eq.s32.totalorder %v336, %v1255
      %vm1295 = vcmp.eq.s32.totalorder %v336, %v1259
      %vm1296 = vcmp.eq.s32.totalorder %v336, %v1263
      %vm1297 = vcmp.eq.s32.totalorder %v336, %v1267
      %vm1298 = vcmp.eq.s32.totalorder %v336, %v1271
      %vm1299 = vcmp.eq.s32.totalorder %v336, %v1275
      %vm1300 = vcmp.eq.s32.totalorder %v336, %v1279
      %vm1301 = vcmp.eq.s32.totalorder %v336, %v1283
      %vm1302 = vcmp.eq.s32.totalorder %v337, %v1215
      %vm1303 = vcmp.eq.s32.totalorder %v337, %v1219
      %vm1304 = vcmp.eq.s32.totalorder %v337, %v1223
      %vm1305 = vcmp.eq.s32.totalorder %v337, %v1227
      %vm1306 = vcmp.eq.s32.totalorder %v337, %v1231
      %vm1307 = vcmp.eq.s32.totalorder %v337, %v1235
      %vm1308 = vcmp.eq.s32.totalorder %v337, %v1239
      %vm1309 = vcmp.eq.s32.totalorder %v337, %v1243
      %vm1310 = vcmp.eq.s32.totalorder %v337, %v1247
      %vm1311 = vcmp.eq.s32.totalorder %v337, %v1251
      %vm1312 = vcmp.eq.s32.totalorder %v337, %v1255
      %vm1313 = vcmp.eq.s32.totalorder %v337, %v1259
      %vm1314 = vcmp.eq.s32.totalorder %v337, %v1263
      %vm1315 = vcmp.eq.s32.totalorder %v337, %v1267
      %vm1316 = vcmp.eq.s32.totalorder %v337, %v1271
      %vm1317 = vcmp.eq.s32.totalorder %v337, %v1275
      %vm1318 = vcmp.eq.s32.totalorder %v337, %v1279
      %vm1319 = vcmp.eq.s32.totalorder %v337, %v1283
      %vm1320 = vcmp.eq.s32.totalorder %v338, %v1215
      %vm1321 = vcmp.eq.s32.totalorder %v338, %v1219
      %vm1322 = vcmp.eq.s32.totalorder %v338, %v1223
      %vm1323 = vcmp.eq.s32.totalorder %v338, %v1227
      %vm1324 = vcmp.eq.s32.totalorder %v338, %v1231
      %vm1325 = vcmp.eq.s32.totalorder %v338, %v1235
      %vm1326 = vcmp.eq.s32.totalorder %v338, %v1239
      %vm1327 = vcmp.eq.s32.totalorder %v338, %v1243
      %vm1328 = vcmp.eq.s32.totalorder %v338, %v1247
      %vm1329 = vcmp.eq.s32.totalorder %v338, %v1251
      %vm1330 = vcmp.eq.s32.totalorder %v338, %v1255
      %vm1331 = vcmp.eq.s32.totalorder %v338, %v1259
      %vm1332 = vcmp.eq.s32.totalorder %v338, %v1263
      %vm1333 = vcmp.eq.s32.totalorder %v338, %v1267
      %vm1334 = vcmp.eq.s32.totalorder %v338, %v1271
      %vm1335 = vcmp.eq.s32.totalorder %v338, %v1275
      %vm1336 = vcmp.eq.s32.totalorder %v338, %v1279
      %vm1337 = vcmp.eq.s32.totalorder %v338, %v1283
      %v1341 = vlaneseq
      %v1342 = vshrl.u32 %v1341, 7
      %v1343 = vsub.s32 0, %v1342
      %v1344 = vrot.slane %v308, %v1343
      %v1345 = vlaneseq
      %v1346 = vshrl.u32 %v1345, 7
      %v1347 = vsub.s32 1, %v1346
      %v1348 = vrot.slane %v308, %v1347
      %v1349 = vlaneseq
      %v1350 = vshrl.u32 %v1349, 7
      %v1351 = vsub.s32 2, %v1350
      %v1352 = vrot.slane %v308, %v1351
      %v1353 = vlaneseq
      %v1354 = vshrl.u32 %v1353, 7
      %v1355 = vsub.s32 3, %v1354
      %v1356 = vrot.slane %v308, %v1355
      %v1357 = vlaneseq
      %v1358 = vshrl.u32 %v1357, 7
      %v1359 = vsub.s32 4, %v1358
      %v1360 = vrot.slane %v308, %v1359
      %v1361 = vlaneseq
      %v1362 = vshrl.u32 %v1361, 7
      %v1363 = vsub.s32 5, %v1362
      %v1364 = vrot.slane %v308, %v1363
      %v1365 = vlaneseq
      %v1366 = vshrl.u32 %v1365, 7
      %v1367 = vsub.s32 6, %v1366
      %v1368 = vrot.slane %v308, %v1367
      %v1369 = vlaneseq
      %v1370 = vshrl.u32 %v1369, 7
      %v1371 = vsub.s32 7, %v1370
      %v1372 = vrot.slane %v308, %v1371
      %v1373 = vlaneseq
      %v1374 = vshrl.u32 %v1373, 7
      %v1375 = vsub.s32 0, %v1374
      %v1376 = vrot.slane %v309, %v1375
      %v1377 = vlaneseq
      %v1378 = vshrl.u32 %v1377, 7
      %v1379 = vsub.s32 1, %v1378
      %v1380 = vrot.slane %v309, %v1379
      %v1381 = vlaneseq
      %v1382 = vshrl.u32 %v1381, 7
      %v1383 = vsub.s32 2, %v1382
      %v1384 = vrot.slane %v309, %v1383
      %v1385 = vlaneseq
      %v1386 = vshrl.u32 %v1385, 7
      %v1387 = vsub.s32 3, %v1386
      %v1388 = vrot.slane %v309, %v1387
      %v1389 = vlaneseq
      %v1390 = vshrl.u32 %v1389, 7
      %v1391 = vsub.s32 4, %v1390
      %v1392 = vrot.slane %v309, %v1391
      %v1393 = vlaneseq
      %v1394 = vshrl.u32 %v1393, 7
      %v1395 = vsub.s32 5, %v1394
      %v1396 = vrot.slane %v309, %v1395
      %v1397 = vlaneseq
      %v1398 = vshrl.u32 %v1397, 7
      %v1399 = vsub.s32 6, %v1398
      %v1400 = vrot.slane %v309, %v1399
      %v1401 = vlaneseq
      %v1402 = vshrl.u32 %v1401, 7
      %v1403 = vsub.s32 7, %v1402
      %v1404 = vrot.slane %v309, %v1403
      %v1405 = vlaneseq
      %v1406 = vshrl.u32 %v1405, 7
      %v1407 = vsub.s32 0, %v1406
      %v1408 = vrot.slane %v310, %v1407
      %v1409 = vlaneseq
      %v1410 = vshrl.u32 %v1409, 7
      %v1411 = vsub.s32 1, %v1410
      %v1412 = vrot.slane %v310, %v1411
      %v1431 = vsel %vm1284, %v1344, 0.0
      %v1432 = vsel %vm1285, %v1348, 0.0
      %v1433 = vsel %vm1286, %v1352, 0.0
      %v1434 = vsel %vm1287, %v1356, 0.0
      %v1435 = vsel %vm1288, %v1360, 0.0
      %v1436 = vsel %vm1289, %v1364, 0.0
      %v1437 = vsel %vm1290, %v1368, 0.0
      %v1438 = vsel %vm1291, %v1372, 0.0
      %v1439 = vsel %vm1292, %v1376, 0.0
      %v1440 = vsel %vm1293, %v1380, 0.0
      %v1441 = vsel %vm1294, %v1384, 0.0
      %v1442 = vsel %vm1295, %v1388, 0.0
      %v1443 = vsel %vm1296, %v1392, 0.0
      %v1444 = vsel %vm1297, %v1396, 0.0
      %v1445 = vsel %vm1298, %v1400, 0.0
      %v1446 = vsel %vm1299, %v1404, 0.0
      %v1447 = vsel %vm1300, %v1408, 0.0
      %v1448 = vsel %vm1301, %v1412, 0.0
      %v1449 = vsel %vm1302, %v1344, 0.0
      %v1450 = vsel %vm1303, %v1348, 0.0
      %v1451 = vsel %vm1304, %v1352, 0.0
      %v1452 = vsel %vm1305, %v1356, 0.0
      %v1453 = vsel %vm1306, %v1360, 0.0
      %v1454 = vsel %vm1307, %v1364, 0.0
      %v1455 = vsel %vm1308, %v1368, 0.0
      %v1456 = vsel %vm1309, %v1372, 0.0
      %v1457 = vsel %vm1310, %v1376, 0.0
      %v1458 = vsel %vm1311, %v1380, 0.0
      %v1459 = vsel %vm1312, %v1384, 0.0
      %v1460 = vsel %vm1313, %v1388, 0.0
      %v1461 = vsel %vm1314, %v1392, 0.0
      %v1462 = vsel %vm1315, %v1396, 0.0
      %v1463 = vsel %vm1316, %v1400, 0.0
      %v1464 = vsel %vm1317, %v1404, 0.0
      %v1465 = vsel %vm1318, %v1408, 0.0
      %v1466 = vsel %vm1319, %v1412, 0.0
      %v1467 = vsel %vm1320, %v1344, 0.0
      %v1468 = vsel %vm1321, %v1348, 0.0
      %v1469 = vsel %vm1322, %v1352, 0.0
      %v1470 = vsel %vm1323, %v1356, 0.0
      %v1471 = vsel %vm1324, %v1360, 0.0
      %v1472 = vsel %vm1325, %v1364, 0.0
      %v1473 = vsel %vm1326, %v1368, 0.0
      %v1474 = vsel %vm1327, %v1372, 0.0
      %v1475 = vsel %vm1328, %v1376, 0.0
      %v1476 = vsel %vm1329, %v1380, 0.0
      %v1477 = vsel %vm1330, %v1384, 0.0
      %v1478 = vsel %vm1331, %v1388, 0.0
      %v1479 = vsel %vm1332, %v1392, 0.0
      %v1480 = vsel %vm1333, %v1396, 0.0
      %v1481 = vsel %vm1334, %v1400, 0.0
      %v1482 = vsel %vm1335, %v1404, 0.0
      %v1483 = vsel %vm1336, %v1408, 0.0
      %v1484 = vsel %vm1337, %v1412, 0.0
      %v1485 = vadd.f32 %v1158, %v1431
      %v1486 = vadd.f32 %v1159, %v1432
      %v1487 = vadd.f32 %v1160, %v1433
      %v1488 = vadd.f32 %v1161, %v1434
      %v1489 = vadd.f32 %v1162, %v1435
      %v1490 = vadd.f32 %v1163, %v1436
      %v1491 = vadd.f32 %v1164, %v1437
      %v1492 = vadd.f32 %v1165, %v1438
      %v1493 = vadd.f32 %v1166, %v1439
      %v1494 = vadd.f32 %v1167, %v1440
      %v1495 = vadd.f32 %v1168, %v1441
      %v1496 = vadd.f32 %v1169, %v1442
      %v1497 = vadd.f32 %v1170, %v1443
      %v1498 = vadd.f32 %v1171, %v1444
      %v1499 = vadd.f32 %v1172, %v1445
      %v1500 = vadd.f32 %v1173, %v1446
      %v1501 = vadd.f32 %v1174, %v1447
      %v1502 = vadd.f32 %v1175, %v1448
      %v1503 = vadd.f32 %v1176, %v1449
      %v1504 = vadd.f32 %v1177, %v1450
      %v1505 = vadd.f32 %v1178, %v1451
      %v1506 = vadd.f32 %v1179, %v1452
      %v1507 = vadd.f32 %v1180, %v1453
      %v1508 = vadd.f32 %v1181, %v1454
      %v1509 = vadd.f32 %v1182, %v1455
      %v1510 = vadd.f32 %v1183, %v1456
      %v1511 = vadd.f32 %v1184, %v1457
      %v1512 = vadd.f32 %v1185, %v1458
      %v1513 = vadd.f32 %v1186, %v1459
      %v1514 = vadd.f32 %v1187, %v1460
      %v1515 = vadd.f32 %v1188, %v1461
      %v1516 = vadd.f32 %v1189, %v1462
      %v1517 = vadd.f32 %v1190, %v1463
      %v1518 = vadd.f32 %v1191, %v1464
      %v1519 = vadd.f32 %v1192, %v1465
      %v1520 = vadd.f32 %v1193, %v1466
      %v1521 = vadd.f32 %v1194, %v1467
      %v1522 = vadd.f32 %v1195, %v1468
      %v1523 = vadd.f32 %v1196, %v1469
      %v1524 = vadd.f32 %v1197, %v1470
      %v1525 = vadd.f32 %v1198, %v1471
      %v1526 = vadd.f32 %v1199, %v1472
      %v1527 = vadd.f32 %v1200, %v1473
      %v1528 = vadd.f32 %v1201, %v1474
      %v1529 = vadd.f32 %v1202, %v1475
      %v1530 = vadd.f32 %v1203, %v1476
      %v1531 = vadd.f32 %v1204, %v1477
      %v1532 = vadd.f32 %v1205, %v1478
      %v1533 = vadd.f32 %v1206, %v1479
      %v1534 = vadd.f32 %v1207, %v1480
      %v1535 = vadd.f32 %v1208, %v1481
      %v1536 = vadd.f32 %v1209, %v1482
      %v1537 = vadd.f32 %v1210, %v1483
      %v1538 = vadd.f32 %v1211, %v1484
      %vm1539 = vcmask 146432
      %v1541 = vsel %vm1539, %v228, 0
      %v1544 = vsel %vm1539, %v229, 0
      %v1547 = vsel %vm1539, %v230, 0
      %v1550 = vsel %vm1539, %v231, 0
      %v1553 = vsel %vm1539, %v232, 0
      %v1556 = vsel %vm1539, %v233, 0
      %v1559 = vsel %vm1539, %v234, 0
      %v1562 = vsel %vm1539, %v235, 0
      %v1565 = vsel %vm1539, %v236, 0
      %v1568 = vsel %vm1539, %v237, 0
      %v1571 = vsel %vm1539, %v238, 0
      %v1574 = vsel %vm1539, %v239, 0
      %vm1576 = vcmask 1041408
      %v1578 = vsel %vm1576, %v921, 0
      %v1581 = vsel %vm1576, %v922, 0
      %v1584 = vsel %vm1576, %v923, 0
      %v1587 = vsel %vm1576, %v924, 0
      %v1590 = vsel %vm1576, %v925, 0
      %v1593 = vsel %vm1576, %v926, 0
      %v1596 = vsel %vm1576, %v927, 0
      %v1599 = vsel %vm1576, %v928, 0
      %v1602 = vsel %vm1576, %v929, 0
      %v1605 = vsel %vm1576, %v930, 0
      %v1608 = vsel %vm1576, %v931, 0
      %v1611 = vsel %vm1576, %v932, 0
      %v1614 = vsel %vm1576, %v933, 0
      %v1617 = vsel %vm1576, %v934, 0
      %v1620 = vsel %vm1576, %v935, 0
      %v1623 = vsel %vm1576, %v936, 0
      %v1626 = vsel %vm1576, %v937, 0
      %v1629 = vsel %vm1576, %v938, 0
      %1631 = vmatprep.subr.mxu0 0.0
      %1632 = vmatpush1.msra.mxu0 0.0
      %1633 = vmatprep.subr.mxu0 0.0
      %1634 = vmatpush1.msra.mxu0 0.0
      %1635 = vmatprep.subr.mxu0 0.0
      %1636 = vmatpush1.msra.mxu0 0.0
      %1637 = vmatprep.subr.mxu0 0.0
      %1638 = vmatpush1.msra.mxu0 0.0
      %1639 = vmatprep.subr.mxu0 0.0
      %1640 = vmatpush1.msra.mxu0 0.0
      %1641 = vmatprep.subr.mxu0 0.0
      %1642 = vmatpush1.msra.mxu0 0.0
      %1643 = vmatprep.subr.mxu0 0.0
      %1644 = vmatpush1.msra.mxu0 0.0
      %1645 = vmatprep.subr.mxu0 0.0
      %1646 = vmatpush1.msra.mxu0 0.0
      %1647 = vmatprep.subr.mxu0 0.0
      %1648 = vmatpush1.msra.mxu0 0.0
      %1649 = vmatprep.subr.mxu0 0.0
      %1650 = vmatpush1.msra.mxu0 0.0
      %1651 = vmatprep.subr.mxu0 0.0
      %1652 = vmatpush1.msra.mxu0 0.0
      %1653 = vmatprep.subr.mxu0 0.0
      %1654 = vmatpush1.msra.mxu0 0.0
      %1655 = vmatprep.subr.mxu0 0.0
      %1656 = vmatpush1.msra.mxu0 0.0
      %1657 = vmatprep.subr.mxu0 %v1581
      %1658 = vmatpush1.msra.mxu0 %v1578
      %1659 = vmatprep.subr.mxu0 %v904
      %1660 = vmatpush1.msra.mxu0 %v903
      %1661 = vmatprep.subr.mxu0 %v886
      %1662 = vmatpush1.msra.mxu0 %v885
      %1663 = vmatprep.subr.mxu0 0.0
      %1664 = vmatpush2.msra.mxu0 0.0
      %1665 = vmatprep.subr.mxu0 0.0
      %1666 = vmatpush2.msra.mxu0 0.0
      %1667 = vmatprep.subr.mxu0 0.0
      %1668 = vmatpush2.msra.mxu0 0.0
      %1669 = vmatprep.subr.mxu0 0.0
      %1670 = vmatpush2.msra.mxu0 0.0
      %1671 = vmatprep.subr.mxu0 0.0
      %1672 = vmatpush2.msra.mxu0 0.0
      %1673 = vmatprep.subr.mxu0 0.0
      %1674 = vmatpush2.msra.mxu0 0.0
      %1675 = vmatprep.subr.mxu0 0.0
      %1676 = vmatpush2.msra.mxu0 0.0
      %1677 = vmatprep.subr.mxu0 0.0
      %1678 = vmatpush2.msra.mxu0 0.0
      %1679 = vmatprep.subr.mxu0 0.0
      %1680 = vmatpush2.msra.mxu0 0.0
      %1681 = vmatprep.subr.mxu0 0.0
      %1682 = vmatpush2.msra.mxu0 0.0
      %1683 = vmatprep.subr.mxu0 0.0
      %1684 = vmatpush2.msra.mxu0 0.0
      %1685 = vmatprep.subr.mxu0 0.0
      %1686 = vmatpush2.msra.mxu0 0.0
      %1687 = vmatprep.subr.mxu0 0.0
      %1688 = vmatpush2.msra.mxu0 0.0
      %1689 = vmatprep.subr.mxu0 0.0
      %1690 = vmatpush2.msra.mxu0 0.0
      %1691 = vmatprep.subr.mxu0 0.0
      %1692 = vmatpush2.msra.mxu0 0.0
      %1693 = vmatprep.subr.mxu0 0.0
      %1694 = vmatpush2.msra.mxu0 0.0
      %1695 = vmatprep.mubr.f32.mxu0 0.0
      %1696 = vmatmul.mubr.f32.gmra.mxu0 %v1541
      %v1697 = vpop.f32.mrf.mxu0
      %v1698 = vadd.f32 0.0, %v1697
      %v1699 = vpop.f32.mrf.mxu0
      %v1700 = vadd.f32 0.0, %v1699
      %1701 = vmatprep.mubr.f32.mxu0 0.0
      %1702 = vmatmul.mubr.f32.gmra.mxu0 %v1544
      %v1703 = vpop.f32.mrf.mxu0
      %v1704 = vadd.f32 0.0, %v1703
      %v1705 = vpop.f32.mrf.mxu0
      %v1706 = vadd.f32 0.0, %v1705
      %1707 = vmatprep.mubr.f32.mxu0 0.0
      %1708 = vmatmul.mubr.f32.gmra.mxu0 %v1547
      %v1709 = vpop.f32.mrf.mxu0
      %v1710 = vadd.f32 0.0, %v1709
      %v1711 = vpop.f32.mrf.mxu0
      %v1712 = vadd.f32 0.0, %v1711
      %1713 = vmatprep.mubr.f32.mxu0 0.0
      %1714 = vmatmul.mubr.f32.gmra.mxu0 %v1550
      %v1715 = vpop.f32.mrf.mxu0
      %v1716 = vadd.f32 0.0, %v1715
      %v1717 = vpop.f32.mrf.mxu0
      %v1718 = vadd.f32 0.0, %v1717
      %1719 = vmatprep.mubr.f32.mxu0 0.0
      %1720 = vmatmul.mubr.f32.gmra.mxu0 %v1553
      %v1721 = vpop.f32.mrf.mxu0
      %v1722 = vadd.f32 0.0, %v1721
      %v1723 = vpop.f32.mrf.mxu0
      %v1724 = vadd.f32 0.0, %v1723
      %1725 = vmatprep.mubr.f32.mxu0 0.0
      %1726 = vmatmul.mubr.f32.gmra.mxu0 %v1556
      %v1727 = vpop.f32.mrf.mxu0
      %v1728 = vadd.f32 0.0, %v1727
      %v1729 = vpop.f32.mrf.mxu0
      %v1730 = vadd.f32 0.0, %v1729
      %1731 = vmatprep.mubr.f32.mxu0 0.0
      %1732 = vmatmul.mubr.f32.gmra.mxu0 %v1559
      %v1733 = vpop.f32.mrf.mxu0
      %v1734 = vadd.f32 0.0, %v1733
      %v1735 = vpop.f32.mrf.mxu0
      %v1736 = vadd.f32 0.0, %v1735
      %1737 = vmatprep.mubr.f32.mxu0 0.0
      %1738 = vmatmul.mubr.f32.gmra.mxu0 %v1562
      %v1739 = vpop.f32.mrf.mxu0
      %v1740 = vadd.f32 0.0, %v1739
      %v1741 = vpop.f32.mrf.mxu0
      %v1742 = vadd.f32 0.0, %v1741
      %1743 = vmatprep.mubr.f32.mxu0 0.0
      %1744 = vmatmul.mubr.f32.gmra.mxu0 %v1565
      %v1745 = vpop.f32.mrf.mxu0
      %v1746 = vadd.f32 0.0, %v1745
      %v1747 = vpop.f32.mrf.mxu0
      %v1748 = vadd.f32 0.0, %v1747
      %1749 = vmatprep.mubr.f32.mxu0 0.0
      %1750 = vmatmul.mubr.f32.gmra.mxu0 %v1568
      %v1751 = vpop.f32.mrf.mxu0
      %v1752 = vadd.f32 0.0, %v1751
      %v1753 = vpop.f32.mrf.mxu0
      %v1754 = vadd.f32 0.0, %v1753
      %1755 = vmatprep.mubr.f32.mxu0 0.0
      %1756 = vmatmul.mubr.f32.gmra.mxu0 %v1571
      %v1757 = vpop.f32.mrf.mxu0
      %v1758 = vadd.f32 0.0, %v1757
      %v1759 = vpop.f32.mrf.mxu0
      %v1760 = vadd.f32 0.0, %v1759
      %1761 = vmatprep.mubr.f32.mxu0 0.0
      %1762 = vmatmul.mubr.f32.gmra.mxu0 %v1574
      %v1763 = vpop.f32.mrf.mxu0
      %v1764 = vadd.f32 0.0, %v1763
      %v1765 = vpop.f32.mrf.mxu0
      %v1766 = vadd.f32 0.0, %v1765
      %1767 = vdwg.mxu0
      %1768 = vmatprep.subr.mxu0 0.0
      %1769 = vmatpush1.msra.mxu0 0.0
      %1770 = vmatprep.subr.mxu0 0.0
      %1771 = vmatpush1.msra.mxu0 0.0
      %1772 = vmatprep.subr.mxu0 0.0
      %1773 = vmatpush1.msra.mxu0 0.0
      %1774 = vmatprep.subr.mxu0 0.0
      %1775 = vmatpush1.msra.mxu0 0.0
      %1776 = vmatprep.subr.mxu0 0.0
      %1777 = vmatpush1.msra.mxu0 0.0
      %1778 = vmatprep.subr.mxu0 0.0
      %1779 = vmatpush1.msra.mxu0 0.0
      %1780 = vmatprep.subr.mxu0 0.0
      %1781 = vmatpush1.msra.mxu0 0.0
      %1782 = vmatprep.subr.mxu0 0.0
      %1783 = vmatpush1.msra.mxu0 0.0
      %1784 = vmatprep.subr.mxu0 0.0
      %1785 = vmatpush1.msra.mxu0 0.0
      %1786 = vmatprep.subr.mxu0 0.0
      %1787 = vmatpush1.msra.mxu0 0.0
      %1788 = vmatprep.subr.mxu0 0.0
      %1789 = vmatpush1.msra.mxu0 0.0
      %1790 = vmatprep.subr.mxu0 0.0
      %1791 = vmatpush1.msra.mxu0 0.0
      %1792 = vmatprep.subr.mxu0 0.0
      %1793 = vmatpush1.msra.mxu0 0.0
      %1794 = vmatprep.subr.mxu0 %v1587
      %1795 = vmatpush1.msra.mxu0 %v1584
      %1796 = vmatprep.subr.mxu0 %v906
      %1797 = vmatpush1.msra.mxu0 %v905
      %1798 = vmatprep.subr.mxu0 %v888
      %1799 = vmatpush1.msra.mxu0 %v887
      %1800 = vmatprep.subr.mxu0 0.0
      %1801 = vmatpush2.msra.mxu0 0.0
      %1802 = vmatprep.subr.mxu0 0.0
      %1803 = vmatpush2.msra.mxu0 0.0
      %1804 = vmatprep.subr.mxu0 0.0
      %1805 = vmatpush2.msra.mxu0 0.0
      %1806 = vmatprep.subr.mxu0 0.0
      %1807 = vmatpush2.msra.mxu0 0.0
      %1808 = vmatprep.subr.mxu0 0.0
      %1809 = vmatpush2.msra.mxu0 0.0
      %1810 = vmatprep.subr.mxu0 0.0
      %1811 = vmatpush2.msra.mxu0 0.0
      %1812 = vmatprep.subr.mxu0 0.0
      %1813 = vmatpush2.msra.mxu0 0.0
      %1814 = vmatprep.subr.mxu0 0.0
      %1815 = vmatpush2.msra.mxu0 0.0
      %1816 = vmatprep.subr.mxu0 0.0
      %1817 = vmatpush2.msra.mxu0 0.0
      %1818 = vmatprep.subr.mxu0 0.0
      %1819 = vmatpush2.msra.mxu0 0.0
      %1820 = vmatprep.subr.mxu0 0.0
      %1821 = vmatpush2.msra.mxu0 0.0
      %1822 = vmatprep.subr.mxu0 0.0
      %1823 = vmatpush2.msra.mxu0 0.0
      %1824 = vmatprep.subr.mxu0 0.0
      %1825 = vmatpush2.msra.mxu0 0.0
      %1826 = vmatprep.subr.mxu0 0.0
      %1827 = vmatpush2.msra.mxu0 0.0
      %1828 = vmatprep.subr.mxu0 0.0
      %1829 = vmatpush2.msra.mxu0 0.0
      %1830 = vmatprep.subr.mxu0 0.0
      %1831 = vmatpush2.msra.mxu0 0.0
      %1832 = vmatprep.mubr.f32.mxu0 0.0
      %1833 = vmatmul.mubr.f32.gmra.mxu0 %v1541
      %v1834 = vpop.f32.mrf.mxu0
      %v1835 = vadd.f32 0.0, %v1834
      %v1836 = vpop.f32.mrf.mxu0
      %v1837 = vadd.f32 0.0, %v1836
      %1838 = vmatprep.mubr.f32.mxu0 0.0
      %1839 = vmatmul.mubr.f32.gmra.mxu0 %v1544
      %v1840 = vpop.f32.mrf.mxu0
      %v1841 = vadd.f32 0.0, %v1840
      %v1842 = vpop.f32.mrf.mxu0
      %v1843 = vadd.f32 0.0, %v1842
      %1844 = vmatprep.mubr.f32.mxu0 0.0
      %1845 = vmatmul.mubr.f32.gmra.mxu0 %v1547
      %v1846 = vpop.f32.mrf.mxu0
      %v1847 = vadd.f32 0.0, %v1846
      %v1848 = vpop.f32.mrf.mxu0
      %v1849 = vadd.f32 0.0, %v1848
      %1850 = vmatprep.mubr.f32.mxu0 0.0
      %1851 = vmatmul.mubr.f32.gmra.mxu0 %v1550
      %v1852 = vpop.f32.mrf.mxu0
      %v1853 = vadd.f32 0.0, %v1852
      %v1854 = vpop.f32.mrf.mxu0
      %v1855 = vadd.f32 0.0, %v1854
      %1856 = vmatprep.mubr.f32.mxu0 0.0
      %1857 = vmatmul.mubr.f32.gmra.mxu0 %v1553
      %v1858 = vpop.f32.mrf.mxu0
      %v1859 = vadd.f32 0.0, %v1858
      %v1860 = vpop.f32.mrf.mxu0
      %v1861 = vadd.f32 0.0, %v1860
      %1862 = vmatprep.mubr.f32.mxu0 0.0
      %1863 = vmatmul.mubr.f32.gmra.mxu0 %v1556
      %v1864 = vpop.f32.mrf.mxu0
      %v1865 = vadd.f32 0.0, %v1864
      %v1866 = vpop.f32.mrf.mxu0
      %v1867 = vadd.f32 0.0, %v1866
      %1868 = vmatprep.mubr.f32.mxu0 0.0
      %1869 = vmatmul.mubr.f32.gmra.mxu0 %v1559
      %v1870 = vpop.f32.mrf.mxu0
      %v1871 = vadd.f32 0.0, %v1870
      %v1872 = vpop.f32.mrf.mxu0
      %v1873 = vadd.f32 0.0, %v1872
      %1874 = vmatprep.mubr.f32.mxu0 0.0
      %1875 = vmatmul.mubr.f32.gmra.mxu0 %v1562
      %v1876 = vpop.f32.mrf.mxu0
      %v1877 = vadd.f32 0.0, %v1876
      %v1878 = vpop.f32.mrf.mxu0
      %v1879 = vadd.f32 0.0, %v1878
      %1880 = vmatprep.mubr.f32.mxu0 0.0
      %1881 = vmatmul.mubr.f32.gmra.mxu0 %v1565
      %v1882 = vpop.f32.mrf.mxu0
      %v1883 = vadd.f32 0.0, %v1882
      %v1884 = vpop.f32.mrf.mxu0
      %v1885 = vadd.f32 0.0, %v1884
      %1886 = vmatprep.mubr.f32.mxu0 0.0
      %1887 = vmatmul.mubr.f32.gmra.mxu0 %v1568
      %v1888 = vpop.f32.mrf.mxu0
      %v1889 = vadd.f32 0.0, %v1888
      %v1890 = vpop.f32.mrf.mxu0
      %v1891 = vadd.f32 0.0, %v1890
      %1892 = vmatprep.mubr.f32.mxu0 0.0
      %1893 = vmatmul.mubr.f32.gmra.mxu0 %v1571
      %v1894 = vpop.f32.mrf.mxu0
      %v1895 = vadd.f32 0.0, %v1894
      %v1896 = vpop.f32.mrf.mxu0
      %v1897 = vadd.f32 0.0, %v1896
      %1898 = vmatprep.mubr.f32.mxu0 0.0
      %1899 = vmatmul.mubr.f32.gmra.mxu0 %v1574
      %v1900 = vpop.f32.mrf.mxu0
      %v1901 = vadd.f32 0.0, %v1900
      %v1902 = vpop.f32.mrf.mxu0
      %v1903 = vadd.f32 0.0, %v1902
      %1904 = vdwg.mxu0
      %1905 = vmatprep.subr.mxu0 0.0
      %1906 = vmatpush1.msra.mxu0 0.0
      %1907 = vmatprep.subr.mxu0 0.0
      %1908 = vmatpush1.msra.mxu0 0.0
      %1909 = vmatprep.subr.mxu0 0.0
      %1910 = vmatpush1.msra.mxu0 0.0
      %1911 = vmatprep.subr.mxu0 0.0
      %1912 = vmatpush1.msra.mxu0 0.0
      %1913 = vmatprep.subr.mxu0 0.0
      %1914 = vmatpush1.msra.mxu0 0.0
      %1915 = vmatprep.subr.mxu0 0.0
      %1916 = vmatpush1.msra.mxu0 0.0
      %1917 = vmatprep.subr.mxu0 0.0
      %1918 = vmatpush1.msra.mxu0 0.0
      %1919 = vmatprep.subr.mxu0 0.0
      %1920 = vmatpush1.msra.mxu0 0.0
      %1921 = vmatprep.subr.mxu0 0.0
      %1922 = vmatpush1.msra.mxu0 0.0
      %1923 = vmatprep.subr.mxu0 0.0
      %1924 = vmatpush1.msra.mxu0 0.0
      %1925 = vmatprep.subr.mxu0 0.0
      %1926 = vmatpush1.msra.mxu0 0.0
      %1927 = vmatprep.subr.mxu0 0.0
      %1928 = vmatpush1.msra.mxu0 0.0
      %1929 = vmatprep.subr.mxu0 0.0
      %1930 = vmatpush1.msra.mxu0 0.0
      %1931 = vmatprep.subr.mxu0 %v1593
      %1932 = vmatpush1.msra.mxu0 %v1590
      %1933 = vmatprep.subr.mxu0 %v908
      %1934 = vmatpush1.msra.mxu0 %v907
      %1935 = vmatprep.subr.mxu0 %v890
      %1936 = vmatpush1.msra.mxu0 %v889
      %1937 = vmatprep.subr.mxu0 0.0
      %1938 = vmatpush2.msra.mxu0 0.0
      %1939 = vmatprep.subr.mxu0 0.0
      %1940 = vmatpush2.msra.mxu0 0.0
      %1941 = vmatprep.subr.mxu0 0.0
      %1942 = vmatpush2.msra.mxu0 0.0
      %1943 = vmatprep.subr.mxu0 0.0
      %1944 = vmatpush2.msra.mxu0 0.0
      %1945 = vmatprep.subr.mxu0 0.0
      %1946 = vmatpush2.msra.mxu0 0.0
      %1947 = vmatprep.subr.mxu0 0.0
      %1948 = vmatpush2.msra.mxu0 0.0
      %1949 = vmatprep.subr.mxu0 0.0
      %1950 = vmatpush2.msra.mxu0 0.0
      %1951 = vmatprep.subr.mxu0 0.0
      %1952 = vmatpush2.msra.mxu0 0.0
      %1953 = vmatprep.subr.mxu0 0.0
      %1954 = vmatpush2.msra.mxu0 0.0
      %1955 = vmatprep.subr.mxu0 0.0
      %1956 = vmatpush2.msra.mxu0 0.0
      %1957 = vmatprep.subr.mxu0 0.0
      %1958 = vmatpush2.msra.mxu0 0.0
      %1959 = vmatprep.subr.mxu0 0.0
      %1960 = vmatpush2.msra.mxu0 0.0
      %1961 = vmatprep.subr.mxu0 0.0
      %1962 = vmatpush2.msra.mxu0 0.0
      %1963 = vmatprep.subr.mxu0 0.0
      %1964 = vmatpush2.msra.mxu0 0.0
      %1965 = vmatprep.subr.mxu0 0.0
      %1966 = vmatpush2.msra.mxu0 0.0
      %1967 = vmatprep.subr.mxu0 0.0
      %1968 = vmatpush2.msra.mxu0 0.0
      %1969 = vmatprep.mubr.f32.mxu0 0.0
      %1970 = vmatmul.mubr.f32.gmra.mxu0 %v1541
      %v1971 = vpop.f32.mrf.mxu0
      %v1972 = vadd.f32 0.0, %v1971
      %v1973 = vpop.f32.mrf.mxu0
      %v1974 = vadd.f32 0.0, %v1973
      %1975 = vmatprep.mubr.f32.mxu0 0.0
      %1976 = vmatmul.mubr.f32.gmra.mxu0 %v1544
      %v1977 = vpop.f32.mrf.mxu0
      %v1978 = vadd.f32 0.0, %v1977
      %v1979 = vpop.f32.mrf.mxu0
      %v1980 = vadd.f32 0.0, %v1979
      %1981 = vmatprep.mubr.f32.mxu0 0.0
      %1982 = vmatmul.mubr.f32.gmra.mxu0 %v1547
      %v1983 = vpop.f32.mrf.mxu0
      %v1984 = vadd.f32 0.0, %v1983
      %v1985 = vpop.f32.mrf.mxu0
      %v1986 = vadd.f32 0.0, %v1985
      %1987 = vmatprep.mubr.f32.mxu0 0.0
      %1988 = vmatmul.mubr.f32.gmra.mxu0 %v1550
      %v1989 = vpop.f32.mrf.mxu0
      %v1990 = vadd.f32 0.0, %v1989
      %v1991 = vpop.f32.mrf.mxu0
      %v1992 = vadd.f32 0.0, %v1991
      %1993 = vmatprep.mubr.f32.mxu0 0.0
      %1994 = vmatmul.mubr.f32.gmra.mxu0 %v1553
      %v1995 = vpop.f32.mrf.mxu0
      %v1996 = vadd.f32 0.0, %v1995
      %v1997 = vpop.f32.mrf.mxu0
      %v1998 = vadd.f32 0.0, %v1997
      %1999 = vmatprep.mubr.f32.mxu0 0.0
      %2000 = vmatmul.mubr.f32.gmra.mxu0 %v1556
      %v2001 = vpop.f32.mrf.mxu0
      %v2002 = vadd.f32 0.0, %v2001
      %v2003 = vpop.f32.mrf.mxu0
      %v2004 = vadd.f32 0.0, %v2003
      %2005 = vmatprep.mubr.f32.mxu0 0.0
      %2006 = vmatmul.mubr.f32.gmra.mxu0 %v1559
      %v2007 = vpop.f32.mrf.mxu0
      %v2008 = vadd.f32 0.0, %v2007
      %v2009 = vpop.f32.mrf.mxu0
      %v2010 = vadd.f32 0.0, %v2009
      %2011 = vmatprep.mubr.f32.mxu0 0.0
      %2012 = vmatmul.mubr.f32.gmra.mxu0 %v1562
      %v2013 = vpop.f32.mrf.mxu0
      %v2014 = vadd.f32 0.0, %v2013
      %v2015 = vpop.f32.mrf.mxu0
      %v2016 = vadd.f32 0.0, %v2015
      %2017 = vmatprep.mubr.f32.mxu0 0.0
      %2018 = vmatmul.mubr.f32.gmra.mxu0 %v1565
      %v2019 = vpop.f32.mrf.mxu0
      %v2020 = vadd.f32 0.0, %v2019
      %v2021 = vpop.f32.mrf.mxu0
      %v2022 = vadd.f32 0.0, %v2021
      %2023 = vmatprep.mubr.f32.mxu0 0.0
      %2024 = vmatmul.mubr.f32.gmra.mxu0 %v1568
      %v2025 = vpop.f32.mrf.mxu0
      %v2026 = vadd.f32 0.0, %v2025
      %v2027 = vpop.f32.mrf.mxu0
      %v2028 = vadd.f32 0.0, %v2027
      %2029 = vmatprep.mubr.f32.mxu0 0.0
      %2030 = vmatmul.mubr.f32.gmra.mxu0 %v1571
      %v2031 = vpop.f32.mrf.mxu0
      %v2032 = vadd.f32 0.0, %v2031
      %v2033 = vpop.f32.mrf.mxu0
      %v2034 = vadd.f32 0.0, %v2033
      %2035 = vmatprep.mubr.f32.mxu0 0.0
      %2036 = vmatmul.mubr.f32.gmra.mxu0 %v1574
      %v2037 = vpop.f32.mrf.mxu0
      %v2038 = vadd.f32 0.0, %v2037
      %v2039 = vpop.f32.mrf.mxu0
      %v2040 = vadd.f32 0.0, %v2039
      %2041 = vdwg.mxu0
      %2042 = vmatprep.subr.mxu0 0.0
      %2043 = vmatpush1.msra.mxu0 0.0
      %2044 = vmatprep.subr.mxu0 0.0
      %2045 = vmatpush1.msra.mxu0 0.0
      %2046 = vmatprep.subr.mxu0 0.0
      %2047 = vmatpush1.msra.mxu0 0.0
      %2048 = vmatprep.subr.mxu0 0.0
      %2049 = vmatpush1.msra.mxu0 0.0
      %2050 = vmatprep.subr.mxu0 0.0
      %2051 = vmatpush1.msra.mxu0 0.0
      %2052 = vmatprep.subr.mxu0 0.0
      %2053 = vmatpush1.msra.mxu0 0.0
      %2054 = vmatprep.subr.mxu0 0.0
      %2055 = vmatpush1.msra.mxu0 0.0
      %2056 = vmatprep.subr.mxu0 0.0
      %2057 = vmatpush1.msra.mxu0 0.0
      %2058 = vmatprep.subr.mxu0 0.0
      %2059 = vmatpush1.msra.mxu0 0.0
      %2060 = vmatprep.subr.mxu0 0.0
      %2061 = vmatpush1.msra.mxu0 0.0
      %2062 = vmatprep.subr.mxu0 0.0
      %2063 = vmatpush1.msra.mxu0 0.0
      %2064 = vmatprep.subr.mxu0 0.0
      %2065 = vmatpush1.msra.mxu0 0.0
      %2066 = vmatprep.subr.mxu0 0.0
      %2067 = vmatpush1.msra.mxu0 0.0
      %2068 = vmatprep.subr.mxu0 %v1599
      %2069 = vmatpush1.msra.mxu0 %v1596
      %2070 = vmatprep.subr.mxu0 %v910
      %2071 = vmatpush1.msra.mxu0 %v909
      %2072 = vmatprep.subr.mxu0 %v892
      %2073 = vmatpush1.msra.mxu0 %v891
      %2074 = vmatprep.subr.mxu0 0.0
      %2075 = vmatpush2.msra.mxu0 0.0
      %2076 = vmatprep.subr.mxu0 0.0
      %2077 = vmatpush2.msra.mxu0 0.0
      %2078 = vmatprep.subr.mxu0 0.0
      %2079 = vmatpush2.msra.mxu0 0.0
      %2080 = vmatprep.subr.mxu0 0.0
      %2081 = vmatpush2.msra.mxu0 0.0
      %2082 = vmatprep.subr.mxu0 0.0
      %2083 = vmatpush2.msra.mxu0 0.0
      %2084 = vmatprep.subr.mxu0 0.0
      %2085 = vmatpush2.msra.mxu0 0.0
      %2086 = vmatprep.subr.mxu0 0.0
      %2087 = vmatpush2.msra.mxu0 0.0
      %2088 = vmatprep.subr.mxu0 0.0
      %2089 = vmatpush2.msra.mxu0 0.0
      %2090 = vmatprep.subr.mxu0 0.0
      %2091 = vmatpush2.msra.mxu0 0.0
      %2092 = vmatprep.subr.mxu0 0.0
      %2093 = vmatpush2.msra.mxu0 0.0
      %2094 = vmatprep.subr.mxu0 0.0
      %2095 = vmatpush2.msra.mxu0 0.0
      %2096 = vmatprep.subr.mxu0 0.0
      %2097 = vmatpush2.msra.mxu0 0.0
      %2098 = vmatprep.subr.mxu0 0.0
      %2099 = vmatpush2.msra.mxu0 0.0
      %2100 = vmatprep.subr.mxu0 0.0
      %2101 = vmatpush2.msra.mxu0 0.0
      %2102 = vmatprep.subr.mxu0 0.0
      %2103 = vmatpush2.msra.mxu0 0.0
      %2104 = vmatprep.subr.mxu0 0.0
      %2105 = vmatpush2.msra.mxu0 0.0
      %2106 = vmatprep.mubr.f32.mxu0 0.0
      %2107 = vmatmul.mubr.f32.gmra.mxu0 %v1541
      %v2108 = vpop.f32.mrf.mxu0
      %v2109 = vadd.f32 0.0, %v2108
      %v2110 = vpop.f32.mrf.mxu0
      %v2111 = vadd.f32 0.0, %v2110
      %2112 = vmatprep.mubr.f32.mxu0 0.0
      %2113 = vmatmul.mubr.f32.gmra.mxu0 %v1544
      %v2114 = vpop.f32.mrf.mxu0
      %v2115 = vadd.f32 0.0, %v2114
      %v2116 = vpop.f32.mrf.mxu0
      %v2117 = vadd.f32 0.0, %v2116
      %2118 = vmatprep.mubr.f32.mxu0 0.0
      %2119 = vmatmul.mubr.f32.gmra.mxu0 %v1547
      %v2120 = vpop.f32.mrf.mxu0
      %v2121 = vadd.f32 0.0, %v2120
      %v2122 = vpop.f32.mrf.mxu0
      %v2123 = vadd.f32 0.0, %v2122
      %2124 = vmatprep.mubr.f32.mxu0 0.0
      %2125 = vmatmul.mubr.f32.gmra.mxu0 %v1550
      %v2126 = vpop.f32.mrf.mxu0
      %v2127 = vadd.f32 0.0, %v2126
      %v2128 = vpop.f32.mrf.mxu0
      %v2129 = vadd.f32 0.0, %v2128
      %2130 = vmatprep.mubr.f32.mxu0 0.0
      %2131 = vmatmul.mubr.f32.gmra.mxu0 %v1553
      %v2132 = vpop.f32.mrf.mxu0
      %v2133 = vadd.f32 0.0, %v2132
      %v2134 = vpop.f32.mrf.mxu0
      %v2135 = vadd.f32 0.0, %v2134
      %2136 = vmatprep.mubr.f32.mxu0 0.0
      %2137 = vmatmul.mubr.f32.gmra.mxu0 %v1556
      %v2138 = vpop.f32.mrf.mxu0
      %v2139 = vadd.f32 0.0, %v2138
      %v2140 = vpop.f32.mrf.mxu0
      %v2141 = vadd.f32 0.0, %v2140
      %2142 = vmatprep.mubr.f32.mxu0 0.0
      %2143 = vmatmul.mubr.f32.gmra.mxu0 %v1559
      %v2144 = vpop.f32.mrf.mxu0
      %v2145 = vadd.f32 0.0, %v2144
      %v2146 = vpop.f32.mrf.mxu0
      %v2147 = vadd.f32 0.0, %v2146
      %2148 = vmatprep.mubr.f32.mxu0 0.0
      %2149 = vmatmul.mubr.f32.gmra.mxu0 %v1562
      %v2150 = vpop.f32.mrf.mxu0
      %v2151 = vadd.f32 0.0, %v2150
      %v2152 = vpop.f32.mrf.mxu0
      %v2153 = vadd.f32 0.0, %v2152
      %2154 = vmatprep.mubr.f32.mxu0 0.0
      %2155 = vmatmul.mubr.f32.gmra.mxu0 %v1565
      %v2156 = vpop.f32.mrf.mxu0
      %v2157 = vadd.f32 0.0, %v2156
      %v2158 = vpop.f32.mrf.mxu0
      %v2159 = vadd.f32 0.0, %v2158
      %2160 = vmatprep.mubr.f32.mxu0 0.0
      %2161 = vmatmul.mubr.f32.gmra.mxu0 %v1568
      %v2162 = vpop.f32.mrf.mxu0
      %v2163 = vadd.f32 0.0, %v2162
      %v2164 = vpop.f32.mrf.mxu0
      %v2165 = vadd.f32 0.0, %v2164
      %2166 = vmatprep.mubr.f32.mxu0 0.0
      %2167 = vmatmul.mubr.f32.gmra.mxu0 %v1571
      %v2168 = vpop.f32.mrf.mxu0
      %v2169 = vadd.f32 0.0, %v2168
      %v2170 = vpop.f32.mrf.mxu0
      %v2171 = vadd.f32 0.0, %v2170
      %2172 = vmatprep.mubr.f32.mxu0 0.0
      %2173 = vmatmul.mubr.f32.gmra.mxu0 %v1574
      %v2174 = vpop.f32.mrf.mxu0
      %v2175 = vadd.f32 0.0, %v2174
      %v2176 = vpop.f32.mrf.mxu0
      %v2177 = vadd.f32 0.0, %v2176
      %2178 = vdwg.mxu0
      %2179 = vmatprep.subr.mxu0 0.0
      %2180 = vmatpush1.msra.mxu0 0.0
      %2181 = vmatprep.subr.mxu0 0.0
      %2182 = vmatpush1.msra.mxu0 0.0
      %2183 = vmatprep.subr.mxu0 0.0
      %2184 = vmatpush1.msra.mxu0 0.0
      %2185 = vmatprep.subr.mxu0 0.0
      %2186 = vmatpush1.msra.mxu0 0.0
      %2187 = vmatprep.subr.mxu0 0.0
      %2188 = vmatpush1.msra.mxu0 0.0
      %2189 = vmatprep.subr.mxu0 0.0
      %2190 = vmatpush1.msra.mxu0 0.0
      %2191 = vmatprep.subr.mxu0 0.0
      %2192 = vmatpush1.msra.mxu0 0.0
      %2193 = vmatprep.subr.mxu0 0.0
      %2194 = vmatpush1.msra.mxu0 0.0
      %2195 = vmatprep.subr.mxu0 0.0
      %2196 = vmatpush1.msra.mxu0 0.0
      %2197 = vmatprep.subr.mxu0 0.0
      %2198 = vmatpush1.msra.mxu0 0.0
      %2199 = vmatprep.subr.mxu0 0.0
      %2200 = vmatpush1.msra.mxu0 0.0
      %2201 = vmatprep.subr.mxu0 0.0
      %2202 = vmatpush1.msra.mxu0 0.0
      %2203 = vmatprep.subr.mxu0 0.0
      %2204 = vmatpush1.msra.mxu0 0.0
      %2205 = vmatprep.subr.mxu0 %v1605
      %2206 = vmatpush1.msra.mxu0 %v1602
      %2207 = vmatprep.subr.mxu0 %v912
      %2208 = vmatpush1.msra.mxu0 %v911
      %2209 = vmatprep.subr.mxu0 %v894
      %2210 = vmatpush1.msra.mxu0 %v893
      %2211 = vmatprep.subr.mxu0 0.0
      %2212 = vmatpush2.msra.mxu0 0.0
      %2213 = vmatprep.subr.mxu0 0.0
      %2214 = vmatpush2.msra.mxu0 0.0
      %2215 = vmatprep.subr.mxu0 0.0
      %2216 = vmatpush2.msra.mxu0 0.0
      %2217 = vmatprep.subr.mxu0 0.0
      %2218 = vmatpush2.msra.mxu0 0.0
      %2219 = vmatprep.subr.mxu0 0.0
      %2220 = vmatpush2.msra.mxu0 0.0
      %2221 = vmatprep.subr.mxu0 0.0
      %2222 = vmatpush2.msra.mxu0 0.0
      %2223 = vmatprep.subr.mxu0 0.0
      %2224 = vmatpush2.msra.mxu0 0.0
      %2225 = vmatprep.subr.mxu0 0.0
      %2226 = vmatpush2.msra.mxu0 0.0
      %2227 = vmatprep.subr.mxu0 0.0
      %2228 = vmatpush2.msra.mxu0 0.0
      %2229 = vmatprep.subr.mxu0 0.0
      %2230 = vmatpush2.msra.mxu0 0.0
      %2231 = vmatprep.subr.mxu0 0.0
      %2232 = vmatpush2.msra.mxu0 0.0
      %2233 = vmatprep.subr.mxu0 0.0
      %2234 = vmatpush2.msra.mxu0 0.0
      %2235 = vmatprep.subr.mxu0 0.0
      %2236 = vmatpush2.msra.mxu0 0.0
      %2237 = vmatprep.subr.mxu0 0.0
      %2238 = vmatpush2.msra.mxu0 0.0
      %2239 = vmatprep.subr.mxu0 0.0
      %2240 = vmatpush2.msra.mxu0 0.0
      %2241 = vmatprep.subr.mxu0 0.0
      %2242 = vmatpush2.msra.mxu0 0.0
      %2243 = vmatprep.mubr.f32.mxu0 0.0
      %2244 = vmatmul.mubr.f32.gmra.mxu0 %v1541
      %v2245 = vpop.f32.mrf.mxu0
      %v2246 = vadd.f32 0.0, %v2245
      %v2247 = vpop.f32.mrf.mxu0
      %v2248 = vadd.f32 0.0, %v2247
      %2249 = vmatprep.mubr.f32.mxu0 0.0
      %2250 = vmatmul.mubr.f32.gmra.mxu0 %v1544
      %v2251 = vpop.f32.mrf.mxu0
      %v2252 = vadd.f32 0.0, %v2251
      %v2253 = vpop.f32.mrf.mxu0
      %v2254 = vadd.f32 0.0, %v2253
      %2255 = vmatprep.mubr.f32.mxu0 0.0
      %2256 = vmatmul.mubr.f32.gmra.mxu0 %v1547
      %v2257 = vpop.f32.mrf.mxu0
      %v2258 = vadd.f32 0.0, %v2257
      %v2259 = vpop.f32.mrf.mxu0
      %v2260 = vadd.f32 0.0, %v2259
      %2261 = vmatprep.mubr.f32.mxu0 0.0
      %2262 = vmatmul.mubr.f32.gmra.mxu0 %v1550
      %v2263 = vpop.f32.mrf.mxu0
      %v2264 = vadd.f32 0.0, %v2263
      %v2265 = vpop.f32.mrf.mxu0
      %v2266 = vadd.f32 0.0, %v2265
      %2267 = vmatprep.mubr.f32.mxu0 0.0
      %2268 = vmatmul.mubr.f32.gmra.mxu0 %v1553
      %v2269 = vpop.f32.mrf.mxu0
      %v2270 = vadd.f32 0.0, %v2269
      %v2271 = vpop.f32.mrf.mxu0
      %v2272 = vadd.f32 0.0, %v2271
      %2273 = vmatprep.mubr.f32.mxu0 0.0
      %2274 = vmatmul.mubr.f32.gmra.mxu0 %v1556
      %v2275 = vpop.f32.mrf.mxu0
      %v2276 = vadd.f32 0.0, %v2275
      %v2277 = vpop.f32.mrf.mxu0
      %v2278 = vadd.f32 0.0, %v2277
      %2279 = vmatprep.mubr.f32.mxu0 0.0
      %2280 = vmatmul.mubr.f32.gmra.mxu0 %v1559
      %v2281 = vpop.f32.mrf.mxu0
      %v2282 = vadd.f32 0.0, %v2281
      %v2283 = vpop.f32.mrf.mxu0
      %v2284 = vadd.f32 0.0, %v2283
      %2285 = vmatprep.mubr.f32.mxu0 0.0
      %2286 = vmatmul.mubr.f32.gmra.mxu0 %v1562
      %v2287 = vpop.f32.mrf.mxu0
      %v2288 = vadd.f32 0.0, %v2287
      %v2289 = vpop.f32.mrf.mxu0
      %v2290 = vadd.f32 0.0, %v2289
      %2291 = vmatprep.mubr.f32.mxu0 0.0
      %2292 = vmatmul.mubr.f32.gmra.mxu0 %v1565
      %v2293 = vpop.f32.mrf.mxu0
      %v2294 = vadd.f32 0.0, %v2293
      %v2295 = vpop.f32.mrf.mxu0
      %v2296 = vadd.f32 0.0, %v2295
      %2297 = vmatprep.mubr.f32.mxu0 0.0
      %2298 = vmatmul.mubr.f32.gmra.mxu0 %v1568
      %v2299 = vpop.f32.mrf.mxu0
      %v2300 = vadd.f32 0.0, %v2299
      %v2301 = vpop.f32.mrf.mxu0
      %v2302 = vadd.f32 0.0, %v2301
      %2303 = vmatprep.mubr.f32.mxu0 0.0
      %2304 = vmatmul.mubr.f32.gmra.mxu0 %v1571
      %v2305 = vpop.f32.mrf.mxu0
      %v2306 = vadd.f32 0.0, %v2305
      %v2307 = vpop.f32.mrf.mxu0
      %v2308 = vadd.f32 0.0, %v2307
      %2309 = vmatprep.mubr.f32.mxu0 0.0
      %2310 = vmatmul.mubr.f32.gmra.mxu0 %v1574
      %v2311 = vpop.f32.mrf.mxu0
      %v2312 = vadd.f32 0.0, %v2311
      %v2313 = vpop.f32.mrf.mxu0
      %v2314 = vadd.f32 0.0, %v2313
      %2315 = vdwg.mxu0
      %2316 = vmatprep.subr.mxu0 0.0
      %2317 = vmatpush1.msra.mxu0 0.0
      %2318 = vmatprep.subr.mxu0 0.0
      %2319 = vmatpush1.msra.mxu0 0.0
      %2320 = vmatprep.subr.mxu0 0.0
      %2321 = vmatpush1.msra.mxu0 0.0
      %2322 = vmatprep.subr.mxu0 0.0
      %2323 = vmatpush1.msra.mxu0 0.0
      %2324 = vmatprep.subr.mxu0 0.0
      %2325 = vmatpush1.msra.mxu0 0.0
      %2326 = vmatprep.subr.mxu0 0.0
      %2327 = vmatpush1.msra.mxu0 0.0
      %2328 = vmatprep.subr.mxu0 0.0
      %2329 = vmatpush1.msra.mxu0 0.0
      %2330 = vmatprep.subr.mxu0 0.0
      %2331 = vmatpush1.msra.mxu0 0.0
      %2332 = vmatprep.subr.mxu0 0.0
      %2333 = vmatpush1.msra.mxu0 0.0
      %2334 = vmatprep.subr.mxu0 0.0
      %2335 = vmatpush1.msra.mxu0 0.0
      %2336 = vmatprep.subr.mxu0 0.0
      %2337 = vmatpush1.msra.mxu0 0.0
      %2338 = vmatprep.subr.mxu0 0.0
      %2339 = vmatpush1.msra.mxu0 0.0
      %2340 = vmatprep.subr.mxu0 0.0
      %2341 = vmatpush1.msra.mxu0 0.0
      %2342 = vmatprep.subr.mxu0 %v1611
      %2343 = vmatpush1.msra.mxu0 %v1608
      %2344 = vmatprep.subr.mxu0 %v914
      %2345 = vmatpush1.msra.mxu0 %v913
      %2346 = vmatprep.subr.mxu0 %v896
      %2347 = vmatpush1.msra.mxu0 %v895
      %2348 = vmatprep.subr.mxu0 0.0
      %2349 = vmatpush2.msra.mxu0 0.0
      %2350 = vmatprep.subr.mxu0 0.0
      %2351 = vmatpush2.msra.mxu0 0.0
      %2352 = vmatprep.subr.mxu0 0.0
      %2353 = vmatpush2.msra.mxu0 0.0
      %2354 = vmatprep.subr.mxu0 0.0
      %2355 = vmatpush2.msra.mxu0 0.0
      %2356 = vmatprep.subr.mxu0 0.0
      %2357 = vmatpush2.msra.mxu0 0.0
      %2358 = vmatprep.subr.mxu0 0.0
      %2359 = vmatpush2.msra.mxu0 0.0
      %2360 = vmatprep.subr.mxu0 0.0
      %2361 = vmatpush2.msra.mxu0 0.0
      %2362 = vmatprep.subr.mxu0 0.0
      %2363 = vmatpush2.msra.mxu0 0.0
      %2364 = vmatprep.subr.mxu0 0.0
      %2365 = vmatpush2.msra.mxu0 0.0
      %2366 = vmatprep.subr.mxu0 0.0
      %2367 = vmatpush2.msra.mxu0 0.0
      %2368 = vmatprep.subr.mxu0 0.0
      %2369 = vmatpush2.msra.mxu0 0.0
      %2370 = vmatprep.subr.mxu0 0.0
      %2371 = vmatpush2.msra.mxu0 0.0
      %2372 = vmatprep.subr.mxu0 0.0
      %2373 = vmatpush2.msra.mxu0 0.0
      %2374 = vmatprep.subr.mxu0 0.0
      %2375 = vmatpush2.msra.mxu0 0.0
      %2376 = vmatprep.subr.mxu0 0.0
      %2377 = vmatpush2.msra.mxu0 0.0
      %2378 = vmatprep.subr.mxu0 0.0
      %2379 = vmatpush2.msra.mxu0 0.0
      %2380 = vmatprep.mubr.f32.mxu0 0.0
      %2381 = vmatmul.mubr.f32.gmra.mxu0 %v1541
      %v2382 = vpop.f32.mrf.mxu0
      %v2383 = vadd.f32 0.0, %v2382
      %v2384 = vpop.f32.mrf.mxu0
      %v2385 = vadd.f32 0.0, %v2384
      %2386 = vmatprep.mubr.f32.mxu0 0.0
      %2387 = vmatmul.mubr.f32.gmra.mxu0 %v1544
      %v2388 = vpop.f32.mrf.mxu0
      %v2389 = vadd.f32 0.0, %v2388
      %v2390 = vpop.f32.mrf.mxu0
      %v2391 = vadd.f32 0.0, %v2390
      %2392 = vmatprep.mubr.f32.mxu0 0.0
      %2393 = vmatmul.mubr.f32.gmra.mxu0 %v1547
      %v2394 = vpop.f32.mrf.mxu0
      %v2395 = vadd.f32 0.0, %v2394
      %v2396 = vpop.f32.mrf.mxu0
      %v2397 = vadd.f32 0.0, %v2396
      %2398 = vmatprep.mubr.f32.mxu0 0.0
      %2399 = vmatmul.mubr.f32.gmra.mxu0 %v1550
      %v2400 = vpop.f32.mrf.mxu0
      %v2401 = vadd.f32 0.0, %v2400
      %v2402 = vpop.f32.mrf.mxu0
      %v2403 = vadd.f32 0.0, %v2402
      %2404 = vmatprep.mubr.f32.mxu0 0.0
      %2405 = vmatmul.mubr.f32.gmra.mxu0 %v1553
      %v2406 = vpop.f32.mrf.mxu0
      %v2407 = vadd.f32 0.0, %v2406
      %v2408 = vpop.f32.mrf.mxu0
      %v2409 = vadd.f32 0.0, %v2408
      %2410 = vmatprep.mubr.f32.mxu0 0.0
      %2411 = vmatmul.mubr.f32.gmra.mxu0 %v1556
      %v2412 = vpop.f32.mrf.mxu0
      %v2413 = vadd.f32 0.0, %v2412
      %v2414 = vpop.f32.mrf.mxu0
      %v2415 = vadd.f32 0.0, %v2414
      %2416 = vmatprep.mubr.f32.mxu0 0.0
      %2417 = vmatmul.mubr.f32.gmra.mxu0 %v1559
      %v2418 = vpop.f32.mrf.mxu0
      %v2419 = vadd.f32 0.0, %v2418
      %v2420 = vpop.f32.mrf.mxu0
      %v2421 = vadd.f32 0.0, %v2420
      %2422 = vmatprep.mubr.f32.mxu0 0.0
      %2423 = vmatmul.mubr.f32.gmra.mxu0 %v1562
      %v2424 = vpop.f32.mrf.mxu0
      %v2425 = vadd.f32 0.0, %v2424
      %v2426 = vpop.f32.mrf.mxu0
      %v2427 = vadd.f32 0.0, %v2426
      %2428 = vmatprep.mubr.f32.mxu0 0.0
      %2429 = vmatmul.mubr.f32.gmra.mxu0 %v1565
      %v2430 = vpop.f32.mrf.mxu0
      %v2431 = vadd.f32 0.0, %v2430
      %v2432 = vpop.f32.mrf.mxu0
      %v2433 = vadd.f32 0.0, %v2432
      %2434 = vmatprep.mubr.f32.mxu0 0.0
      %2435 = vmatmul.mubr.f32.gmra.mxu0 %v1568
      %v2436 = vpop.f32.mrf.mxu0
      %v2437 = vadd.f32 0.0, %v2436
      %v2438 = vpop.f32.mrf.mxu0
      %v2439 = vadd.f32 0.0, %v2438
      %2440 = vmatprep.mubr.f32.mxu0 0.0
      %2441 = vmatmul.mubr.f32.gmra.mxu0 %v1571
      %v2442 = vpop.f32.mrf.mxu0
      %v2443 = vadd.f32 0.0, %v2442
      %v2444 = vpop.f32.mrf.mxu0
      %v2445 = vadd.f32 0.0, %v2444
      %2446 = vmatprep.mubr.f32.mxu0 0.0
      %2447 = vmatmul.mubr.f32.gmra.mxu0 %v1574
      %v2448 = vpop.f32.mrf.mxu0
      %v2449 = vadd.f32 0.0, %v2448
      %v2450 = vpop.f32.mrf.mxu0
      %v2451 = vadd.f32 0.0, %v2450
      %2452 = vdwg.mxu0
      %2453 = vmatprep.subr.mxu0 0.0
      %2454 = vmatpush1.msra.mxu0 0.0
      %2455 = vmatprep.subr.mxu0 0.0
      %2456 = vmatpush1.msra.mxu0 0.0
      %2457 = vmatprep.subr.mxu0 0.0
      %2458 = vmatpush1.msra.mxu0 0.0
      %2459 = vmatprep.subr.mxu0 0.0
      %2460 = vmatpush1.msra.mxu0 0.0
      %2461 = vmatprep.subr.mxu0 0.0
      %2462 = vmatpush1.msra.mxu0 0.0
      %2463 = vmatprep.subr.mxu0 0.0
      %2464 = vmatpush1.msra.mxu0 0.0
      %2465 = vmatprep.subr.mxu0 0.0
      %2466 = vmatpush1.msra.mxu0 0.0
      %2467 = vmatprep.subr.mxu0 0.0
      %2468 = vmatpush1.msra.mxu0 0.0
      %2469 = vmatprep.subr.mxu0 0.0
      %2470 = vmatpush1.msra.mxu0 0.0
      %2471 = vmatprep.subr.mxu0 0.0
      %2472 = vmatpush1.msra.mxu0 0.0
      %2473 = vmatprep.subr.mxu0 0.0
      %2474 = vmatpush1.msra.mxu0 0.0
      %2475 = vmatprep.subr.mxu0 0.0
      %2476 = vmatpush1.msra.mxu0 0.0
      %2477 = vmatprep.subr.mxu0 0.0
      %2478 = vmatpush1.msra.mxu0 0.0
      %2479 = vmatprep.subr.mxu0 %v1617
      %2480 = vmatpush1.msra.mxu0 %v1614
      %2481 = vmatprep.subr.mxu0 %v916
      %2482 = vmatpush1.msra.mxu0 %v915
      %2483 = vmatprep.subr.mxu0 %v898
      %2484 = vmatpush1.msra.mxu0 %v897
      %2485 = vmatprep.subr.mxu0 0.0
      %2486 = vmatpush2.msra.mxu0 0.0
      %2487 = vmatprep.subr.mxu0 0.0
      %2488 = vmatpush2.msra.mxu0 0.0
      %2489 = vmatprep.subr.mxu0 0.0
      %2490 = vmatpush2.msra.mxu0 0.0
      %2491 = vmatprep.subr.mxu0 0.0
      %2492 = vmatpush2.msra.mxu0 0.0
      %2493 = vmatprep.subr.mxu0 0.0
      %2494 = vmatpush2.msra.mxu0 0.0
      %2495 = vmatprep.subr.mxu0 0.0
      %2496 = vmatpush2.msra.mxu0 0.0
      %2497 = vmatprep.subr.mxu0 0.0
      %2498 = vmatpush2.msra.mxu0 0.0
      %2499 = vmatprep.subr.mxu0 0.0
      %2500 = vmatpush2.msra.mxu0 0.0
      %2501 = vmatprep.subr.mxu0 0.0
      %2502 = vmatpush2.msra.mxu0 0.0
      %2503 = vmatprep.subr.mxu0 0.0
      %2504 = vmatpush2.msra.mxu0 0.0
      %2505 = vmatprep.subr.mxu0 0.0
      %2506 = vmatpush2.msra.mxu0 0.0
      %2507 = vmatprep.subr.mxu0 0.0
      %2508 = vmatpush2.msra.mxu0 0.0
      %2509 = vmatprep.subr.mxu0 0.0
      %2510 = vmatpush2.msra.mxu0 0.0
      %2511 = vmatprep.subr.mxu0 0.0
      %2512 = vmatpush2.msra.mxu0 0.0
      %2513 = vmatprep.subr.mxu0 0.0
      %2514 = vmatpush2.msra.mxu0 0.0
      %2515 = vmatprep.subr.mxu0 0.0
      %2516 = vmatpush2.msra.mxu0 0.0
      %2517 = vmatprep.mubr.f32.mxu0 0.0
      %2518 = vmatmul.mubr.f32.gmra.mxu0 %v1541
      %v2519 = vpop.f32.mrf.mxu0
      %v2520 = vadd.f32 0.0, %v2519
      %v2521 = vpop.f32.mrf.mxu0
      %v2522 = vadd.f32 0.0, %v2521
      %2523 = vmatprep.mubr.f32.mxu0 0.0
      %2524 = vmatmul.mubr.f32.gmra.mxu0 %v1544
      %v2525 = vpop.f32.mrf.mxu0
      %v2526 = vadd.f32 0.0, %v2525
      %v2527 = vpop.f32.mrf.mxu0
      %v2528 = vadd.f32 0.0, %v2527
      %2529 = vmatprep.mubr.f32.mxu0 0.0
      %2530 = vmatmul.mubr.f32.gmra.mxu0 %v1547
      %v2531 = vpop.f32.mrf.mxu0
      %v2532 = vadd.f32 0.0, %v2531
      %v2533 = vpop.f32.mrf.mxu0
      %v2534 = vadd.f32 0.0, %v2533
      %2535 = vmatprep.mubr.f32.mxu0 0.0
      %2536 = vmatmul.mubr.f32.gmra.mxu0 %v1550
      %v2537 = vpop.f32.mrf.mxu0
      %v2538 = vadd.f32 0.0, %v2537
      %v2539 = vpop.f32.mrf.mxu0
      %v2540 = vadd.f32 0.0, %v2539
      %2541 = vmatprep.mubr.f32.mxu0 0.0
      %2542 = vmatmul.mubr.f32.gmra.mxu0 %v1553
      %v2543 = vpop.f32.mrf.mxu0
      %v2544 = vadd.f32 0.0, %v2543
      %v2545 = vpop.f32.mrf.mxu0
      %v2546 = vadd.f32 0.0, %v2545
      %2547 = vmatprep.mubr.f32.mxu0 0.0
      %2548 = vmatmul.mubr.f32.gmra.mxu0 %v1556
      %v2549 = vpop.f32.mrf.mxu0
      %v2550 = vadd.f32 0.0, %v2549
      %v2551 = vpop.f32.mrf.mxu0
      %v2552 = vadd.f32 0.0, %v2551
      %2553 = vmatprep.mubr.f32.mxu0 0.0
      %2554 = vmatmul.mubr.f32.gmra.mxu0 %v1559
      %v2555 = vpop.f32.mrf.mxu0
      %v2556 = vadd.f32 0.0, %v2555
      %v2557 = vpop.f32.mrf.mxu0
      %v2558 = vadd.f32 0.0, %v2557
      %2559 = vmatprep.mubr.f32.mxu0 0.0
      %2560 = vmatmul.mubr.f32.gmra.mxu0 %v1562
      %v2561 = vpop.f32.mrf.mxu0
      %v2562 = vadd.f32 0.0, %v2561
      %v2563 = vpop.f32.mrf.mxu0
      %v2564 = vadd.f32 0.0, %v2563
      %2565 = vmatprep.mubr.f32.mxu0 0.0
      %2566 = vmatmul.mubr.f32.gmra.mxu0 %v1565
      %v2567 = vpop.f32.mrf.mxu0
      %v2568 = vadd.f32 0.0, %v2567
      %v2569 = vpop.f32.mrf.mxu0
      %v2570 = vadd.f32 0.0, %v2569
      %2571 = vmatprep.mubr.f32.mxu0 0.0
      %2572 = vmatmul.mubr.f32.gmra.mxu0 %v1568
      %v2573 = vpop.f32.mrf.mxu0
      %v2574 = vadd.f32 0.0, %v2573
      %v2575 = vpop.f32.mrf.mxu0
      %v2576 = vadd.f32 0.0, %v2575
      %2577 = vmatprep.mubr.f32.mxu0 0.0
      %2578 = vmatmul.mubr.f32.gmra.mxu0 %v1571
      %v2579 = vpop.f32.mrf.mxu0
      %v2580 = vadd.f32 0.0, %v2579
      %v2581 = vpop.f32.mrf.mxu0
      %v2582 = vadd.f32 0.0, %v2581
      %2583 = vmatprep.mubr.f32.mxu0 0.0
      %2584 = vmatmul.mubr.f32.gmra.mxu0 %v1574
      %v2585 = vpop.f32.mrf.mxu0
      %v2586 = vadd.f32 0.0, %v2585
      %v2587 = vpop.f32.mrf.mxu0
      %v2588 = vadd.f32 0.0, %v2587
      %2589 = vdwg.mxu0
      %2590 = vmatprep.subr.mxu0 0.0
      %2591 = vmatpush1.msra.mxu0 0.0
      %2592 = vmatprep.subr.mxu0 0.0
      %2593 = vmatpush1.msra.mxu0 0.0
      %2594 = vmatprep.subr.mxu0 0.0
      %2595 = vmatpush1.msra.mxu0 0.0
      %2596 = vmatprep.subr.mxu0 0.0
      %2597 = vmatpush1.msra.mxu0 0.0
      %2598 = vmatprep.subr.mxu0 0.0
      %2599 = vmatpush1.msra.mxu0 0.0
      %2600 = vmatprep.subr.mxu0 0.0
      %2601 = vmatpush1.msra.mxu0 0.0
      %2602 = vmatprep.subr.mxu0 0.0
      %2603 = vmatpush1.msra.mxu0 0.0
      %2604 = vmatprep.subr.mxu0 0.0
      %2605 = vmatpush1.msra.mxu0 0.0
      %2606 = vmatprep.subr.mxu0 0.0
      %2607 = vmatpush1.msra.mxu0 0.0
      %2608 = vmatprep.subr.mxu0 0.0
      %2609 = vmatpush1.msra.mxu0 0.0
      %2610 = vmatprep.subr.mxu0 0.0
      %2611 = vmatpush1.msra.mxu0 0.0
      %2612 = vmatprep.subr.mxu0 0.0
      %2613 = vmatpush1.msra.mxu0 0.0
      %2614 = vmatprep.subr.mxu0 0.0
      %2615 = vmatpush1.msra.mxu0 0.0
      %2616 = vmatprep.subr.mxu0 %v1623
      %2617 = vmatpush1.msra.mxu0 %v1620
      %2618 = vmatprep.subr.mxu0 %v918
      %2619 = vmatpush1.msra.mxu0 %v917
      %2620 = vmatprep.subr.mxu0 %v900
      %2621 = vmatpush1.msra.mxu0 %v899
      %2622 = vmatprep.subr.mxu0 0.0
      %2623 = vmatpush2.msra.mxu0 0.0
      %2624 = vmatprep.subr.mxu0 0.0
      %2625 = vmatpush2.msra.mxu0 0.0
      %2626 = vmatprep.subr.mxu0 0.0
      %2627 = vmatpush2.msra.mxu0 0.0
      %2628 = vmatprep.subr.mxu0 0.0
      %2629 = vmatpush2.msra.mxu0 0.0
      %2630 = vmatprep.subr.mxu0 0.0
      %2631 = vmatpush2.msra.mxu0 0.0
      %2632 = vmatprep.subr.mxu0 0.0
      %2633 = vmatpush2.msra.mxu0 0.0
      %2634 = vmatprep.subr.mxu0 0.0
      %2635 = vmatpush2.msra.mxu0 0.0
      %2636 = vmatprep.subr.mxu0 0.0
      %2637 = vmatpush2.msra.mxu0 0.0
      %2638 = vmatprep.subr.mxu0 0.0
      %2639 = vmatpush2.msra.mxu0 0.0
      %2640 = vmatprep.subr.mxu0 0.0
      %2641 = vmatpush2.msra.mxu0 0.0
      %2642 = vmatprep.subr.mxu0 0.0
      %2643 = vmatpush2.msra.mxu0 0.0
      %2644 = vmatprep.subr.mxu0 0.0
      %2645 = vmatpush2.msra.mxu0 0.0
      %2646 = vmatprep.subr.mxu0 0.0
      %2647 = vmatpush2.msra.mxu0 0.0
      %2648 = vmatprep.subr.mxu0 0.0
      %2649 = vmatpush2.msra.mxu0 0.0
      %2650 = vmatprep.subr.mxu0 0.0
      %2651 = vmatpush2.msra.mxu0 0.0
      %2652 = vmatprep.subr.mxu0 0.0
      %2653 = vmatpush2.msra.mxu0 0.0
      %2654 = vmatprep.mubr.f32.mxu0 0.0
      %2655 = vmatmul.mubr.f32.gmra.mxu0 %v1541
      %v2656 = vpop.f32.mrf.mxu0
      %v2657 = vadd.f32 0.0, %v2656
      %v2658 = vpop.f32.mrf.mxu0
      %v2659 = vadd.f32 0.0, %v2658
      %2660 = vmatprep.mubr.f32.mxu0 0.0
      %2661 = vmatmul.mubr.f32.gmra.mxu0 %v1544
      %v2662 = vpop.f32.mrf.mxu0
      %v2663 = vadd.f32 0.0, %v2662
      %v2664 = vpop.f32.mrf.mxu0
      %v2665 = vadd.f32 0.0, %v2664
      %2666 = vmatprep.mubr.f32.mxu0 0.0
      %2667 = vmatmul.mubr.f32.gmra.mxu0 %v1547
      %v2668 = vpop.f32.mrf.mxu0
      %v2669 = vadd.f32 0.0, %v2668
      %v2670 = vpop.f32.mrf.mxu0
      %v2671 = vadd.f32 0.0, %v2670
      %2672 = vmatprep.mubr.f32.mxu0 0.0
      %2673 = vmatmul.mubr.f32.gmra.mxu0 %v1550
      %v2674 = vpop.f32.mrf.mxu0
      %v2675 = vadd.f32 0.0, %v2674
      %v2676 = vpop.f32.mrf.mxu0
      %v2677 = vadd.f32 0.0, %v2676
      %2678 = vmatprep.mubr.f32.mxu0 0.0
      %2679 = vmatmul.mubr.f32.gmra.mxu0 %v1553
      %v2680 = vpop.f32.mrf.mxu0
      %v2681 = vadd.f32 0.0, %v2680
      %v2682 = vpop.f32.mrf.mxu0
      %v2683 = vadd.f32 0.0, %v2682
      %2684 = vmatprep.mubr.f32.mxu0 0.0
      %2685 = vmatmul.mubr.f32.gmra.mxu0 %v1556
      %v2686 = vpop.f32.mrf.mxu0
      %v2687 = vadd.f32 0.0, %v2686
      %v2688 = vpop.f32.mrf.mxu0
      %v2689 = vadd.f32 0.0, %v2688
      %2690 = vmatprep.mubr.f32.mxu0 0.0
      %2691 = vmatmul.mubr.f32.gmra.mxu0 %v1559
      %v2692 = vpop.f32.mrf.mxu0
      %v2693 = vadd.f32 0.0, %v2692
      %v2694 = vpop.f32.mrf.mxu0
      %v2695 = vadd.f32 0.0, %v2694
      %2696 = vmatprep.mubr.f32.mxu0 0.0
      %2697 = vmatmul.mubr.f32.gmra.mxu0 %v1562
      %v2698 = vpop.f32.mrf.mxu0
      %v2699 = vadd.f32 0.0, %v2698
      %v2700 = vpop.f32.mrf.mxu0
      %v2701 = vadd.f32 0.0, %v2700
      %2702 = vmatprep.mubr.f32.mxu0 0.0
      %2703 = vmatmul.mubr.f32.gmra.mxu0 %v1565
      %v2704 = vpop.f32.mrf.mxu0
      %v2705 = vadd.f32 0.0, %v2704
      %v2706 = vpop.f32.mrf.mxu0
      %v2707 = vadd.f32 0.0, %v2706
      %2708 = vmatprep.mubr.f32.mxu0 0.0
      %2709 = vmatmul.mubr.f32.gmra.mxu0 %v1568
      %v2710 = vpop.f32.mrf.mxu0
      %v2711 = vadd.f32 0.0, %v2710
      %v2712 = vpop.f32.mrf.mxu0
      %v2713 = vadd.f32 0.0, %v2712
      %2714 = vmatprep.mubr.f32.mxu0 0.0
      %2715 = vmatmul.mubr.f32.gmra.mxu0 %v1571
      %v2716 = vpop.f32.mrf.mxu0
      %v2717 = vadd.f32 0.0, %v2716
      %v2718 = vpop.f32.mrf.mxu0
      %v2719 = vadd.f32 0.0, %v2718
      %2720 = vmatprep.mubr.f32.mxu0 0.0
      %2721 = vmatmul.mubr.f32.gmra.mxu0 %v1574
      %v2722 = vpop.f32.mrf.mxu0
      %v2723 = vadd.f32 0.0, %v2722
      %v2724 = vpop.f32.mrf.mxu0
      %v2725 = vadd.f32 0.0, %v2724
      %2726 = vdwg.mxu0
      %2727 = vmatprep.subr.mxu0 0.0
      %2728 = vmatpush1.msra.mxu0 0.0
      %2729 = vmatprep.subr.mxu0 0.0
      %2730 = vmatpush1.msra.mxu0 0.0
      %2731 = vmatprep.subr.mxu0 0.0
      %2732 = vmatpush1.msra.mxu0 0.0
      %2733 = vmatprep.subr.mxu0 0.0
      %2734 = vmatpush1.msra.mxu0 0.0
      %2735 = vmatprep.subr.mxu0 0.0
      %2736 = vmatpush1.msra.mxu0 0.0
      %2737 = vmatprep.subr.mxu0 0.0
      %2738 = vmatpush1.msra.mxu0 0.0
      %2739 = vmatprep.subr.mxu0 0.0
      %2740 = vmatpush1.msra.mxu0 0.0
      %2741 = vmatprep.subr.mxu0 0.0
      %2742 = vmatpush1.msra.mxu0 0.0
      %2743 = vmatprep.subr.mxu0 0.0
      %2744 = vmatpush1.msra.mxu0 0.0
      %2745 = vmatprep.subr.mxu0 0.0
      %2746 = vmatpush1.msra.mxu0 0.0
      %2747 = vmatprep.subr.mxu0 0.0
      %2748 = vmatpush1.msra.mxu0 0.0
      %2749 = vmatprep.subr.mxu0 0.0
      %2750 = vmatpush1.msra.mxu0 0.0
      %2751 = vmatprep.subr.mxu0 0.0
      %2752 = vmatpush1.msra.mxu0 0.0
      %2753 = vmatprep.subr.mxu0 %v1629
      %2754 = vmatpush1.msra.mxu0 %v1626
      %2755 = vmatprep.subr.mxu0 %v920
      %2756 = vmatpush1.msra.mxu0 %v919
      %2757 = vmatprep.subr.mxu0 %v902
      %2758 = vmatpush1.msra.mxu0 %v901
      %2759 = vmatprep.subr.mxu0 0.0
      %2760 = vmatpush2.msra.mxu0 0.0
      %2761 = vmatprep.subr.mxu0 0.0
      %2762 = vmatpush2.msra.mxu0 0.0
      %2763 = vmatprep.subr.mxu0 0.0
      %2764 = vmatpush2.msra.mxu0 0.0
      %2765 = vmatprep.subr.mxu0 0.0
      %2766 = vmatpush2.msra.mxu0 0.0
      %2767 = vmatprep.subr.mxu0 0.0
      %2768 = vmatpush2.msra.mxu0 0.0
      %2769 = vmatprep.subr.mxu0 0.0
      %2770 = vmatpush2.msra.mxu0 0.0
      %2771 = vmatprep.subr.mxu0 0.0
      %2772 = vmatpush2.msra.mxu0 0.0
      %2773 = vmatprep.subr.mxu0 0.0
      %2774 = vmatpush2.msra.mxu0 0.0
      %2775 = vmatprep.subr.mxu0 0.0
      %2776 = vmatpush2.msra.mxu0 0.0
      %2777 = vmatprep.subr.mxu0 0.0
      %2778 = vmatpush2.msra.mxu0 0.0
      %2779 = vmatprep.subr.mxu0 0.0
      %2780 = vmatpush2.msra.mxu0 0.0
      %2781 = vmatprep.subr.mxu0 0.0
      %2782 = vmatpush2.msra.mxu0 0.0
      %2783 = vmatprep.subr.mxu0 0.0
      %2784 = vmatpush2.msra.mxu0 0.0
      %2785 = vmatprep.subr.mxu0 0.0
      %2786 = vmatpush2.msra.mxu0 0.0
      %2787 = vmatprep.subr.mxu0 0.0
      %2788 = vmatpush2.msra.mxu0 0.0
      %2789 = vmatprep.subr.mxu0 0.0
      %2790 = vmatpush2.msra.mxu0 0.0
      %2791 = vmatprep.mubr.f32.mxu0 0.0
      %2792 = vmatmul.mubr.f32.gmra.mxu0 %v1541
      %v2793 = vpop.f32.mrf.mxu0
      %v2794 = vadd.f32 0.0, %v2793
      %v2795 = vpop.f32.mrf.mxu0
      %v2796 = vadd.f32 0.0, %v2795
      %2797 = vmatprep.mubr.f32.mxu0 0.0
      %2798 = vmatmul.mubr.f32.gmra.mxu0 %v1544
      %v2799 = vpop.f32.mrf.mxu0
      %v2800 = vadd.f32 0.0, %v2799
      %v2801 = vpop.f32.mrf.mxu0
      %v2802 = vadd.f32 0.0, %v2801
      %2803 = vmatprep.mubr.f32.mxu0 0.0
      %2804 = vmatmul.mubr.f32.gmra.mxu0 %v1547
      %v2805 = vpop.f32.mrf.mxu0
      %v2806 = vadd.f32 0.0, %v2805
      %v2807 = vpop.f32.mrf.mxu0
      %v2808 = vadd.f32 0.0, %v2807
      %2809 = vmatprep.mubr.f32.mxu0 0.0
      %2810 = vmatmul.mubr.f32.gmra.mxu0 %v1550
      %v2811 = vpop.f32.mrf.mxu0
      %v2812 = vadd.f32 0.0, %v2811
      %v2813 = vpop.f32.mrf.mxu0
      %v2814 = vadd.f32 0.0, %v2813
      %2815 = vmatprep.mubr.f32.mxu0 0.0
      %2816 = vmatmul.mubr.f32.gmra.mxu0 %v1553
      %v2817 = vpop.f32.mrf.mxu0
      %v2818 = vadd.f32 0.0, %v2817
      %v2819 = vpop.f32.mrf.mxu0
      %v2820 = vadd.f32 0.0, %v2819
      %2821 = vmatprep.mubr.f32.mxu0 0.0
      %2822 = vmatmul.mubr.f32.gmra.mxu0 %v1556
      %v2823 = vpop.f32.mrf.mxu0
      %v2824 = vadd.f32 0.0, %v2823
      %v2825 = vpop.f32.mrf.mxu0
      %v2826 = vadd.f32 0.0, %v2825
      %2827 = vmatprep.mubr.f32.mxu0 0.0
      %2828 = vmatmul.mubr.f32.gmra.mxu0 %v1559
      %v2829 = vpop.f32.mrf.mxu0
      %v2830 = vadd.f32 0.0, %v2829
      %v2831 = vpop.f32.mrf.mxu0
      %v2832 = vadd.f32 0.0, %v2831
      %2833 = vmatprep.mubr.f32.mxu0 0.0
      %2834 = vmatmul.mubr.f32.gmra.mxu0 %v1562
      %v2835 = vpop.f32.mrf.mxu0
      %v2836 = vadd.f32 0.0, %v2835
      %v2837 = vpop.f32.mrf.mxu0
      %v2838 = vadd.f32 0.0, %v2837
      %2839 = vmatprep.mubr.f32.mxu0 0.0
      %2840 = vmatmul.mubr.f32.gmra.mxu0 %v1565
      %v2841 = vpop.f32.mrf.mxu0
      %v2842 = vadd.f32 0.0, %v2841
      %v2843 = vpop.f32.mrf.mxu0
      %v2844 = vadd.f32 0.0, %v2843
      %2845 = vmatprep.mubr.f32.mxu0 0.0
      %2846 = vmatmul.mubr.f32.gmra.mxu0 %v1568
      %v2847 = vpop.f32.mrf.mxu0
      %v2848 = vadd.f32 0.0, %v2847
      %v2849 = vpop.f32.mrf.mxu0
      %v2850 = vadd.f32 0.0, %v2849
      %2851 = vmatprep.mubr.f32.mxu0 0.0
      %2852 = vmatmul.mubr.f32.gmra.mxu0 %v1571
      %v2853 = vpop.f32.mrf.mxu0
      %v2854 = vadd.f32 0.0, %v2853
      %v2855 = vpop.f32.mrf.mxu0
      %v2856 = vadd.f32 0.0, %v2855
      %2857 = vmatprep.mubr.f32.mxu0 0.0
      %2858 = vmatmul.mubr.f32.gmra.mxu0 %v1574
      %v2859 = vpop.f32.mrf.mxu0
      %v2860 = vadd.f32 0.0, %v2859
      %v2861 = vpop.f32.mrf.mxu0
      %v2862 = vadd.f32 0.0, %v2861
      %2863 = vdwg.mxu0
      %v2864 = vmul.f32 %v1698, %v1485
      %v2865 = vmul.f32 %v1700, %v1486
      %v2866 = vmul.f32 %v1835, %v1487
      %v2867 = vmul.f32 %v1837, %v1488
      %v2868 = vmul.f32 %v1972, %v1489
      %v2869 = vmul.f32 %v1974, %v1490
      %v2870 = vmul.f32 %v2109, %v1491
      %v2871 = vmul.f32 %v2111, %v1492
      %v2872 = vmul.f32 %v2246, %v1493
      %v2873 = vmul.f32 %v2248, %v1494
      %v2874 = vmul.f32 %v2383, %v1495
      %v2875 = vmul.f32 %v2385, %v1496
      %v2876 = vmul.f32 %v2520, %v1497
      %v2877 = vmul.f32 %v2522, %v1498
      %v2878 = vmul.f32 %v2657, %v1499
      %v2879 = vmul.f32 %v2659, %v1500
      %v2880 = vmul.f32 %v2794, %v1501
      %v2881 = vmul.f32 %v2796, %v1502
      %v2882 = vmul.f32 %v1704, %v1503
      %v2883 = vmul.f32 %v1706, %v1504
      %v2884 = vmul.f32 %v1841, %v1505
      %v2885 = vmul.f32 %v1843, %v1506
      %v2886 = vmul.f32 %v1978, %v1507
      %v2887 = vmul.f32 %v1980, %v1508
      %v2888 = vmul.f32 %v2115, %v1509
      %v2889 = vmul.f32 %v2117, %v1510
      %v2890 = vmul.f32 %v2252, %v1511
      %v2891 = vmul.f32 %v2254, %v1512
      %v2892 = vmul.f32 %v2389, %v1513
      %v2893 = vmul.f32 %v2391, %v1514
      %v2894 = vmul.f32 %v2526, %v1515
      %v2895 = vmul.f32 %v2528, %v1516
      %v2896 = vmul.f32 %v2663, %v1517
      %v2897 = vmul.f32 %v2665, %v1518
      %v2898 = vmul.f32 %v2800, %v1519
      %v2899 = vmul.f32 %v2802, %v1520
      %v2900 = vmul.f32 %v1710, %v1521
      %v2901 = vmul.f32 %v1712, %v1522
      %v2902 = vmul.f32 %v1847, %v1523
      %v2903 = vmul.f32 %v1849, %v1524
      %v2904 = vmul.f32 %v1984, %v1525
      %v2905 = vmul.f32 %v1986, %v1526
      %v2906 = vmul.f32 %v2121, %v1527
      %v2907 = vmul.f32 %v2123, %v1528
      %v2908 = vmul.f32 %v2258, %v1529
      %v2909 = vmul.f32 %v2260, %v1530
      %v2910 = vmul.f32 %v2395, %v1531
      %v2911 = vmul.f32 %v2397, %v1532
      %v2912 = vmul.f32 %v2532, %v1533
      %v2913 = vmul.f32 %v2534, %v1534
      %v2914 = vmul.f32 %v2669, %v1535
      %v2915 = vmul.f32 %v2671, %v1536
      %v2916 = vmul.f32 %v2806, %v1537
      %v2917 = vmul.f32 %v2808, %v1538
      %v2918 = vmul.f32 %v1716, %v1485
      %v2919 = vmul.f32 %v1718, %v1486
      %v2920 = vmul.f32 %v1853, %v1487
      %v2921 = vmul.f32 %v1855, %v1488
      %v2922 = vmul.f32 %v1990, %v1489
      %v2923 = vmul.f32 %v1992, %v1490
      %v2924 = vmul.f32 %v2127, %v1491
      %v2925 = vmul.f32 %v2129, %v1492
      %v2926 = vmul.f32 %v2264, %v1493
      %v2927 = vmul.f32 %v2266, %v1494
      %v2928 = vmul.f32 %v2401, %v1495
      %v2929 = vmul.f32 %v2403, %v1496
      %v2930 = vmul.f32 %v2538, %v1497
      %v2931 = vmul.f32 %v2540, %v1498
      %v2932 = vmul.f32 %v2675, %v1499
      %v2933 = vmul.f32 %v2677, %v1500
      %v2934 = vmul.f32 %v2812, %v1501
      %v2935 = vmul.f32 %v2814, %v1502
      %v2936 = vmul.f32 %v1722, %v1503
      %v2937 = vmul.f32 %v1724, %v1504
      %v2938 = vmul.f32 %v1859, %v1505
      %v2939 = vmul.f32 %v1861, %v1506
      %v2940 = vmul.f32 %v1996, %v1507
      %v2941 = vmul.f32 %v1998, %v1508
      %v2942 = vmul.f32 %v2133, %v1509
      %v2943 = vmul.f32 %v2135, %v1510
      %v2944 = vmul.f32 %v2270, %v1511
      %v2945 = vmul.f32 %v2272, %v1512
      %v2946 = vmul.f32 %v2407, %v1513
      %v2947 = vmul.f32 %v2409, %v1514
      %v2948 = vmul.f32 %v2544, %v1515
      %v2949 = vmul.f32 %v2546, %v1516
      %v2950 = vmul.f32 %v2681, %v1517
      %v2951 = vmul.f32 %v2683, %v1518
      %v2952 = vmul.f32 %v2818, %v1519
      %v2953 = vmul.f32 %v2820, %v1520
      %v2954 = vmul.f32 %v1728, %v1521
      %v2955 = vmul.f32 %v1730, %v1522
      %v2956 = vmul.f32 %v1865, %v1523
      %v2957 = vmul.f32 %v1867, %v1524
      %v2958 = vmul.f32 %v2002, %v1525
      %v2959 = vmul.f32 %v2004, %v1526
      %v2960 = vmul.f32 %v2139, %v1527
      %v2961 = vmul.f32 %v2141, %v1528
      %v2962 = vmul.f32 %v2276, %v1529
      %v2963 = vmul.f32 %v2278, %v1530
      %v2964 = vmul.f32 %v2413, %v1531
      %v2965 = vmul.f32 %v2415, %v1532
      %v2966 = vmul.f32 %v2550, %v1533
      %v2967 = vmul.f32 %v2552, %v1534
      %v2968 = vmul.f32 %v2687, %v1535
      %v2969 = vmul.f32 %v2689, %v1536
      %v2970 = vmul.f32 %v2824, %v1537
      %v2971 = vmul.f32 %v2826, %v1538
      %v2972 = vmul.f32 %v1734, %v1485
      %v2973 = vmul.f32 %v1736, %v1486
      %v2974 = vmul.f32 %v1871, %v1487
      %v2975 = vmul.f32 %v1873, %v1488
      %v2976 = vmul.f32 %v2008, %v1489
      %v2977 = vmul.f32 %v2010, %v1490
      %v2978 = vmul.f32 %v2145, %v1491
      %v2979 = vmul.f32 %v2147, %v1492
      %v2980 = vmul.f32 %v2282, %v1493
      %v2981 = vmul.f32 %v2284, %v1494
      %v2982 = vmul.f32 %v2419, %v1495
      %v2983 = vmul.f32 %v2421, %v1496
      %v2984 = vmul.f32 %v2556, %v1497
      %v2985 = vmul.f32 %v2558, %v1498
      %v2986 = vmul.f32 %v2693, %v1499
      %v2987 = vmul.f32 %v2695, %v1500
      %v2988 = vmul.f32 %v2830, %v1501
      %v2989 = vmul.f32 %v2832, %v1502
      %v2990 = vmul.f32 %v1740, %v1503
      %v2991 = vmul.f32 %v1742, %v1504
      %v2992 = vmul.f32 %v1877, %v1505
      %v2993 = vmul.f32 %v1879, %v1506
      %v2994 = vmul.f32 %v2014, %v1507
      %v2995 = vmul.f32 %v2016, %v1508
      %v2996 = vmul.f32 %v2151, %v1509
      %v2997 = vmul.f32 %v2153, %v1510
      %v2998 = vmul.f32 %v2288, %v1511
      %v2999 = vmul.f32 %v2290, %v1512
      %v3000 = vmul.f32 %v2425, %v1513
      %v3001 = vmul.f32 %v2427, %v1514
      %v3002 = vmul.f32 %v2562, %v1515
      %v3003 = vmul.f32 %v2564, %v1516
      %v3004 = vmul.f32 %v2699, %v1517
      %v3005 = vmul.f32 %v2701, %v1518
      %v3006 = vmul.f32 %v2836, %v1519
      %v3007 = vmul.f32 %v2838, %v1520
      %v3008 = vmul.f32 %v1746, %v1521
      %v3009 = vmul.f32 %v1748, %v1522
      %v3010 = vmul.f32 %v1883, %v1523
      %v3011 = vmul.f32 %v1885, %v1524
      %v3012 = vmul.f32 %v2020, %v1525
      %v3013 = vmul.f32 %v2022, %v1526
      %v3014 = vmul.f32 %v2157, %v1527
      %v3015 = vmul.f32 %v2159, %v1528
      %v3016 = vmul.f32 %v2294, %v1529
      %v3017 = vmul.f32 %v2296, %v1530
      %v3018 = vmul.f32 %v2431, %v1531
      %v3019 = vmul.f32 %v2433, %v1532
      %v3020 = vmul.f32 %v2568, %v1533
      %v3021 = vmul.f32 %v2570, %v1534
      %v3022 = vmul.f32 %v2705, %v1535
      %v3023 = vmul.f32 %v2707, %v1536
      %v3024 = vmul.f32 %v2842, %v1537
      %v3025 = vmul.f32 %v2844, %v1538
      %v3026 = vmul.f32 %v1752, %v1485
      %v3027 = vmul.f32 %v1754, %v1486
      %v3028 = vmul.f32 %v1889, %v1487
      %v3029 = vmul.f32 %v1891, %v1488
      %v3030 = vmul.f32 %v2026, %v1489
      %v3031 = vmul.f32 %v2028, %v1490
      %v3032 = vmul.f32 %v2163, %v1491
      %v3033 = vmul.f32 %v2165, %v1492
      %v3034 = vmul.f32 %v2300, %v1493
      %v3035 = vmul.f32 %v2302, %v1494
      %v3036 = vmul.f32 %v2437, %v1495
      %v3037 = vmul.f32 %v2439, %v1496
      %v3038 = vmul.f32 %v2574, %v1497
      %v3039 = vmul.f32 %v2576, %v1498
      %v3040 = vmul.f32 %v2711, %v1499
      %v3041 = vmul.f32 %v2713, %v1500
      %v3042 = vmul.f32 %v2848, %v1501
      %v3043 = vmul.f32 %v2850, %v1502
      %v3044 = vmul.f32 %v1758, %v1503
      %v3045 = vmul.f32 %v1760, %v1504
      %v3046 = vmul.f32 %v1895, %v1505
      %v3047 = vmul.f32 %v1897, %v1506
      %v3048 = vmul.f32 %v2032, %v1507
      %v3049 = vmul.f32 %v2034, %v1508
      %v3050 = vmul.f32 %v2169, %v1509
      %v3051 = vmul.f32 %v2171, %v1510
      %v3052 = vmul.f32 %v2306, %v1511
      %v3053 = vmul.f32 %v2308, %v1512
      %v3054 = vmul.f32 %v2443, %v1513
      %v3055 = vmul.f32 %v2445, %v1514
      %v3056 = vmul.f32 %v2580, %v1515
      %v3057 = vmul.f32 %v2582, %v1516
      %v3058 = vmul.f32 %v2717, %v1517
      %v3059 = vmul.f32 %v2719, %v1518
      %v3060 = vmul.f32 %v2854, %v1519
      %v3061 = vmul.f32 %v2856, %v1520
      %v3062 = vmul.f32 %v1764, %v1521
      %v3063 = vmul.f32 %v1766, %v1522
      %v3064 = vmul.f32 %v1901, %v1523
      %v3065 = vmul.f32 %v1903, %v1524
      %v3066 = vmul.f32 %v2038, %v1525
      %v3067 = vmul.f32 %v2040, %v1526
      %v3068 = vmul.f32 %v2175, %v1527
      %v3069 = vmul.f32 %v2177, %v1528
      %v3070 = vmul.f32 %v2312, %v1529
      %v3071 = vmul.f32 %v2314, %v1530
      %v3072 = vmul.f32 %v2449, %v1531
      %v3073 = vmul.f32 %v2451, %v1532
      %v3074 = vmul.f32 %v2586, %v1533
      %v3075 = vmul.f32 %v2588, %v1534
      %v3076 = vmul.f32 %v2723, %v1535
      %v3077 = vmul.f32 %v2725, %v1536
      %v3078 = vmul.f32 %v2860, %v1537
      %v3079 = vmul.f32 %v2862, %v1538
      %v3080 = vadd.f32 %v2864, %v2882
      %v3081 = vadd.f32 %v3080, %v2900
      %v3082 = vrot.slane %v3081, 4
      %v3083 = vadd.f32 %v3081, %v3082
      %v3084 = vrot.slane %v3083, 2
      %v3085 = vadd.f32 %v3083, %v3084
      %v3086 = vrot.slane %v3085, 1
      %v3087 = vadd.f32 %v3085, %v3086
      %v3088 = vadd.f32 %v2865, %v2883
      %v3089 = vadd.f32 %v3088, %v2901
      %v3090 = vrot.slane %v3089, 4
      %v3091 = vadd.f32 %v3089, %v3090
      %v3092 = vrot.slane %v3091, 2
      %v3093 = vadd.f32 %v3091, %v3092
      %v3094 = vrot.slane %v3093, 1
      %v3095 = vadd.f32 %v3093, %v3094
      %v3096 = vadd.f32 %v2866, %v2884
      %v3097 = vadd.f32 %v3096, %v2902
      %v3098 = vrot.slane %v3097, 4
      %v3099 = vadd.f32 %v3097, %v3098
      %v3100 = vrot.slane %v3099, 2
      %v3101 = vadd.f32 %v3099, %v3100
      %v3102 = vrot.slane %v3101, 1
      %v3103 = vadd.f32 %v3101, %v3102
      %v3104 = vadd.f32 %v2867, %v2885
      %v3105 = vadd.f32 %v3104, %v2903
      %v3106 = vrot.slane %v3105, 4
      %v3107 = vadd.f32 %v3105, %v3106
      %v3108 = vrot.slane %v3107, 2
      %v3109 = vadd.f32 %v3107, %v3108
      %v3110 = vrot.slane %v3109, 1
      %v3111 = vadd.f32 %v3109, %v3110
      %v3112 = vadd.f32 %v2868, %v2886
      %v3113 = vadd.f32 %v3112, %v2904
      %v3114 = vrot.slane %v3113, 4
      %v3115 = vadd.f32 %v3113, %v3114
      %v3116 = vrot.slane %v3115, 2
      %v3117 = vadd.f32 %v3115, %v3116
      %v3118 = vrot.slane %v3117, 1
      %v3119 = vadd.f32 %v3117, %v3118
      %v3120 = vadd.f32 %v2869, %v2887
      %v3121 = vadd.f32 %v3120, %v2905
      %v3122 = vrot.slane %v3121, 4
      %v3123 = vadd.f32 %v3121, %v3122
      %v3124 = vrot.slane %v3123, 2
      %v3125 = vadd.f32 %v3123, %v3124
      %v3126 = vrot.slane %v3125, 1
      %v3127 = vadd.f32 %v3125, %v3126
      %v3128 = vadd.f32 %v2870, %v2888
      %v3129 = vadd.f32 %v3128, %v2906
      %v3130 = vrot.slane %v3129, 4
      %v3131 = vadd.f32 %v3129, %v3130
      %v3132 = vrot.slane %v3131, 2
      %v3133 = vadd.f32 %v3131, %v3132
      %v3134 = vrot.slane %v3133, 1
      %v3135 = vadd.f32 %v3133, %v3134
      %v3136 = vadd.f32 %v2871, %v2889
      %v3137 = vadd.f32 %v3136, %v2907
      %v3138 = vrot.slane %v3137, 4
      %v3139 = vadd.f32 %v3137, %v3138
      %v3140 = vrot.slane %v3139, 2
      %v3141 = vadd.f32 %v3139, %v3140
      %v3142 = vrot.slane %v3141, 1
      %v3143 = vadd.f32 %v3141, %v3142
      %v3144 = vadd.f32 %v2872, %v2890
      %v3145 = vadd.f32 %v3144, %v2908
      %v3146 = vrot.slane %v3145, 4
      %v3147 = vadd.f32 %v3145, %v3146
      %v3148 = vrot.slane %v3147, 2
      %v3149 = vadd.f32 %v3147, %v3148
      %v3150 = vrot.slane %v3149, 1
      %v3151 = vadd.f32 %v3149, %v3150
      %v3152 = vadd.f32 %v2873, %v2891
      %v3153 = vadd.f32 %v3152, %v2909
      %v3154 = vrot.slane %v3153, 4
      %v3155 = vadd.f32 %v3153, %v3154
      %v3156 = vrot.slane %v3155, 2
      %v3157 = vadd.f32 %v3155, %v3156
      %v3158 = vrot.slane %v3157, 1
      %v3159 = vadd.f32 %v3157, %v3158
      %v3160 = vadd.f32 %v2874, %v2892
      %v3161 = vadd.f32 %v3160, %v2910
      %v3162 = vrot.slane %v3161, 4
      %v3163 = vadd.f32 %v3161, %v3162
      %v3164 = vrot.slane %v3163, 2
      %v3165 = vadd.f32 %v3163, %v3164
      %v3166 = vrot.slane %v3165, 1
      %v3167 = vadd.f32 %v3165, %v3166
      %v3168 = vadd.f32 %v2875, %v2893
      %v3169 = vadd.f32 %v3168, %v2911
      %v3170 = vrot.slane %v3169, 4
      %v3171 = vadd.f32 %v3169, %v3170
      %v3172 = vrot.slane %v3171, 2
      %v3173 = vadd.f32 %v3171, %v3172
      %v3174 = vrot.slane %v3173, 1
      %v3175 = vadd.f32 %v3173, %v3174
      %v3176 = vadd.f32 %v2876, %v2894
      %v3177 = vadd.f32 %v3176, %v2912
      %v3178 = vrot.slane %v3177, 4
      %v3179 = vadd.f32 %v3177, %v3178
      %v3180 = vrot.slane %v3179, 2
      %v3181 = vadd.f32 %v3179, %v3180
      %v3182 = vrot.slane %v3181, 1
      %v3183 = vadd.f32 %v3181, %v3182
      %v3184 = vadd.f32 %v2877, %v2895
      %v3185 = vadd.f32 %v3184, %v2913
      %v3186 = vrot.slane %v3185, 4
      %v3187 = vadd.f32 %v3185, %v3186
      %v3188 = vrot.slane %v3187, 2
      %v3189 = vadd.f32 %v3187, %v3188
      %v3190 = vrot.slane %v3189, 1
      %v3191 = vadd.f32 %v3189, %v3190
      %v3192 = vadd.f32 %v2878, %v2896
      %v3193 = vadd.f32 %v3192, %v2914
      %v3194 = vrot.slane %v3193, 4
      %v3195 = vadd.f32 %v3193, %v3194
      %v3196 = vrot.slane %v3195, 2
      %v3197 = vadd.f32 %v3195, %v3196
      %v3198 = vrot.slane %v3197, 1
      %v3199 = vadd.f32 %v3197, %v3198
      %v3200 = vadd.f32 %v2879, %v2897
      %v3201 = vadd.f32 %v3200, %v2915
      %v3202 = vrot.slane %v3201, 4
      %v3203 = vadd.f32 %v3201, %v3202
      %v3204 = vrot.slane %v3203, 2
      %v3205 = vadd.f32 %v3203, %v3204
      %v3206 = vrot.slane %v3205, 1
      %v3207 = vadd.f32 %v3205, %v3206
      %v3208 = vadd.f32 %v2880, %v2898
      %v3209 = vadd.f32 %v3208, %v2916
      %v3210 = vrot.slane %v3209, 4
      %v3211 = vadd.f32 %v3209, %v3210
      %v3212 = vrot.slane %v3211, 2
      %v3213 = vadd.f32 %v3211, %v3212
      %v3214 = vrot.slane %v3213, 1
      %v3215 = vadd.f32 %v3213, %v3214
      %v3216 = vadd.f32 %v2881, %v2899
      %v3217 = vadd.f32 %v3216, %v2917
      %v3218 = vrot.slane %v3217, 4
      %v3219 = vadd.f32 %v3217, %v3218
      %v3220 = vrot.slane %v3219, 2
      %v3221 = vadd.f32 %v3219, %v3220
      %v3222 = vrot.slane %v3221, 1
      %v3223 = vadd.f32 %v3221, %v3222
      %v3224 = vadd.f32 %v2918, %v2936
      %v3225 = vadd.f32 %v3224, %v2954
      %v3226 = vrot.slane %v3225, 4
      %v3227 = vadd.f32 %v3225, %v3226
      %v3228 = vrot.slane %v3227, 2
      %v3229 = vadd.f32 %v3227, %v3228
      %v3230 = vrot.slane %v3229, 1
      %v3231 = vadd.f32 %v3229, %v3230
      %v3232 = vadd.f32 %v2919, %v2937
      %v3233 = vadd.f32 %v3232, %v2955
      %v3234 = vrot.slane %v3233, 4
      %v3235 = vadd.f32 %v3233, %v3234
      %v3236 = vrot.slane %v3235, 2
      %v3237 = vadd.f32 %v3235, %v3236
      %v3238 = vrot.slane %v3237, 1
      %v3239 = vadd.f32 %v3237, %v3238
      %v3240 = vadd.f32 %v2920, %v2938
      %v3241 = vadd.f32 %v3240, %v2956
      %v3242 = vrot.slane %v3241, 4
      %v3243 = vadd.f32 %v3241, %v3242
      %v3244 = vrot.slane %v3243, 2
      %v3245 = vadd.f32 %v3243, %v3244
      %v3246 = vrot.slane %v3245, 1
      %v3247 = vadd.f32 %v3245, %v3246
      %v3248 = vadd.f32 %v2921, %v2939
      %v3249 = vadd.f32 %v3248, %v2957
      %v3250 = vrot.slane %v3249, 4
      %v3251 = vadd.f32 %v3249, %v3250
      %v3252 = vrot.slane %v3251, 2
      %v3253 = vadd.f32 %v3251, %v3252
      %v3254 = vrot.slane %v3253, 1
      %v3255 = vadd.f32 %v3253, %v3254
      %v3256 = vadd.f32 %v2922, %v2940
      %v3257 = vadd.f32 %v3256, %v2958
      %v3258 = vrot.slane %v3257, 4
      %v3259 = vadd.f32 %v3257, %v3258
      %v3260 = vrot.slane %v3259, 2
      %v3261 = vadd.f32 %v3259, %v3260
      %v3262 = vrot.slane %v3261, 1
      %v3263 = vadd.f32 %v3261, %v3262
      %v3264 = vadd.f32 %v2923, %v2941
      %v3265 = vadd.f32 %v3264, %v2959
      %v3266 = vrot.slane %v3265, 4
      %v3267 = vadd.f32 %v3265, %v3266
      %v3268 = vrot.slane %v3267, 2
      %v3269 = vadd.f32 %v3267, %v3268
      %v3270 = vrot.slane %v3269, 1
      %v3271 = vadd.f32 %v3269, %v3270
      %v3272 = vadd.f32 %v2924, %v2942
      %v3273 = vadd.f32 %v3272, %v2960
      %v3274 = vrot.slane %v3273, 4
      %v3275 = vadd.f32 %v3273, %v3274
      %v3276 = vrot.slane %v3275, 2
      %v3277 = vadd.f32 %v3275, %v3276
      %v3278 = vrot.slane %v3277, 1
      %v3279 = vadd.f32 %v3277, %v3278
      %v3280 = vadd.f32 %v2925, %v2943
      %v3281 = vadd.f32 %v3280, %v2961
      %v3282 = vrot.slane %v3281, 4
      %v3283 = vadd.f32 %v3281, %v3282
      %v3284 = vrot.slane %v3283, 2
      %v3285 = vadd.f32 %v3283, %v3284
      %v3286 = vrot.slane %v3285, 1
      %v3287 = vadd.f32 %v3285, %v3286
      %v3288 = vadd.f32 %v2926, %v2944
      %v3289 = vadd.f32 %v3288, %v2962
      %v3290 = vrot.slane %v3289, 4
      %v3291 = vadd.f32 %v3289, %v3290
      %v3292 = vrot.slane %v3291, 2
      %v3293 = vadd.f32 %v3291, %v3292
      %v3294 = vrot.slane %v3293, 1
      %v3295 = vadd.f32 %v3293, %v3294
      %v3296 = vadd.f32 %v2927, %v2945
      %v3297 = vadd.f32 %v3296, %v2963
      %v3298 = vrot.slane %v3297, 4
      %v3299 = vadd.f32 %v3297, %v3298
      %v3300 = vrot.slane %v3299, 2
      %v3301 = vadd.f32 %v3299, %v3300
      %v3302 = vrot.slane %v3301, 1
      %v3303 = vadd.f32 %v3301, %v3302
      %v3304 = vadd.f32 %v2928, %v2946
      %v3305 = vadd.f32 %v3304, %v2964
      %v3306 = vrot.slane %v3305, 4
      %v3307 = vadd.f32 %v3305, %v3306
      %v3308 = vrot.slane %v3307, 2
      %v3309 = vadd.f32 %v3307, %v3308
      %v3310 = vrot.slane %v3309, 1
      %v3311 = vadd.f32 %v3309, %v3310
      %v3312 = vadd.f32 %v2929, %v2947
      %v3313 = vadd.f32 %v3312, %v2965
      %v3314 = vrot.slane %v3313, 4
      %v3315 = vadd.f32 %v3313, %v3314
      %v3316 = vrot.slane %v3315, 2
      %v3317 = vadd.f32 %v3315, %v3316
      %v3318 = vrot.slane %v3317, 1
      %v3319 = vadd.f32 %v3317, %v3318
      %v3320 = vadd.f32 %v2930, %v2948
      %v3321 = vadd.f32 %v3320, %v2966
      %v3322 = vrot.slane %v3321, 4
      %v3323 = vadd.f32 %v3321, %v3322
      %v3324 = vrot.slane %v3323, 2
      %v3325 = vadd.f32 %v3323, %v3324
      %v3326 = vrot.slane %v3325, 1
      %v3327 = vadd.f32 %v3325, %v3326
      %v3328 = vadd.f32 %v2931, %v2949
      %v3329 = vadd.f32 %v3328, %v2967
      %v3330 = vrot.slane %v3329, 4
      %v3331 = vadd.f32 %v3329, %v3330
      %v3332 = vrot.slane %v3331, 2
      %v3333 = vadd.f32 %v3331, %v3332
      %v3334 = vrot.slane %v3333, 1
      %v3335 = vadd.f32 %v3333, %v3334
      %v3336 = vadd.f32 %v2932, %v2950
      %v3337 = vadd.f32 %v3336, %v2968
      %v3338 = vrot.slane %v3337, 4
      %v3339 = vadd.f32 %v3337, %v3338
      %v3340 = vrot.slane %v3339, 2
      %v3341 = vadd.f32 %v3339, %v3340
      %v3342 = vrot.slane %v3341, 1
      %v3343 = vadd.f32 %v3341, %v3342
      %v3344 = vadd.f32 %v2933, %v2951
      %v3345 = vadd.f32 %v3344, %v2969
      %v3346 = vrot.slane %v3345, 4
      %v3347 = vadd.f32 %v3345, %v3346
      %v3348 = vrot.slane %v3347, 2
      %v3349 = vadd.f32 %v3347, %v3348
      %v3350 = vrot.slane %v3349, 1
      %v3351 = vadd.f32 %v3349, %v3350
      %v3352 = vadd.f32 %v2934, %v2952
      %v3353 = vadd.f32 %v3352, %v2970
      %v3354 = vrot.slane %v3353, 4
      %v3355 = vadd.f32 %v3353, %v3354
      %v3356 = vrot.slane %v3355, 2
      %v3357 = vadd.f32 %v3355, %v3356
      %v3358 = vrot.slane %v3357, 1
      %v3359 = vadd.f32 %v3357, %v3358
      %v3360 = vadd.f32 %v2935, %v2953
      %v3361 = vadd.f32 %v3360, %v2971
      %v3362 = vrot.slane %v3361, 4
      %v3363 = vadd.f32 %v3361, %v3362
      %v3364 = vrot.slane %v3363, 2
      %v3365 = vadd.f32 %v3363, %v3364
      %v3366 = vrot.slane %v3365, 1
      %v3367 = vadd.f32 %v3365, %v3366
      %v3368 = vadd.f32 %v2972, %v2990
      %v3369 = vadd.f32 %v3368, %v3008
      %v3370 = vrot.slane %v3369, 4
      %v3371 = vadd.f32 %v3369, %v3370
      %v3372 = vrot.slane %v3371, 2
      %v3373 = vadd.f32 %v3371, %v3372
      %v3374 = vrot.slane %v3373, 1
      %v3375 = vadd.f32 %v3373, %v3374
      %v3376 = vadd.f32 %v2973, %v2991
      %v3377 = vadd.f32 %v3376, %v3009
      %v3378 = vrot.slane %v3377, 4
      %v3379 = vadd.f32 %v3377, %v3378
      %v3380 = vrot.slane %v3379, 2
      %v3381 = vadd.f32 %v3379, %v3380
      %v3382 = vrot.slane %v3381, 1
      %v3383 = vadd.f32 %v3381, %v3382
      %v3384 = vadd.f32 %v2974, %v2992
      %v3385 = vadd.f32 %v3384, %v3010
      %v3386 = vrot.slane %v3385, 4
      %v3387 = vadd.f32 %v3385, %v3386
      %v3388 = vrot.slane %v3387, 2
      %v3389 = vadd.f32 %v3387, %v3388
      %v3390 = vrot.slane %v3389, 1
      %v3391 = vadd.f32 %v3389, %v3390
      %v3392 = vadd.f32 %v2975, %v2993
      %v3393 = vadd.f32 %v3392, %v3011
      %v3394 = vrot.slane %v3393, 4
      %v3395 = vadd.f32 %v3393, %v3394
      %v3396 = vrot.slane %v3395, 2
      %v3397 = vadd.f32 %v3395, %v3396
      %v3398 = vrot.slane %v3397, 1
      %v3399 = vadd.f32 %v3397, %v3398
      %v3400 = vadd.f32 %v2976, %v2994
      %v3401 = vadd.f32 %v3400, %v3012
      %v3402 = vrot.slane %v3401, 4
      %v3403 = vadd.f32 %v3401, %v3402
      %v3404 = vrot.slane %v3403, 2
      %v3405 = vadd.f32 %v3403, %v3404
      %v3406 = vrot.slane %v3405, 1
      %v3407 = vadd.f32 %v3405, %v3406
      %v3408 = vadd.f32 %v2977, %v2995
      %v3409 = vadd.f32 %v3408, %v3013
      %v3410 = vrot.slane %v3409, 4
      %v3411 = vadd.f32 %v3409, %v3410
      %v3412 = vrot.slane %v3411, 2
      %v3413 = vadd.f32 %v3411, %v3412
      %v3414 = vrot.slane %v3413, 1
      %v3415 = vadd.f32 %v3413, %v3414
      %v3416 = vadd.f32 %v2978, %v2996
      %v3417 = vadd.f32 %v3416, %v3014
      %v3418 = vrot.slane %v3417, 4
      %v3419 = vadd.f32 %v3417, %v3418
      %v3420 = vrot.slane %v3419, 2
      %v3421 = vadd.f32 %v3419, %v3420
      %v3422 = vrot.slane %v3421, 1
      %v3423 = vadd.f32 %v3421, %v3422
      %v3424 = vadd.f32 %v2979, %v2997
      %v3425 = vadd.f32 %v3424, %v3015
      %v3426 = vrot.slane %v3425, 4
      %v3427 = vadd.f32 %v3425, %v3426
      %v3428 = vrot.slane %v3427, 2
      %v3429 = vadd.f32 %v3427, %v3428
      %v3430 = vrot.slane %v3429, 1
      %v3431 = vadd.f32 %v3429, %v3430
      %v3432 = vadd.f32 %v2980, %v2998
      %v3433 = vadd.f32 %v3432, %v3016
      %v3434 = vrot.slane %v3433, 4
      %v3435 = vadd.f32 %v3433, %v3434
      %v3436 = vrot.slane %v3435, 2
      %v3437 = vadd.f32 %v3435, %v3436
      %v3438 = vrot.slane %v3437, 1
      %v3439 = vadd.f32 %v3437, %v3438
      %v3440 = vadd.f32 %v2981, %v2999
      %v3441 = vadd.f32 %v3440, %v3017
      %v3442 = vrot.slane %v3441, 4
      %v3443 = vadd.f32 %v3441, %v3442
      %v3444 = vrot.slane %v3443, 2
      %v3445 = vadd.f32 %v3443, %v3444
      %v3446 = vrot.slane %v3445, 1
      %v3447 = vadd.f32 %v3445, %v3446
      %v3448 = vadd.f32 %v2982, %v3000
      %v3449 = vadd.f32 %v3448, %v3018
      %v3450 = vrot.slane %v3449, 4
      %v3451 = vadd.f32 %v3449, %v3450
      %v3452 = vrot.slane %v3451, 2
      %v3453 = vadd.f32 %v3451, %v3452
      %v3454 = vrot.slane %v3453, 1
      %v3455 = vadd.f32 %v3453, %v3454
      %v3456 = vadd.f32 %v2983, %v3001
      %v3457 = vadd.f32 %v3456, %v3019
      %v3458 = vrot.slane %v3457, 4
      %v3459 = vadd.f32 %v3457, %v3458
      %v3460 = vrot.slane %v3459, 2
      %v3461 = vadd.f32 %v3459, %v3460
      %v3462 = vrot.slane %v3461, 1
      %v3463 = vadd.f32 %v3461, %v3462
      %v3464 = vadd.f32 %v2984, %v3002
      %v3465 = vadd.f32 %v3464, %v3020
      %v3466 = vrot.slane %v3465, 4
      %v3467 = vadd.f32 %v3465, %v3466
      %v3468 = vrot.slane %v3467, 2
      %v3469 = vadd.f32 %v3467, %v3468
      %v3470 = vrot.slane %v3469, 1
      %v3471 = vadd.f32 %v3469, %v3470
      %v3472 = vadd.f32 %v2985, %v3003
      %v3473 = vadd.f32 %v3472, %v3021
      %v3474 = vrot.slane %v3473, 4
      %v3475 = vadd.f32 %v3473, %v3474
      %v3476 = vrot.slane %v3475, 2
      %v3477 = vadd.f32 %v3475, %v3476
      %v3478 = vrot.slane %v3477, 1
      %v3479 = vadd.f32 %v3477, %v3478
      %v3480 = vadd.f32 %v2986, %v3004
      %v3481 = vadd.f32 %v3480, %v3022
      %v3482 = vrot.slane %v3481, 4
      %v3483 = vadd.f32 %v3481, %v3482
      %v3484 = vrot.slane %v3483, 2
      %v3485 = vadd.f32 %v3483, %v3484
      %v3486 = vrot.slane %v3485, 1
      %v3487 = vadd.f32 %v3485, %v3486
      %v3488 = vadd.f32 %v2987, %v3005
      %v3489 = vadd.f32 %v3488, %v3023
      %v3490 = vrot.slane %v3489, 4
      %v3491 = vadd.f32 %v3489, %v3490
      %v3492 = vrot.slane %v3491, 2
      %v3493 = vadd.f32 %v3491, %v3492
      %v3494 = vrot.slane %v3493, 1
      %v3495 = vadd.f32 %v3493, %v3494
      %v3496 = vadd.f32 %v2988, %v3006
      %v3497 = vadd.f32 %v3496, %v3024
      %v3498 = vrot.slane %v3497, 4
      %v3499 = vadd.f32 %v3497, %v3498
      %v3500 = vrot.slane %v3499, 2
      %v3501 = vadd.f32 %v3499, %v3500
      %v3502 = vrot.slane %v3501, 1
      %v3503 = vadd.f32 %v3501, %v3502
      %v3504 = vadd.f32 %v2989, %v3007
      %v3505 = vadd.f32 %v3504, %v3025
      %v3506 = vrot.slane %v3505, 4
      %v3507 = vadd.f32 %v3505, %v3506
      %v3508 = vrot.slane %v3507, 2
      %v3509 = vadd.f32 %v3507, %v3508
      %v3510 = vrot.slane %v3509, 1
      %v3511 = vadd.f32 %v3509, %v3510
      %v3512 = vadd.f32 %v3026, %v3044
      %v3513 = vadd.f32 %v3512, %v3062
      %v3514 = vrot.slane %v3513, 4
      %v3515 = vadd.f32 %v3513, %v3514
      %v3516 = vrot.slane %v3515, 2
      %v3517 = vadd.f32 %v3515, %v3516
      %v3518 = vrot.slane %v3517, 1
      %v3519 = vadd.f32 %v3517, %v3518
      %v3520 = vadd.f32 %v3027, %v3045
      %v3521 = vadd.f32 %v3520, %v3063
      %v3522 = vrot.slane %v3521, 4
      %v3523 = vadd.f32 %v3521, %v3522
      %v3524 = vrot.slane %v3523, 2
      %v3525 = vadd.f32 %v3523, %v3524
      %v3526 = vrot.slane %v3525, 1
      %v3527 = vadd.f32 %v3525, %v3526
      %v3528 = vadd.f32 %v3028, %v3046
      %v3529 = vadd.f32 %v3528, %v3064
      %v3530 = vrot.slane %v3529, 4
      %v3531 = vadd.f32 %v3529, %v3530
      %v3532 = vrot.slane %v3531, 2
      %v3533 = vadd.f32 %v3531, %v3532
      %v3534 = vrot.slane %v3533, 1
      %v3535 = vadd.f32 %v3533, %v3534
      %v3536 = vadd.f32 %v3029, %v3047
      %v3537 = vadd.f32 %v3536, %v3065
      %v3538 = vrot.slane %v3537, 4
      %v3539 = vadd.f32 %v3537, %v3538
      %v3540 = vrot.slane %v3539, 2
      %v3541 = vadd.f32 %v3539, %v3540
      %v3542 = vrot.slane %v3541, 1
      %v3543 = vadd.f32 %v3541, %v3542
      %v3544 = vadd.f32 %v3030, %v3048
      %v3545 = vadd.f32 %v3544, %v3066
      %v3546 = vrot.slane %v3545, 4
      %v3547 = vadd.f32 %v3545, %v3546
      %v3548 = vrot.slane %v3547, 2
      %v3549 = vadd.f32 %v3547, %v3548
      %v3550 = vrot.slane %v3549, 1
      %v3551 = vadd.f32 %v3549, %v3550
      %v3552 = vadd.f32 %v3031, %v3049
      %v3553 = vadd.f32 %v3552, %v3067
      %v3554 = vrot.slane %v3553, 4
      %v3555 = vadd.f32 %v3553, %v3554
      %v3556 = vrot.slane %v3555, 2
      %v3557 = vadd.f32 %v3555, %v3556
      %v3558 = vrot.slane %v3557, 1
      %v3559 = vadd.f32 %v3557, %v3558
      %v3560 = vadd.f32 %v3032, %v3050
      %v3561 = vadd.f32 %v3560, %v3068
      %v3562 = vrot.slane %v3561, 4
      %v3563 = vadd.f32 %v3561, %v3562
      %v3564 = vrot.slane %v3563, 2
      %v3565 = vadd.f32 %v3563, %v3564
      %v3566 = vrot.slane %v3565, 1
      %v3567 = vadd.f32 %v3565, %v3566
      %v3568 = vadd.f32 %v3033, %v3051
      %v3569 = vadd.f32 %v3568, %v3069
      %v3570 = vrot.slane %v3569, 4
      %v3571 = vadd.f32 %v3569, %v3570
      %v3572 = vrot.slane %v3571, 2
      %v3573 = vadd.f32 %v3571, %v3572
      %v3574 = vrot.slane %v3573, 1
      %v3575 = vadd.f32 %v3573, %v3574
      %v3576 = vadd.f32 %v3034, %v3052
      %v3577 = vadd.f32 %v3576, %v3070
      %v3578 = vrot.slane %v3577, 4
      %v3579 = vadd.f32 %v3577, %v3578
      %v3580 = vrot.slane %v3579, 2
      %v3581 = vadd.f32 %v3579, %v3580
      %v3582 = vrot.slane %v3581, 1
      %v3583 = vadd.f32 %v3581, %v3582
      %v3584 = vadd.f32 %v3035, %v3053
      %v3585 = vadd.f32 %v3584, %v3071
      %v3586 = vrot.slane %v3585, 4
      %v3587 = vadd.f32 %v3585, %v3586
      %v3588 = vrot.slane %v3587, 2
      %v3589 = vadd.f32 %v3587, %v3588
      %v3590 = vrot.slane %v3589, 1
      %v3591 = vadd.f32 %v3589, %v3590
      %v3592 = vadd.f32 %v3036, %v3054
      %v3593 = vadd.f32 %v3592, %v3072
      %v3594 = vrot.slane %v3593, 4
      %v3595 = vadd.f32 %v3593, %v3594
      %v3596 = vrot.slane %v3595, 2
      %v3597 = vadd.f32 %v3595, %v3596
      %v3598 = vrot.slane %v3597, 1
      %v3599 = vadd.f32 %v3597, %v3598
      %v3600 = vadd.f32 %v3037, %v3055
      %v3601 = vadd.f32 %v3600, %v3073
      %v3602 = vrot.slane %v3601, 4
      %v3603 = vadd.f32 %v3601, %v3602
      %v3604 = vrot.slane %v3603, 2
      %v3605 = vadd.f32 %v3603, %v3604
      %v3606 = vrot.slane %v3605, 1
      %v3607 = vadd.f32 %v3605, %v3606
      %v3608 = vadd.f32 %v3038, %v3056
      %v3609 = vadd.f32 %v3608, %v3074
      %v3610 = vrot.slane %v3609, 4
      %v3611 = vadd.f32 %v3609, %v3610
      %v3612 = vrot.slane %v3611, 2
      %v3613 = vadd.f32 %v3611, %v3612
      %v3614 = vrot.slane %v3613, 1
      %v3615 = vadd.f32 %v3613, %v3614
      %v3616 = vadd.f32 %v3039, %v3057
      %v3617 = vadd.f32 %v3616, %v3075
      %v3618 = vrot.slane %v3617, 4
      %v3619 = vadd.f32 %v3617, %v3618
      %v3620 = vrot.slane %v3619, 2
      %v3621 = vadd.f32 %v3619, %v3620
      %v3622 = vrot.slane %v3621, 1
      %v3623 = vadd.f32 %v3621, %v3622
      %v3624 = vadd.f32 %v3040, %v3058
      %v3625 = vadd.f32 %v3624, %v3076
      %v3626 = vrot.slane %v3625, 4
      %v3627 = vadd.f32 %v3625, %v3626
      %v3628 = vrot.slane %v3627, 2
      %v3629 = vadd.f32 %v3627, %v3628
      %v3630 = vrot.slane %v3629, 1
      %v3631 = vadd.f32 %v3629, %v3630
      %v3632 = vadd.f32 %v3041, %v3059
      %v3633 = vadd.f32 %v3632, %v3077
      %v3634 = vrot.slane %v3633, 4
      %v3635 = vadd.f32 %v3633, %v3634
      %v3636 = vrot.slane %v3635, 2
      %v3637 = vadd.f32 %v3635, %v3636
      %v3638 = vrot.slane %v3637, 1
      %v3639 = vadd.f32 %v3637, %v3638
      %v3640 = vadd.f32 %v3042, %v3060
      %v3641 = vadd.f32 %v3640, %v3078
      %v3642 = vrot.slane %v3641, 4
      %v3643 = vadd.f32 %v3641, %v3642
      %v3644 = vrot.slane %v3643, 2
      %v3645 = vadd.f32 %v3643, %v3644
      %v3646 = vrot.slane %v3645, 1
      %v3647 = vadd.f32 %v3645, %v3646
      %v3648 = vadd.f32 %v3043, %v3061
      %v3649 = vadd.f32 %v3648, %v3079
      %v3650 = vrot.slane %v3649, 4
      %v3651 = vadd.f32 %v3649, %v3650
      %v3652 = vrot.slane %v3651, 2
      %v3653 = vadd.f32 %v3651, %v3652
      %v3654 = vrot.slane %v3653, 1
      %v3655 = vadd.f32 %v3653, %v3654
      %v3656 = vld [vmem:[%s2] sm:$0xff]
      %s3657 = scalar_lea.vmem %s2, 8
      %v3658 = vld [vmem:[%s3657] sm:$0xff]
      %vm3667 = vcmask 1041409
      %v3668 = vsel %vm3667, %v3247, %v3103
      %vm3669 = vcmask 1042434
      %v3670 = vsel %vm3669, %v3391, %v3668
      %vm3671 = vcmask 1043459
      %v3672 = vsel %vm3671, %v3535, %v3670
      %v3673 = vsel %vm3667, %v3255, %v3111
      %v3674 = vsel %vm3669, %v3399, %v3673
      %v3675 = vsel %vm3671, %v3543, %v3674
      %vm3676 = vcmask 31744
      %v3678 = vsel %vm3676, %v3658, 0
      %vm3680 = vcmask 1043456
      %v3681 = vsel %vm3680, %v3672, 0
      %v3683 = vsel %vm3680, %v3675, 0
      %3685 = vmatprep.subr.mxu0 0.0
      %3686 = vmatpush1.msra.mxu0 0.0
      %3687 = vmatprep.subr.mxu0 0.0
      %3688 = vmatpush1.msra.mxu0 0.0
      %3689 = vmatprep.subr.mxu0 0.0
      %3690 = vmatpush1.msra.mxu0 0.0
      %3691 = vmatprep.subr.mxu0 0.0
      %3692 = vmatpush1.msra.mxu0 0.0
      %3693 = vmatprep.subr.mxu0 0.0
      %3694 = vmatpush1.msra.mxu0 0.0
      %3695 = vmatprep.subr.mxu0 0.0
      %3696 = vmatpush1.msra.mxu0 0.0
      %3697 = vmatprep.subr.mxu0 0.0
      %3698 = vmatpush1.msra.mxu0 0.0
      %3699 = vmatprep.subr.mxu0 0.0
      %3700 = vmatpush1.msra.mxu0 0.0
      %3701 = vmatprep.subr.mxu0 0.0
      %3702 = vmatpush1.msra.mxu0 0.0
      %3703 = vmatprep.subr.mxu0 0.0
      %3704 = vmatpush1.msra.mxu0 0.0
      %3705 = vmatprep.subr.mxu0 0.0
      %3706 = vmatpush1.msra.mxu0 0.0
      %3707 = vmatprep.subr.mxu0 0.0
      %3708 = vmatpush1.msra.mxu0 0.0
      %3709 = vmatprep.subr.mxu0 0.0
      %3710 = vmatpush1.msra.mxu0 0.0
      %3711 = vmatprep.subr.mxu0 0.0
      %3712 = vmatpush1.msra.mxu0 0.0
      %3713 = vmatprep.subr.mxu0 0.0
      %3714 = vmatpush1.msra.mxu0 0.0
      %3715 = vmatprep.subr.mxu0 %v3683
      %3716 = vmatpush1.msra.mxu0 %v3681
      %3717 = vmatprep.subr.mxu0 0.0
      %3718 = vmatpush2.msra.mxu0 0.0
      %3719 = vmatprep.subr.mxu0 0.0
      %3720 = vmatpush2.msra.mxu0 0.0
      %3721 = vmatprep.subr.mxu0 0.0
      %3722 = vmatpush2.msra.mxu0 0.0
      %3723 = vmatprep.subr.mxu0 0.0
      %3724 = vmatpush2.msra.mxu0 0.0
      %3725 = vmatprep.subr.mxu0 0.0
      %3726 = vmatpush2.msra.mxu0 0.0
      %3727 = vmatprep.subr.mxu0 0.0
      %3728 = vmatpush2.msra.mxu0 0.0
      %3729 = vmatprep.subr.mxu0 0.0
      %3730 = vmatpush2.msra.mxu0 0.0
      %3731 = vmatprep.subr.mxu0 0.0
      %3732 = vmatpush2.msra.mxu0 0.0
      %3733 = vmatprep.subr.mxu0 0.0
      %3734 = vmatpush2.msra.mxu0 0.0
      %3735 = vmatprep.subr.mxu0 0.0
      %3736 = vmatpush2.msra.mxu0 0.0
      %3737 = vmatprep.subr.mxu0 0.0
      %3738 = vmatpush2.msra.mxu0 0.0
      %3739 = vmatprep.subr.mxu0 0.0
      %3740 = vmatpush2.msra.mxu0 0.0
      %3741 = vmatprep.subr.mxu0 0.0
      %3742 = vmatpush2.msra.mxu0 0.0
      %3743 = vmatprep.subr.mxu0 0.0
      %3744 = vmatpush2.msra.mxu0 0.0
      %3745 = vmatprep.subr.mxu0 0.0
      %3746 = vmatpush2.msra.mxu0 0.0
      %3747 = vmatprep.subr.mxu0 0.0
      %3748 = vmatpush2.msra.mxu0 0.0
      %3749 = vmatprep.mubr.f32.mxu0 0.0
      %3750 = vmatmul.mubr.f32.gmra.mxu0 %v3678
      %v3751 = vpop.f32.mrf.mxu0
      %v3752 = vadd.f32 0.0, %v3751
      %v3753 = vpop.f32.mrf.mxu0
      %v3754 = vadd.f32 0.0, %v3753
      %3755 = vdwg.mxu0
      %v3764 = vsel %vm3667, %v3231, %v3087
      %v3765 = vsel %vm3669, %v3375, %v3764
      %v3766 = vsel %vm3671, %v3519, %v3765
      %v3767 = vsel %vm3667, %v3239, %v3095
      %v3768 = vsel %vm3669, %v3383, %v3767
      %v3769 = vsel %vm3671, %v3527, %v3768
      %v3771 = vsel %vm3676, %v3656, 0
      %v3773 = vsel %vm3680, %v3766, 0
      %v3775 = vsel %vm3680, %v3769, 0
      %3777 = vmatprep.subr.mxu0 0.0
      %3778 = vmatpush1.msra.mxu0 0.0
      %3779 = vmatprep.subr.mxu0 0.0
      %3780 = vmatpush1.msra.mxu0 0.0
      %3781 = vmatprep.subr.mxu0 0.0
      %3782 = vmatpush1.msra.mxu0 0.0
      %3783 = vmatprep.subr.mxu0 0.0
      %3784 = vmatpush1.msra.mxu0 0.0
      %3785 = vmatprep.subr.mxu0 0.0
      %3786 = vmatpush1.msra.mxu0 0.0
      %3787 = vmatprep.subr.mxu0 0.0
      %3788 = vmatpush1.msra.mxu0 0.0
      %3789 = vmatprep.subr.mxu0 0.0
      %3790 = vmatpush1.msra.mxu0 0.0
      %3791 = vmatprep.subr.mxu0 0.0
      %3792 = vmatpush1.msra.mxu0 0.0
      %3793 = vmatprep.subr.mxu0 0.0
      %3794 = vmatpush1.msra.mxu0 0.0
      %3795 = vmatprep.subr.mxu0 0.0
      %3796 = vmatpush1.msra.mxu0 0.0
      %3797 = vmatprep.subr.mxu0 0.0
      %3798 = vmatpush1.msra.mxu0 0.0
      %3799 = vmatprep.subr.mxu0 0.0
      %3800 = vmatpush1.msra.mxu0 0.0
      %3801 = vmatprep.subr.mxu0 0.0
      %3802 = vmatpush1.msra.mxu0 0.0
      %3803 = vmatprep.subr.mxu0 0.0
      %3804 = vmatpush1.msra.mxu0 0.0
      %3805 = vmatprep.subr.mxu0 0.0
      %3806 = vmatpush1.msra.mxu0 0.0
      %3807 = vmatprep.subr.mxu0 %v3775
      %3808 = vmatpush1.msra.mxu0 %v3773
      %3809 = vmatprep.subr.mxu0 0.0
      %3810 = vmatpush2.msra.mxu0 0.0
      %3811 = vmatprep.subr.mxu0 0.0
      %3812 = vmatpush2.msra.mxu0 0.0
      %3813 = vmatprep.subr.mxu0 0.0
      %3814 = vmatpush2.msra.mxu0 0.0
      %3815 = vmatprep.subr.mxu0 0.0
      %3816 = vmatpush2.msra.mxu0 0.0
      %3817 = vmatprep.subr.mxu0 0.0
      %3818 = vmatpush2.msra.mxu0 0.0
      %3819 = vmatprep.subr.mxu0 0.0
      %3820 = vmatpush2.msra.mxu0 0.0
      %3821 = vmatprep.subr.mxu0 0.0
      %3822 = vmatpush2.msra.mxu0 0.0
      %3823 = vmatprep.subr.mxu0 0.0
      %3824 = vmatpush2.msra.mxu0 0.0
      %3825 = vmatprep.subr.mxu0 0.0
      %3826 = vmatpush2.msra.mxu0 0.0
      %3827 = vmatprep.subr.mxu0 0.0
      %3828 = vmatpush2.msra.mxu0 0.0
      %3829 = vmatprep.subr.mxu0 0.0
      %3830 = vmatpush2.msra.mxu0 0.0
      %3831 = vmatprep.subr.mxu0 0.0
      %3832 = vmatpush2.msra.mxu0 0.0
      %3833 = vmatprep.subr.mxu0 0.0
      %3834 = vmatpush2.msra.mxu0 0.0
      %3835 = vmatprep.subr.mxu0 0.0
      %3836 = vmatpush2.msra.mxu0 0.0
      %3837 = vmatprep.subr.mxu0 0.0
      %3838 = vmatpush2.msra.mxu0 0.0
      %3839 = vmatprep.subr.mxu0 0.0
      %3840 = vmatpush2.msra.mxu0 0.0
      %3841 = vmatprep.mubr.f32.mxu0 0.0
      %3842 = vmatmul.mubr.f32.gmra.mxu0 %v3771
      %v3843 = vpop.f32.mrf.mxu0
      %v3844 = vadd.f32 %v3752, %v3843
      %v3845 = vpop.f32.mrf.mxu0
      %v3846 = vadd.f32 %v3754, %v3845
      %3847 = vdwg.mxu0
      %s3848 = scalar_lea.vmem %s2, 16
      %v3849 = vld [vmem:[%s3848] sm:$0xff]
      %v3858 = vsel %vm3667, %v3263, %v3119
      %v3859 = vsel %vm3669, %v3407, %v3858
      %v3860 = vsel %vm3671, %v3551, %v3859
      %v3861 = vsel %vm3667, %v3271, %v3127
      %v3862 = vsel %vm3669, %v3415, %v3861
      %v3863 = vsel %vm3671, %v3559, %v3862
      %v3865 = vsel %vm3676, %v3849, 0
      %v3867 = vsel %vm3680, %v3860, 0
      %v3869 = vsel %vm3680, %v3863, 0
      %3871 = vmatprep.subr.mxu0 0.0
      %3872 = vmatpush1.msra.mxu0 0.0
      %3873 = vmatprep.subr.mxu0 0.0
      %3874 = vmatpush1.msra.mxu0 0.0
      %3875 = vmatprep.subr.mxu0 0.0
      %3876 = vmatpush1.msra.mxu0 0.0
      %3877 = vmatprep.subr.mxu0 0.0
      %3878 = vmatpush1.msra.mxu0 0.0
      %3879 = vmatprep.subr.mxu0 0.0
      %3880 = vmatpush1.msra.mxu0 0.0
      %3881 = vmatprep.subr.mxu0 0.0
      %3882 = vmatpush1.msra.mxu0 0.0
      %3883 = vmatprep.subr.mxu0 0.0
      %3884 = vmatpush1.msra.mxu0 0.0
      %3885 = vmatprep.subr.mxu0 0.0
      %3886 = vmatpush1.msra.mxu0 0.0
      %3887 = vmatprep.subr.mxu0 0.0
      %3888 = vmatpush1.msra.mxu0 0.0
      %3889 = vmatprep.subr.mxu0 0.0
      %3890 = vmatpush1.msra.mxu0 0.0
      %3891 = vmatprep.subr.mxu0 0.0
      %3892 = vmatpush1.msra.mxu0 0.0
      %3893 = vmatprep.subr.mxu0 0.0
      %3894 = vmatpush1.msra.mxu0 0.0
      %3895 = vmatprep.subr.mxu0 0.0
      %3896 = vmatpush1.msra.mxu0 0.0
      %3897 = vmatprep.subr.mxu0 0.0
      %3898 = vmatpush1.msra.mxu0 0.0
      %3899 = vmatprep.subr.mxu0 0.0
      %3900 = vmatpush1.msra.mxu0 0.0
      %3901 = vmatprep.subr.mxu0 %v3869
      %3902 = vmatpush1.msra.mxu0 %v3867
      %3903 = vmatprep.subr.mxu0 0.0
      %3904 = vmatpush2.msra.mxu0 0.0
      %3905 = vmatprep.subr.mxu0 0.0
      %3906 = vmatpush2.msra.mxu0 0.0
      %3907 = vmatprep.subr.mxu0 0.0
      %3908 = vmatpush2.msra.mxu0 0.0
      %3909 = vmatprep.subr.mxu0 0.0
      %3910 = vmatpush2.msra.mxu0 0.0
      %3911 = vmatprep.subr.mxu0 0.0
      %3912 = vmatpush2.msra.mxu0 0.0
      %3913 = vmatprep.subr.mxu0 0.0
      %3914 = vmatpush2.msra.mxu0 0.0
      %3915 = vmatprep.subr.mxu0 0.0
      %3916 = vmatpush2.msra.mxu0 0.0
      %3917 = vmatprep.subr.mxu0 0.0
      %3918 = vmatpush2.msra.mxu0 0.0
      %3919 = vmatprep.subr.mxu0 0.0
      %3920 = vmatpush2.msra.mxu0 0.0
      %3921 = vmatprep.subr.mxu0 0.0
      %3922 = vmatpush2.msra.mxu0 0.0
      %3923 = vmatprep.subr.mxu0 0.0
      %3924 = vmatpush2.msra.mxu0 0.0
      %3925 = vmatprep.subr.mxu0 0.0
      %3926 = vmatpush2.msra.mxu0 0.0
      %3927 = vmatprep.subr.mxu0 0.0
      %3928 = vmatpush2.msra.mxu0 0.0
      %3929 = vmatprep.subr.mxu0 0.0
      %3930 = vmatpush2.msra.mxu0 0.0
      %3931 = vmatprep.subr.mxu0 0.0
      %3932 = vmatpush2.msra.mxu0 0.0
      %3933 = vmatprep.subr.mxu0 0.0
      %3934 = vmatpush2.msra.mxu0 0.0
      %3935 = vmatprep.mubr.f32.mxu0 0.0
      %3936 = vmatmul.mubr.f32.gmra.mxu0 %v3865
      %v3937 = vpop.f32.mrf.mxu0
      %v3938 = vadd.f32 0.0, %v3937
      %v3939 = vpop.f32.mrf.mxu0
      %v3940 = vadd.f32 0.0, %v3939
      %3941 = vdwg.mxu0
      %v3942 = vadd.f32 %v3844, %v3938
      %v3943 = vadd.f32 %v3846, %v3940
      %s3944 = scalar_lea.vmem %s2, 24
      %v3945 = vld [vmem:[%s3944] sm:$0xff]
      %v3954 = vsel %vm3667, %v3279, %v3135
      %v3955 = vsel %vm3669, %v3423, %v3954
      %v3956 = vsel %vm3671, %v3567, %v3955
      %v3957 = vsel %vm3667, %v3287, %v3143
      %v3958 = vsel %vm3669, %v3431, %v3957
      %v3959 = vsel %vm3671, %v3575, %v3958
      %v3961 = vsel %vm3676, %v3945, 0
      %v3963 = vsel %vm3680, %v3956, 0
      %v3965 = vsel %vm3680, %v3959, 0
      %3967 = vmatprep.subr.mxu0 0.0
      %3968 = vmatpush1.msra.mxu0 0.0
      %3969 = vmatprep.subr.mxu0 0.0
      %3970 = vmatpush1.msra.mxu0 0.0
      %3971 = vmatprep.subr.mxu0 0.0
      %3972 = vmatpush1.msra.mxu0 0.0
      %3973 = vmatprep.subr.mxu0 0.0
      %3974 = vmatpush1.msra.mxu0 0.0
      %3975 = vmatprep.subr.mxu0 0.0
      %3976 = vmatpush1.msra.mxu0 0.0
      %3977 = vmatprep.subr.mxu0 0.0
      %3978 = vmatpush1.msra.mxu0 0.0
      %3979 = vmatprep.subr.mxu0 0.0
      %3980 = vmatpush1.msra.mxu0 0.0
      %3981 = vmatprep.subr.mxu0 0.0
      %3982 = vmatpush1.msra.mxu0 0.0
      %3983 = vmatprep.subr.mxu0 0.0
      %3984 = vmatpush1.msra.mxu0 0.0
      %3985 = vmatprep.subr.mxu0 0.0
      %3986 = vmatpush1.msra.mxu0 0.0
      %3987 = vmatprep.subr.mxu0 0.0
      %3988 = vmatpush1.msra.mxu0 0.0
      %3989 = vmatprep.subr.mxu0 0.0
      %3990 = vmatpush1.msra.mxu0 0.0
      %3991 = vmatprep.subr.mxu0 0.0
      %3992 = vmatpush1.msra.mxu0 0.0
      %3993 = vmatprep.subr.mxu0 0.0
      %3994 = vmatpush1.msra.mxu0 0.0
      %3995 = vmatprep.subr.mxu0 0.0
      %3996 = vmatpush1.msra.mxu0 0.0
      %3997 = vmatprep.subr.mxu0 %v3965
      %3998 = vmatpush1.msra.mxu0 %v3963
      %3999 = vmatprep.subr.mxu0 0.0
      %4000 = vmatpush2.msra.mxu0 0.0
      %4001 = vmatprep.subr.mxu0 0.0
      %4002 = vmatpush2.msra.mxu0 0.0
      %4003 = vmatprep.subr.mxu0 0.0
      %4004 = vmatpush2.msra.mxu0 0.0
      %4005 = vmatprep.subr.mxu0 0.0
      %4006 = vmatpush2.msra.mxu0 0.0
      %4007 = vmatprep.subr.mxu0 0.0
      %4008 = vmatpush2.msra.mxu0 0.0
      %4009 = vmatprep.subr.mxu0 0.0
      %4010 = vmatpush2.msra.mxu0 0.0
      %4011 = vmatprep.subr.mxu0 0.0
      %4012 = vmatpush2.msra.mxu0 0.0
      %4013 = vmatprep.subr.mxu0 0.0
      %4014 = vmatpush2.msra.mxu0 0.0
      %4015 = vmatprep.subr.mxu0 0.0
      %4016 = vmatpush2.msra.mxu0 0.0
      %4017 = vmatprep.subr.mxu0 0.0
      %4018 = vmatpush2.msra.mxu0 0.0
      %4019 = vmatprep.subr.mxu0 0.0
      %4020 = vmatpush2.msra.mxu0 0.0
      %4021 = vmatprep.subr.mxu0 0.0
      %4022 = vmatpush2.msra.mxu0 0.0
      %4023 = vmatprep.subr.mxu0 0.0
      %4024 = vmatpush2.msra.mxu0 0.0
      %4025 = vmatprep.subr.mxu0 0.0
      %4026 = vmatpush2.msra.mxu0 0.0
      %4027 = vmatprep.subr.mxu0 0.0
      %4028 = vmatpush2.msra.mxu0 0.0
      %4029 = vmatprep.subr.mxu0 0.0
      %4030 = vmatpush2.msra.mxu0 0.0
      %4031 = vmatprep.mubr.f32.mxu0 0.0
      %4032 = vmatmul.mubr.f32.gmra.mxu0 %v3961
      %v4033 = vpop.f32.mrf.mxu0
      %v4034 = vadd.f32 0.0, %v4033
      %v4035 = vpop.f32.mrf.mxu0
      %v4036 = vadd.f32 0.0, %v4035
      %4037 = vdwg.mxu0
      %v4038 = vadd.f32 %v3942, %v4034
      %v4039 = vadd.f32 %v3943, %v4036
      %s4040 = scalar_lea.vmem %s2, 32
      %v4041 = vld [vmem:[%s4040] sm:$0xff]
      %v4050 = vsel %vm3667, %v3295, %v3151
      %v4051 = vsel %vm3669, %v3439, %v4050
      %v4052 = vsel %vm3671, %v3583, %v4051
      %v4053 = vsel %vm3667, %v3303, %v3159
      %v4054 = vsel %vm3669, %v3447, %v4053
      %v4055 = vsel %vm3671, %v3591, %v4054
      %v4057 = vsel %vm3676, %v4041, 0
      %v4059 = vsel %vm3680, %v4052, 0
      %v4061 = vsel %vm3680, %v4055, 0
      %4063 = vmatprep.subr.mxu0 0.0
      %4064 = vmatpush1.msra.mxu0 0.0
      %4065 = vmatprep.subr.mxu0 0.0
      %4066 = vmatpush1.msra.mxu0 0.0
      %4067 = vmatprep.subr.mxu0 0.0
      %4068 = vmatpush1.msra.mxu0 0.0
      %4069 = vmatprep.subr.mxu0 0.0
      %4070 = vmatpush1.msra.mxu0 0.0
      %4071 = vmatprep.subr.mxu0 0.0
      %4072 = vmatpush1.msra.mxu0 0.0
      %4073 = vmatprep.subr.mxu0 0.0
      %4074 = vmatpush1.msra.mxu0 0.0
      %4075 = vmatprep.subr.mxu0 0.0
      %4076 = vmatpush1.msra.mxu0 0.0
      %4077 = vmatprep.subr.mxu0 0.0
      %4078 = vmatpush1.msra.mxu0 0.0
      %4079 = vmatprep.subr.mxu0 0.0
      %4080 = vmatpush1.msra.mxu0 0.0
      %4081 = vmatprep.subr.mxu0 0.0
      %4082 = vmatpush1.msra.mxu0 0.0
      %4083 = vmatprep.subr.mxu0 0.0
      %4084 = vmatpush1.msra.mxu0 0.0
      %4085 = vmatprep.subr.mxu0 0.0
      %4086 = vmatpush1.msra.mxu0 0.0
      %4087 = vmatprep.subr.mxu0 0.0
      %4088 = vmatpush1.msra.mxu0 0.0
      %4089 = vmatprep.subr.mxu0 0.0
      %4090 = vmatpush1.msra.mxu0 0.0
      %4091 = vmatprep.subr.mxu0 0.0
      %4092 = vmatpush1.msra.mxu0 0.0
      %4093 = vmatprep.subr.mxu0 %v4061
      %4094 = vmatpush1.msra.mxu0 %v4059
      %4095 = vmatprep.subr.mxu0 0.0
      %4096 = vmatpush2.msra.mxu0 0.0
      %4097 = vmatprep.subr.mxu0 0.0
      %4098 = vmatpush2.msra.mxu0 0.0
      %4099 = vmatprep.subr.mxu0 0.0
      %4100 = vmatpush2.msra.mxu0 0.0
      %4101 = vmatprep.subr.mxu0 0.0
      %4102 = vmatpush2.msra.mxu0 0.0
      %4103 = vmatprep.subr.mxu0 0.0
      %4104 = vmatpush2.msra.mxu0 0.0
      %4105 = vmatprep.subr.mxu0 0.0
      %4106 = vmatpush2.msra.mxu0 0.0
      %4107 = vmatprep.subr.mxu0 0.0
      %4108 = vmatpush2.msra.mxu0 0.0
      %4109 = vmatprep.subr.mxu0 0.0
      %4110 = vmatpush2.msra.mxu0 0.0
      %4111 = vmatprep.subr.mxu0 0.0
      %4112 = vmatpush2.msra.mxu0 0.0
      %4113 = vmatprep.subr.mxu0 0.0
      %4114 = vmatpush2.msra.mxu0 0.0
      %4115 = vmatprep.subr.mxu0 0.0
      %4116 = vmatpush2.msra.mxu0 0.0
      %4117 = vmatprep.subr.mxu0 0.0
      %4118 = vmatpush2.msra.mxu0 0.0
      %4119 = vmatprep.subr.mxu0 0.0
      %4120 = vmatpush2.msra.mxu0 0.0
      %4121 = vmatprep.subr.mxu0 0.0
      %4122 = vmatpush2.msra.mxu0 0.0
      %4123 = vmatprep.subr.mxu0 0.0
      %4124 = vmatpush2.msra.mxu0 0.0
      %4125 = vmatprep.subr.mxu0 0.0
      %4126 = vmatpush2.msra.mxu0 0.0
      %4127 = vmatprep.mubr.f32.mxu0 0.0
      %4128 = vmatmul.mubr.f32.gmra.mxu0 %v4057
      %v4129 = vpop.f32.mrf.mxu0
      %v4130 = vadd.f32 0.0, %v4129
      %v4131 = vpop.f32.mrf.mxu0
      %v4132 = vadd.f32 0.0, %v4131
      %4133 = vdwg.mxu0
      %v4134 = vadd.f32 %v4038, %v4130
      %v4135 = vadd.f32 %v4039, %v4132
      %s4136 = scalar_lea.vmem %s2, 40
      %v4137 = vld [vmem:[%s4136] sm:$0xff]
      %v4146 = vsel %vm3667, %v3311, %v3167
      %v4147 = vsel %vm3669, %v3455, %v4146
      %v4148 = vsel %vm3671, %v3599, %v4147
      %v4149 = vsel %vm3667, %v3319, %v3175
      %v4150 = vsel %vm3669, %v3463, %v4149
      %v4151 = vsel %vm3671, %v3607, %v4150
      %v4153 = vsel %vm3676, %v4137, 0
      %v4155 = vsel %vm3680, %v4148, 0
      %v4157 = vsel %vm3680, %v4151, 0
      %4159 = vmatprep.subr.mxu0 0.0
      %4160 = vmatpush1.msra.mxu0 0.0
      %4161 = vmatprep.subr.mxu0 0.0
      %4162 = vmatpush1.msra.mxu0 0.0
      %4163 = vmatprep.subr.mxu0 0.0
      %4164 = vmatpush1.msra.mxu0 0.0
      %4165 = vmatprep.subr.mxu0 0.0
      %4166 = vmatpush1.msra.mxu0 0.0
      %4167 = vmatprep.subr.mxu0 0.0
      %4168 = vmatpush1.msra.mxu0 0.0
      %4169 = vmatprep.subr.mxu0 0.0
      %4170 = vmatpush1.msra.mxu0 0.0
      %4171 = vmatprep.subr.mxu0 0.0
      %4172 = vmatpush1.msra.mxu0 0.0
      %4173 = vmatprep.subr.mxu0 0.0
      %4174 = vmatpush1.msra.mxu0 0.0
      %4175 = vmatprep.subr.mxu0 0.0
      %4176 = vmatpush1.msra.mxu0 0.0
      %4177 = vmatprep.subr.mxu0 0.0
      %4178 = vmatpush1.msra.mxu0 0.0
      %4179 = vmatprep.subr.mxu0 0.0
      %4180 = vmatpush1.msra.mxu0 0.0
      %4181 = vmatprep.subr.mxu0 0.0
      %4182 = vmatpush1.msra.mxu0 0.0
      %4183 = vmatprep.subr.mxu0 0.0
      %4184 = vmatpush1.msra.mxu0 0.0
      %4185 = vmatprep.subr.mxu0 0.0
      %4186 = vmatpush1.msra.mxu0 0.0
      %4187 = vmatprep.subr.mxu0 0.0
      %4188 = vmatpush1.msra.mxu0 0.0
      %4189 = vmatprep.subr.mxu0 %v4157
      %4190 = vmatpush1.msra.mxu0 %v4155
      %4191 = vmatprep.subr.mxu0 0.0
      %4192 = vmatpush2.msra.mxu0 0.0
      %4193 = vmatprep.subr.mxu0 0.0
      %4194 = vmatpush2.msra.mxu0 0.0
      %4195 = vmatprep.subr.mxu0 0.0
      %4196 = vmatpush2.msra.mxu0 0.0
      %4197 = vmatprep.subr.mxu0 0.0
      %4198 = vmatpush2.msra.mxu0 0.0
      %4199 = vmatprep.subr.mxu0 0.0
      %4200 = vmatpush2.msra.mxu0 0.0
      %4201 = vmatprep.subr.mxu0 0.0
      %4202 = vmatpush2.msra.mxu0 0.0
      %4203 = vmatprep.subr.mxu0 0.0
      %4204 = vmatpush2.msra.mxu0 0.0
      %4205 = vmatprep.subr.mxu0 0.0
      %4206 = vmatpush2.msra.mxu0 0.0
      %4207 = vmatprep.subr.mxu0 0.0
      %4208 = vmatpush2.msra.mxu0 0.0
      %4209 = vmatprep.subr.mxu0 0.0
      %4210 = vmatpush2.msra.mxu0 0.0
      %4211 = vmatprep.subr.mxu0 0.0
      %4212 = vmatpush2.msra.mxu0 0.0
      %4213 = vmatprep.subr.mxu0 0.0
      %4214 = vmatpush2.msra.mxu0 0.0
      %4215 = vmatprep.subr.mxu0 0.0
      %4216 = vmatpush2.msra.mxu0 0.0
      %4217 = vmatprep.subr.mxu0 0.0
      %4218 = vmatpush2.msra.mxu0 0.0
      %4219 = vmatprep.subr.mxu0 0.0
      %4220 = vmatpush2.msra.mxu0 0.0
      %4221 = vmatprep.subr.mxu0 0.0
      %4222 = vmatpush2.msra.mxu0 0.0
      %4223 = vmatprep.mubr.f32.mxu0 0.0
      %4224 = vmatmul.mubr.f32.gmra.mxu0 %v4153
      %v4225 = vpop.f32.mrf.mxu0
      %v4226 = vadd.f32 0.0, %v4225
      %v4227 = vpop.f32.mrf.mxu0
      %v4228 = vadd.f32 0.0, %v4227
      %4229 = vdwg.mxu0
      %v4230 = vadd.f32 %v4134, %v4226
      %v4231 = vadd.f32 %v4135, %v4228
      %s4232 = scalar_lea.vmem %s2, 48
      %v4233 = vld [vmem:[%s4232] sm:$0xff]
      %v4242 = vsel %vm3667, %v3327, %v3183
      %v4243 = vsel %vm3669, %v3471, %v4242
      %v4244 = vsel %vm3671, %v3615, %v4243
      %v4245 = vsel %vm3667, %v3335, %v3191
      %v4246 = vsel %vm3669, %v3479, %v4245
      %v4247 = vsel %vm3671, %v3623, %v4246
      %v4249 = vsel %vm3676, %v4233, 0
      %v4251 = vsel %vm3680, %v4244, 0
      %v4253 = vsel %vm3680, %v4247, 0
      %4255 = vmatprep.subr.mxu0 0.0
      %4256 = vmatpush1.msra.mxu0 0.0
      %4257 = vmatprep.subr.mxu0 0.0
      %4258 = vmatpush1.msra.mxu0 0.0
      %4259 = vmatprep.subr.mxu0 0.0
      %4260 = vmatpush1.msra.mxu0 0.0
      %4261 = vmatprep.subr.mxu0 0.0
      %4262 = vmatpush1.msra.mxu0 0.0
      %4263 = vmatprep.subr.mxu0 0.0
      %4264 = vmatpush1.msra.mxu0 0.0
      %4265 = vmatprep.subr.mxu0 0.0
      %4266 = vmatpush1.msra.mxu0 0.0
      %4267 = vmatprep.subr.mxu0 0.0
      %4268 = vmatpush1.msra.mxu0 0.0
      %4269 = vmatprep.subr.mxu0 0.0
      %4270 = vmatpush1.msra.mxu0 0.0
      %4271 = vmatprep.subr.mxu0 0.0
      %4272 = vmatpush1.msra.mxu0 0.0
      %4273 = vmatprep.subr.mxu0 0.0
      %4274 = vmatpush1.msra.mxu0 0.0
      %4275 = vmatprep.subr.mxu0 0.0
      %4276 = vmatpush1.msra.mxu0 0.0
      %4277 = vmatprep.subr.mxu0 0.0
      %4278 = vmatpush1.msra.mxu0 0.0
      %4279 = vmatprep.subr.mxu0 0.0
      %4280 = vmatpush1.msra.mxu0 0.0
      %4281 = vmatprep.subr.mxu0 0.0
      %4282 = vmatpush1.msra.mxu0 0.0
      %4283 = vmatprep.subr.mxu0 0.0
      %4284 = vmatpush1.msra.mxu0 0.0
      %4285 = vmatprep.subr.mxu0 %v4253
      %4286 = vmatpush1.msra.mxu0 %v4251
      %4287 = vmatprep.subr.mxu0 0.0
      %4288 = vmatpush2.msra.mxu0 0.0
      %4289 = vmatprep.subr.mxu0 0.0
      %4290 = vmatpush2.msra.mxu0 0.0
      %4291 = vmatprep.subr.mxu0 0.0
      %4292 = vmatpush2.msra.mxu0 0.0
      %4293 = vmatprep.subr.mxu0 0.0
      %4294 = vmatpush2.msra.mxu0 0.0
      %4295 = vmatprep.subr.mxu0 0.0
      %4296 = vmatpush2.msra.mxu0 0.0
      %4297 = vmatprep.subr.mxu0 0.0
      %4298 = vmatpush2.msra.mxu0 0.0
      %4299 = vmatprep.subr.mxu0 0.0
      %4300 = vmatpush2.msra.mxu0 0.0
      %4301 = vmatprep.subr.mxu0 0.0
      %4302 = vmatpush2.msra.mxu0 0.0
      %4303 = vmatprep.subr.mxu0 0.0
      %4304 = vmatpush2.msra.mxu0 0.0
      %4305 = vmatprep.subr.mxu0 0.0
      %4306 = vmatpush2.msra.mxu0 0.0
      %4307 = vmatprep.subr.mxu0 0.0
      %4308 = vmatpush2.msra.mxu0 0.0
      %4309 = vmatprep.subr.mxu0 0.0
      %4310 = vmatpush2.msra.mxu0 0.0
      %4311 = vmatprep.subr.mxu0 0.0
      %4312 = vmatpush2.msra.mxu0 0.0
      %4313 = vmatprep.subr.mxu0 0.0
      %4314 = vmatpush2.msra.mxu0 0.0
      %4315 = vmatprep.subr.mxu0 0.0
      %4316 = vmatpush2.msra.mxu0 0.0
      %4317 = vmatprep.subr.mxu0 0.0
      %4318 = vmatpush2.msra.mxu0 0.0
      %4319 = vmatprep.mubr.f32.mxu0 0.0
      %4320 = vmatmul.mubr.f32.gmra.mxu0 %v4249
      %v4321 = vpop.f32.mrf.mxu0
      %v4322 = vadd.f32 0.0, %v4321
      %v4323 = vpop.f32.mrf.mxu0
      %v4324 = vadd.f32 0.0, %v4323
      %4325 = vdwg.mxu0
      %v4326 = vadd.f32 %v4230, %v4322
      %v4327 = vadd.f32 %v4231, %v4324
      %s4328 = scalar_lea.vmem %s2, 56
      %v4329 = vld [vmem:[%s4328] sm:$0xff]
      %v4338 = vsel %vm3667, %v3343, %v3199
      %v4339 = vsel %vm3669, %v3487, %v4338
      %v4340 = vsel %vm3671, %v3631, %v4339
      %v4341 = vsel %vm3667, %v3351, %v3207
      %v4342 = vsel %vm3669, %v3495, %v4341
      %v4343 = vsel %vm3671, %v3639, %v4342
      %v4345 = vsel %vm3676, %v4329, 0
      %v4347 = vsel %vm3680, %v4340, 0
      %v4349 = vsel %vm3680, %v4343, 0
      %4351 = vmatprep.subr.mxu0 0.0
      %4352 = vmatpush1.msra.mxu0 0.0
      %4353 = vmatprep.subr.mxu0 0.0
      %4354 = vmatpush1.msra.mxu0 0.0
      %4355 = vmatprep.subr.mxu0 0.0
      %4356 = vmatpush1.msra.mxu0 0.0
      %4357 = vmatprep.subr.mxu0 0.0
      %4358 = vmatpush1.msra.mxu0 0.0
      %4359 = vmatprep.subr.mxu0 0.0
      %4360 = vmatpush1.msra.mxu0 0.0
      %4361 = vmatprep.subr.mxu0 0.0
      %4362 = vmatpush1.msra.mxu0 0.0
      %4363 = vmatprep.subr.mxu0 0.0
      %4364 = vmatpush1.msra.mxu0 0.0
      %4365 = vmatprep.subr.mxu0 0.0
      %4366 = vmatpush1.msra.mxu0 0.0
      %4367 = vmatprep.subr.mxu0 0.0
      %4368 = vmatpush1.msra.mxu0 0.0
      %4369 = vmatprep.subr.mxu0 0.0
      %4370 = vmatpush1.msra.mxu0 0.0
      %4371 = vmatprep.subr.mxu0 0.0
      %4372 = vmatpush1.msra.mxu0 0.0
      %4373 = vmatprep.subr.mxu0 0.0
      %4374 = vmatpush1.msra.mxu0 0.0
      %4375 = vmatprep.subr.mxu0 0.0
      %4376 = vmatpush1.msra.mxu0 0.0
      %4377 = vmatprep.subr.mxu0 0.0
      %4378 = vmatpush1.msra.mxu0 0.0
      %4379 = vmatprep.subr.mxu0 0.0
      %4380 = vmatpush1.msra.mxu0 0.0
      %4381 = vmatprep.subr.mxu0 %v4349
      %4382 = vmatpush1.msra.mxu0 %v4347
      %4383 = vmatprep.subr.mxu0 0.0
      %4384 = vmatpush2.msra.mxu0 0.0
      %4385 = vmatprep.subr.mxu0 0.0
      %4386 = vmatpush2.msra.mxu0 0.0
      %4387 = vmatprep.subr.mxu0 0.0
      %4388 = vmatpush2.msra.mxu0 0.0
      %4389 = vmatprep.subr.mxu0 0.0
      %4390 = vmatpush2.msra.mxu0 0.0
      %4391 = vmatprep.subr.mxu0 0.0
      %4392 = vmatpush2.msra.mxu0 0.0
      %4393 = vmatprep.subr.mxu0 0.0
      %4394 = vmatpush2.msra.mxu0 0.0
      %4395 = vmatprep.subr.mxu0 0.0
      %4396 = vmatpush2.msra.mxu0 0.0
      %4397 = vmatprep.subr.mxu0 0.0
      %4398 = vmatpush2.msra.mxu0 0.0
      %4399 = vmatprep.subr.mxu0 0.0
      %4400 = vmatpush2.msra.mxu0 0.0
      %4401 = vmatprep.subr.mxu0 0.0
      %4402 = vmatpush2.msra.mxu0 0.0
      %4403 = vmatprep.subr.mxu0 0.0
      %4404 = vmatpush2.msra.mxu0 0.0
      %4405 = vmatprep.subr.mxu0 0.0
      %4406 = vmatpush2.msra.mxu0 0.0
      %4407 = vmatprep.subr.mxu0 0.0
      %4408 = vmatpush2.msra.mxu0 0.0
      %4409 = vmatprep.subr.mxu0 0.0
      %4410 = vmatpush2.msra.mxu0 0.0
      %4411 = vmatprep.subr.mxu0 0.0
      %4412 = vmatpush2.msra.mxu0 0.0
      %4413 = vmatprep.subr.mxu0 0.0
      %4414 = vmatpush2.msra.mxu0 0.0
      %4415 = vmatprep.mubr.f32.mxu0 0.0
      %4416 = vmatmul.mubr.f32.gmra.mxu0 %v4345
      %v4417 = vpop.f32.mrf.mxu0
      %v4418 = vadd.f32 0.0, %v4417
      %v4419 = vpop.f32.mrf.mxu0
      %v4420 = vadd.f32 0.0, %v4419
      %4421 = vdwg.mxu0
      %v4422 = vadd.f32 %v4326, %v4418
      %v4423 = vadd.f32 %v4327, %v4420
      %s4424 = scalar_lea.vmem %s2, 64
      %v4425 = vld [vmem:[%s4424] sm:$0xff]
      %v4434 = vsel %vm3667, %v3359, %v3215
      %v4435 = vsel %vm3669, %v3503, %v4434
      %v4436 = vsel %vm3671, %v3647, %v4435
      %v4437 = vsel %vm3667, %v3367, %v3223
      %v4438 = vsel %vm3669, %v3511, %v4437
      %v4439 = vsel %vm3671, %v3655, %v4438
      %v4441 = vsel %vm3676, %v4425, 0
      %v4443 = vsel %vm3680, %v4436, 0
      %v4445 = vsel %vm3680, %v4439, 0
      %4447 = vmatprep.subr.mxu0 0.0
      %4448 = vmatpush1.msra.mxu0 0.0
      %4449 = vmatprep.subr.mxu0 0.0
      %4450 = vmatpush1.msra.mxu0 0.0
      %4451 = vmatprep.subr.mxu0 0.0
      %4452 = vmatpush1.msra.mxu0 0.0
      %4453 = vmatprep.subr.mxu0 0.0
      %4454 = vmatpush1.msra.mxu0 0.0
      %4455 = vmatprep.subr.mxu0 0.0
      %4456 = vmatpush1.msra.mxu0 0.0
      %4457 = vmatprep.subr.mxu0 0.0
      %4458 = vmatpush1.msra.mxu0 0.0
      %4459 = vmatprep.subr.mxu0 0.0
      %4460 = vmatpush1.msra.mxu0 0.0
      %4461 = vmatprep.subr.mxu0 0.0
      %4462 = vmatpush1.msra.mxu0 0.0
      %4463 = vmatprep.subr.mxu0 0.0
      %4464 = vmatpush1.msra.mxu0 0.0
      %4465 = vmatprep.subr.mxu0 0.0
      %4466 = vmatpush1.msra.mxu0 0.0
      %4467 = vmatprep.subr.mxu0 0.0
      %4468 = vmatpush1.msra.mxu0 0.0
      %4469 = vmatprep.subr.mxu0 0.0
      %4470 = vmatpush1.msra.mxu0 0.0
      %4471 = vmatprep.subr.mxu0 0.0
      %4472 = vmatpush1.msra.mxu0 0.0
      %4473 = vmatprep.subr.mxu0 0.0
      %4474 = vmatpush1.msra.mxu0 0.0
      %4475 = vmatprep.subr.mxu0 0.0
      %4476 = vmatpush1.msra.mxu0 0.0
      %4477 = vmatprep.subr.mxu0 %v4445
      %4478 = vmatpush1.msra.mxu0 %v4443
      %4479 = vmatprep.subr.mxu0 0.0
      %4480 = vmatpush2.msra.mxu0 0.0
      %4481 = vmatprep.subr.mxu0 0.0
      %4482 = vmatpush2.msra.mxu0 0.0
      %4483 = vmatprep.subr.mxu0 0.0
      %4484 = vmatpush2.msra.mxu0 0.0
      %4485 = vmatprep.subr.mxu0 0.0
      %4486 = vmatpush2.msra.mxu0 0.0
      %4487 = vmatprep.subr.mxu0 0.0
      %4488 = vmatpush2.msra.mxu0 0.0
      %4489 = vmatprep.subr.mxu0 0.0
      %4490 = vmatpush2.msra.mxu0 0.0
      %4491 = vmatprep.subr.mxu0 0.0
      %4492 = vmatpush2.msra.mxu0 0.0
      %4493 = vmatprep.subr.mxu0 0.0
      %4494 = vmatpush2.msra.mxu0 0.0
      %4495 = vmatprep.subr.mxu0 0.0
      %4496 = vmatpush2.msra.mxu0 0.0
      %4497 = vmatprep.subr.mxu0 0.0
      %4498 = vmatpush2.msra.mxu0 0.0
      %4499 = vmatprep.subr.mxu0 0.0
      %4500 = vmatpush2.msra.mxu0 0.0
      %4501 = vmatprep.subr.mxu0 0.0
      %4502 = vmatpush2.msra.mxu0 0.0
      %4503 = vmatprep.subr.mxu0 0.0
      %4504 = vmatpush2.msra.mxu0 0.0
      %4505 = vmatprep.subr.mxu0 0.0
      %4506 = vmatpush2.msra.mxu0 0.0
      %4507 = vmatprep.subr.mxu0 0.0
      %4508 = vmatpush2.msra.mxu0 0.0
      %4509 = vmatprep.subr.mxu0 0.0
      %4510 = vmatpush2.msra.mxu0 0.0
      %4511 = vmatprep.mubr.f32.mxu0 0.0
      %4512 = vmatmul.mubr.f32.gmra.mxu0 %v4441
      %v4513 = vpop.f32.mrf.mxu0
      %v4514 = vadd.f32 0.0, %v4513
      %v4515 = vpop.f32.mrf.mxu0
      %v4516 = vadd.f32 0.0, %v4515
      %4517 = vdwg.mxu0
      %v4518 = vadd.f32 %v4422, %v4514
      %v4519 = vadd.f32 %v4423, %v4516
      %4520 = vst [vmem:[%s226] sm:$0xff] %v4518
      %4521 = vst [vmem:[%s226 + $0x8] sm:$0xff] %v4519
      %s4522 = smul.u32 2, %s19
      %p4523 = scmp.lt.s32.totalorder %s18, 1
      %s4524 = scalar_select %p4523, %s18, 1
      %p4525 = scmp.lt.s32.totalorder %s4522, 1
      %s4526 = scalar_select %p4525, %s4522, 1
      %s4527 = smul.addr %s4524, 2
      %s4528 = sadd.s32 %s4526, %s4527
      %s4529 = smul.addr %s4528, 8
      %s4530 = scalar_lea.vmem %s3, %s4529
      // Predicated region
      $region33: #{deform_conv2d_forward.3} parent=31 // pred_check
        %p4531 = pneg %p121
      $region34: #{deform_conv2d_forward.3} parent=31 // pred_check_branch
        %4533 = sbr.rel (%p4531) target = $region36
      $region35: #{deform_conv2d_forward.3} parent=31 // pred_region
        %s4534 = smul.u32 2, %s19
      $region36: #{deform_conv2d_forward.3} parent=31 // pred_fallthru
        _
    $region32: #{deform_conv2d_forward.3} parent=5 // pred_fallthru
      _
    %p4535 = scmp.le.s32.totalorder 2, %s9
    // Predicated region
    $region37: #{deform_conv2d_forward.3} parent=5 // pred_check
      %p4536 = pneg %p4535
    $region38: #{deform_conv2d_forward.3} parent=5 // pred_check_branch
      %4538 = sbr.rel (%p4536) target = $region40
    $region39: #{deform_conv2d_forward.3} parent=5 // pred_region
      %s4539 = ssub.s32 %s9, 2
      // Predicated region
      $region41: #{deform_conv2d_forward.3} parent=39 // pred_check
        %p4540 = pneg %p127
      $region42: #{deform_conv2d_forward.3} parent=39 // pred_check_branch
        %4542 = sbr.rel (%p4540) target = $region44
      $region43: #{deform_conv2d_forward.3} parent=39 // pred_region
        %s4543 = smul.u32 2, %s21
        %p4544 = scmp.lt.s32.totalorder %s20, 1
        %s4545 = scalar_select %p4544, %s20, 1
        %p4546 = scmp.lt.s32.totalorder %s4543, 1
        %s4547 = scalar_select %p4546, %s4543, 1
        %s4548 = smul.addr %s4545, 2
        %s4549 = sadd.s32 %s4547, %s4548
        %s4550 = smul.addr %s4549, 8
        %s4551 = scalar_lea.vmem %s3, %s4550
      $region44: #{deform_conv2d_forward.3} parent=39 // pred_fallthru
        _
    $region40: #{deform_conv2d_forward.3} parent=5 // pred_fallthru
      _
  $region6: #{deform_conv2d_forward.3} parent=0 // loop_footer
    %s13 = sadd.s32 1, %s9
  $region7: #{deform_conv2d_forward.3} parent=0 // loop_footer_branch
    %8 = sbr.rel target = $region3
  $region8: #{deform_conv2d_forward.3} parent=0 // loop_exit
    _

</llo_original>
